<compile_context>
chip_gen: v7x
topology: tpu7x:2x2x1
jax: 0.10.0
libtpu: 0.0.40
codegen_flags: <defaults>
</compile_context>

<pallas_src>
import functools

import jax
import jax.numpy as jnp
from jax.experimental import pallas as pl
from jax.experimental.pallas import tpu as pltpu


def _round_up(v, m):
    return ((v + m - 1) // m) * m


# -----------------------------------------------------------------------------
# Fused Pallas kernel: conv1+BN+ReLU -> conv2+BN+ReLU -> channel attention
# -----------------------------------------------------------------------------
def en_blocks_fused_kernel(xp_ref, mask_ref, w1_ref, s1_ref, sh1_ref,
                           w2_ref, s2_ref, sh2_ref,
                           wa1_ref, ba1_ref, wa2_ref, ba2_ref,
                           o_ref, y1_scr, *, H, W, P, QP):
    """One image per grid step.

    xp_ref:   (1, P+2, QP+2, Cin) f32  input zero-padded by 2 (+ align cols)
    mask_ref: (P*QP, 1)           f32  1 on the true HxW interior, 0 on the ring
    w1_ref:   (9*Cin, Cmid)       bf16 conv1 weights, tap-major rows
    s1/sh1:   (1, Cmid)           f32  folded BN1 scale/shift
    w2_ref:   (9*Cmid, Cp)        bf16 conv2 weights (Cout zero-padded to Cp)
    s2/sh2:   (1, Cp)             f32  folded BN2 scale/shift
    wa1_ref:  (Cp, Chid), ba1_ref:(1, Chid)  channel-att squeeze (f32)
    wa2_ref:  (Chid, Cp), ba2_ref:(1, Cp)    channel-att excite (f32)
    o_ref:    (1, H*W, Cp)        f32  gated output (lane-dense: Cp % 128 == 0)
    y1_scr:   (P, QP, Cmid)       f32  VMEM scratch: zero-padded conv1 output
    """
    cin = xp_ref.shape[3]
    cmid = w1_ref.shape[1]
    hw = H * W

    # ---- conv1 (3x3 SAME), evaluated on the padded-by-one domain (P, QP);
    # taps come straight from the VMEM block: no HBM im2col materialization.
    taps1 = [
        xp_ref[0, kh:kh + P, kw:kw + QP, :].reshape(P * QP, cin)
        for kh in range(3) for kw in range(3)
    ]
    xcol1 = jnp.concatenate(taps1, axis=-1).astype(jnp.bfloat16)   # (P*QP, 9Cin)
    y1 = jnp.dot(xcol1, w1_ref[...], preferred_element_type=jnp.float32)
    y1 = jnp.maximum(y1 * s1_ref[...] + sh1_ref[...], 0.0)         # BN+ReLU, f32
    y1 = y1 * mask_ref[...]               # zero the ring == conv2's zero padding
    y1_scr[...] = y1.reshape(P, QP, cmid)          # stays in VMEM, no HBM trip

    # ---- conv2 (3x3 SAME) on the HxW interior: single K = 9*Cmid matmul
    taps2 = [
        y1_scr[kh:kh + H, kw:kw + W, :].reshape(hw, cmid)
        for kh in range(3) for kw in range(3)
    ]
    xcol2 = jnp.concatenate(taps2, axis=-1).astype(jnp.bfloat16)   # (HW, 9Cmid)
    y2 = jnp.dot(xcol2, w2_ref[...], preferred_element_type=jnp.float32)
    y2 = jnp.maximum(y2 * s2_ref[...] + sh2_ref[...], 0.0)         # (HW, Cp)

    # ---- channel attention (squeeze-excite); elementwise math kept in f32
    gp = jnp.sum(y2, axis=0, keepdims=True) * (1.0 / hw)           # (1, Cp)
    hid = jnp.dot(gp, wa1_ref[...], preferred_element_type=jnp.float32)
    hid = jnp.maximum(hid + ba1_ref[...], 0.0)                     # (1, Chid)
    z = jnp.dot(hid, wa2_ref[...], preferred_element_type=jnp.float32)
    z = z + ba2_ref[...]
    se = 1.0 / (1.0 + jnp.exp(-z))                                 # sigmoid (1, Cp)
    o_ref[0, :, :] = y2 * se                     # lane-dense (HW, Cp) store


# -----------------------------------------------------------------------------
# Wrapper: padding, BN folding, channel padding, pallas_call plumbing
# -----------------------------------------------------------------------------
def fold_bn(conv_bias, gamma, beta, mean, var, eps=1e-5):
    scale = gamma / jnp.sqrt(var + eps)
    shift = beta + scale * (conv_bias - mean)
    return scale, shift


@jax.jit
def en_blocks_forward(x_nchw, params):
    p = params
    x = jnp.transpose(x_nchw, (0, 2, 3, 1))          # NCHW -> NHWC
    n, h, w, cin = x.shape
    cmid = p["w1"].shape[-1]
    cout = p["w2"].shape[-1]
    chid = p["wa1"].shape[-1]
    hw = h * w

    # conv1 output domain = zero-padded-by-one y1 map; width rounded up to a
    # multiple of 8 so every in-kernel reshape is tile-aligned.
    P = h + 2
    QP = _round_up(w + 2, 8)
    cpad = _round_up(cout, 128)                      # lane-dense output channels

    # input padded by 2 (conv1 on the padded domain) + width-alignment zeros
    xp = jnp.pad(x, ((0, 0), (2, 2), (2, QP - w), (0, 0)))     # (N, P+2, QP+2, Cin)

    # interior mask over the (P, QP) conv1 output domain
    rr = jnp.arange(P).reshape(P, 1)
    cc = jnp.arange(QP).reshape(1, QP)
    mask = ((rr >= 1) & (rr <= h) & (cc >= 1) & (cc <= w))
    mask = mask.astype(jnp.float32).reshape(P * QP, 1)

    # fold BN into per-channel scale/shift; bf16 matmul weights, f32 epilogue
    s1, sh1 = fold_bn(p["b1"], p["bn1_g"], p["bn1_b"], p["bn1_m"], p["bn1_v"])
    s2, sh2 = fold_bn(p["b2"], p["bn2_g"], p["bn2_b"], p["bn2_m"], p["bn2_v"])
    w1 = p["w1"].reshape(9 * cin, cmid).astype(jnp.bfloat16)
    w2 = jnp.pad(p["w2"].reshape(9 * cmid, cout),
                 ((0, 0), (0, cpad - cout))).astype(jnp.bfloat16)
    s2p = jnp.pad(s2, (0, cpad - cout)).reshape(1, cpad)
    sh2p = jnp.pad(sh2, (0, cpad - cout)).reshape(1, cpad)
    wa1p = jnp.pad(p["wa1"], ((0, cpad - cout), (0, 0)))         # (Cp, Chid)
    wa2p = jnp.pad(p["wa2"], ((0, 0), (0, cpad - cout)))         # (Chid, Cp)
    ba2p = jnp.pad(p["ba2"], (0, cpad - cout)).reshape(1, cpad)

    kernel = functools.partial(en_blocks_fused_kernel, H=h, W=w, P=P, QP=QP)
    out = pl.pallas_call(
        kernel,
        out_shape=jax.ShapeDtypeStruct((n, hw, cpad), jnp.float32),
        grid=(n,),
        in_specs=[
            pl.BlockSpec((1, P + 2, QP + 2, cin), lambda i: (i, 0, 0, 0)),
            pl.BlockSpec((P * QP, 1), lambda i: (0, 0)),
            pl.BlockSpec((9 * cin, cmid), lambda i: (0, 0)),
            pl.BlockSpec((1, cmid), lambda i: (0, 0)),
            pl.BlockSpec((1, cmid), lambda i: (0, 0)),
            pl.BlockSpec((9 * cmid, cpad), lambda i: (0, 0)),
            pl.BlockSpec((1, cpad), lambda i: (0, 0)),
            pl.BlockSpec((1, cpad), lambda i: (0, 0)),
            pl.BlockSpec((cpad, chid), lambda i: (0, 0)),
            pl.BlockSpec((1, chid), lambda i: (0, 0)),
            pl.BlockSpec((chid, cpad), lambda i: (0, 0)),
            pl.BlockSpec((1, cpad), lambda i: (0, 0)),
        ],
        out_specs=pl.BlockSpec((1, hw, cpad), lambda i: (i, 0, 0)),
        scratch_shapes=[pltpu.VMEM((P, QP, cmid), jnp.float32)],
        compiler_params=pltpu.CompilerParams(
            dimension_semantics=("parallel",),
            vmem_limit_bytes=32 * 1024 * 1024),
    )(xp, mask, w1, s1.reshape(1, cmid), sh1.reshape(1, cmid),
      w2, s2p, sh2p, wa1p, p["ba1"].reshape(1, chid), wa2p, ba2p)

    out = out[:, :, :cout]                            # drop channel padding
    return jnp.transpose(out, (0, 2, 1)).reshape(n, cout, h, w)   # NCHW


# -----------------------------------------------------------------------------
# Pure-JAX reference (f32, or bf16-matmul-matched for tight checking)
# -----------------------------------------------------------------------------
def reference_forward(x_nchw, params, eps=1e-5, match_bf16=False):
    p = params
    x = jnp.transpose(x_nchw, (0, 2, 3, 1))
    mm_dtype = jnp.bfloat16 if match_bf16 else jnp.float32

    def cbr(xin, wgt, b, g, be, m, v):
        y = jax.lax.conv_general_dilated(
            xin.astype(mm_dtype), wgt.astype(mm_dtype), (1, 1), "SAME",
            dimension_numbers=("NHWC", "HWIO", "NHWC"),
            preferred_element_type=jnp.float32) + b
        y = (y - m) / jnp.sqrt(v + eps) * g + be
        return jnp.maximum(y, 0.0)

    y1 = cbr(x, p["w1"], p["b1"], p["bn1_g"], p["bn1_b"], p["bn1_m"], p["bn1_v"])
    y2 = cbr(y1, p["w2"], p["b2"], p["bn2_g"], p["bn2_b"], p["bn2_m"], p["bn2_v"])

    gp = jnp.mean(y2, axis=(1, 2), keepdims=True)             # (N,1,1,C)
    h = jnp.maximum(jnp.einsum("nijc,cd->nijd", gp, p["wa1"]) + p["ba1"], 0.0)
    se = jax.nn.sigmoid(jnp.einsum("nijd,dc->nijc", h, p["wa2"]) + p["ba2"])
    out = y2 * se
    return jnp.transpose(out, (0, 3, 1, 2))


# -----------------------------------------------------------------------------
# Deterministic parameter init (mirrors nn.Module shapes)
# -----------------------------------------------------------------------------
def init_params(key, in_channel, out_channel, decay=1, att_decay=8):
    cmid = out_channel // decay
    cout = out_channel
    chid = cout // att_decay
    ks = jax.random.split(key, 16)

    def conv_w(k, co, ci):
        # PyTorch layout (Cout, Cin, 3, 3) -> HWIO (3, 3, Cin, Cout)
        w = 0.1 * jax.random.normal(k, (co, ci, 3, 3), jnp.float32)
        return jnp.transpose(w, (2, 3, 1, 0))

    params = {
        "w1": conv_w(ks[0], cmid, in_channel),
        "b1": 0.1 * jax.random.normal(ks[1], (cmid,), jnp.float32),
        "bn1_g": jax.random.uniform(ks[2], (cmid,), jnp.float32, 0.5, 1.5),
        "bn1_b": 0.1 * jax.random.normal(ks[3], (cmid,), jnp.float32),
        "bn1_m": 0.1 * jax.random.normal(ks[4], (cmid,), jnp.float32),
        "bn1_v": jax.random.uniform(ks[5], (cmid,), jnp.float32, 0.5, 1.5),
        "w2": conv_w(ks[6], cout, cmid),
        "b2": 0.1 * jax.random.normal(ks[7], (cout,), jnp.float32),
        "bn2_g": jax.random.uniform(ks[8], (cout,), jnp.float32, 0.5, 1.5),
        "bn2_b": 0.1 * jax.random.normal(ks[9], (cout,), jnp.float32),
        "bn2_m": 0.1 * jax.random.normal(ks[10], (cout,), jnp.float32),
        "bn2_v": jax.random.uniform(ks[11], (cout,), jnp.float32, 0.5, 1.5),
    }
    # Channelatt 3x3 convs act on a 1x1 map with padding=1 -> only the center
    # tap contributes; extract it (exact same math as PyTorch).
    wa1_full = 0.1 * jax.random.normal(ks[12], (chid, cout, 3, 3), jnp.float32)
    wa2_full = 0.1 * jax.random.normal(ks[14], (cout, chid, 3, 3), jnp.float32)
    params["wa1"] = jnp.transpose(wa1_full[:, :, 1, 1], (1, 0))   # (C, C//8)
    params["ba1"] = 0.1 * jax.random.normal(ks[13], (chid,), jnp.float32)
    params["wa2"] = jnp.transpose(wa2_full[:, :, 1, 1], (1, 0))   # (C//8, C)
    params["ba2"] = 0.1 * jax.random.normal(ks[15], (cout,), jnp.float32)
    return params


# -----------------------------------------------------------------------------
if __name__ == "__main__":
    N, C_IN, H, W = 2, 4, 16, 16
    C_OUT = 32

    key = jax.random.PRNGKey(0)
    k_x, k_p = jax.random.split(key)
    x = jax.random.normal(k_x, (N, C_IN, H, W), jnp.float32)   # NCHW like PyTorch
    params = init_params(k_p, C_IN, C_OUT, decay=1, att_decay=8)

    out = en_blocks_forward(x, params)
    out = jax.block_until_ready(out)
    assert out.shape == (N, C_OUT, H, W), out.shape

    # Tight check vs a reference whose matmul operands are rounded to bf16 the
    # same way the kernel's MXU path does (f32 accumulation everywhere).
    ref_bf16 = reference_forward(x, params, match_bf16=True)
    err_b = float(jnp.max(jnp.abs(out - ref_bf16)))
    assert jnp.allclose(out, ref_bf16, rtol=2e-3, atol=2e-3), err_b

    # Loose sanity check vs the full-f32 reference (difference = bf16 rounding).
    ref_f32 = reference_forward(x, params, match_bf16=False)
    err_f = float(jnp.max(jnp.abs(out - ref_f32)))
    assert jnp.allclose(out, ref_f32, rtol=1e-1, atol=1e-1), err_f

    print("KERNEL_OK")
</pallas_src>

<mosaic_0001>
module attributes {stable_mosaic.version = 11 : i64} {
  func.func @en_blocks_fused_kernel(%arg0: i32, %arg1: memref<1x20x26x4xf32, #tpu.memory_space<vmem>>, %arg2: memref<432x1xf32, #tpu.memory_space<vmem>>, %arg3: memref<36x32xbf16, #tpu.memory_space<vmem>>, %arg4: memref<1x32xf32, #tpu.memory_space<vmem>>, %arg5: memref<1x32xf32, #tpu.memory_space<vmem>>, %arg6: memref<288x128xbf16, #tpu.memory_space<vmem>>, %arg7: memref<1x128xf32, #tpu.memory_space<vmem>>, %arg8: memref<1x128xf32, #tpu.memory_space<vmem>>, %arg9: memref<128x4xf32, #tpu.memory_space<vmem>>, %arg10: memref<1x4xf32, #tpu.memory_space<vmem>>, %arg11: memref<4x128xf32, #tpu.memory_space<vmem>>, %arg12: memref<1x128xf32, #tpu.memory_space<vmem>>, %arg13: memref<1x256x128xf32, #tpu.memory_space<vmem>>, %arg14: memref<18x24x32xf32, #tpu.memory_space<vmem>>) attributes {dimension_semantics = [#tpu.dimension_semantics<parallel>], iteration_bounds = array<i64: 2>, scalar_prefetch = 0 : i64, scratch_operands = 1 : i64, tpu.core_type = #tpu.core_type<tc>, window_params = [{transform_indices = @transform_0, window_bounds = array<i64: 1, 20, 26, 4>}, {pipeline_mode = #tpu.pipeline_mode<synchronous>, transform_indices = @transform_1, window_bounds = array<i64: 432, 1>}, {pipeline_mode = #tpu.pipeline_mode<synchronous>, transform_indices = @transform_2, window_bounds = array<i64: 36, 32>}, {pipeline_mode = #tpu.pipeline_mode<synchronous>, transform_indices = @transform_3, window_bounds = array<i64: 1, 32>}, {pipeline_mode = #tpu.pipeline_mode<synchronous>, transform_indices = @transform_4, window_bounds = array<i64: 1, 32>}, {pipeline_mode = #tpu.pipeline_mode<synchronous>, transform_indices = @transform_5, window_bounds = array<i64: 288, 128>}, {pipeline_mode = #tpu.pipeline_mode<synchronous>, transform_indices = @transform_6, window_bounds = array<i64: 1, 128>}, {pipeline_mode = #tpu.pipeline_mode<synchronous>, transform_indices = @transform_7, window_bounds = array<i64: 1, 128>}, {pipeline_mode = #tpu.pipeline_mode<synchronous>, transform_indices = @transform_8, window_bounds = array<i64: 128, 4>}, {pipeline_mode = #tpu.pipeline_mode<synchronous>, transform_indices = @transform_9, window_bounds = array<i64: 1, 4>}, {pipeline_mode = #tpu.pipeline_mode<synchronous>, transform_indices = @transform_10, window_bounds = array<i64: 4, 128>}, {pipeline_mode = #tpu.pipeline_mode<synchronous>, transform_indices = @transform_11, window_bounds = array<i64: 1, 128>}, {transform_indices = @transform_12, window_bounds = array<i64: 1, 256, 128>}]} {
    %c0 = arith.constant 0 : index
    %c0_0 = arith.constant 0 : index
    %c0_1 = arith.constant 0 : index
    %c0_2 = arith.constant 0 : index
    %0 = vector.load %arg1[%c0, %c0_0, %c0_1, %c0_2] : memref<1x20x26x4xf32, #tpu.memory_space<vmem>>, vector<1x18x24x4xf32>
    %1 = vector.shape_cast %0 : vector<1x18x24x4xf32> to vector<18x24x4xf32>
    %2 = vector.shape_cast %1 : vector<18x24x4xf32> to vector<432x4xf32>
    %c0_3 = arith.constant 0 : index
    %c0_4 = arith.constant 0 : index
    %c1 = arith.constant 1 : index
    %c0_5 = arith.constant 0 : index
    %3 = vector.load %arg1[%c0_3, %c0_4, %c1, %c0_5] : memref<1x20x26x4xf32, #tpu.memory_space<vmem>>, vector<1x18x24x4xf32>
    %4 = vector.shape_cast %3 : vector<1x18x24x4xf32> to vector<18x24x4xf32>
    %5 = vector.shape_cast %4 : vector<18x24x4xf32> to vector<432x4xf32>
    %c0_6 = arith.constant 0 : index
    %c0_7 = arith.constant 0 : index
    %c2 = arith.constant 2 : index
    %c0_8 = arith.constant 0 : index
    %6 = vector.load %arg1[%c0_6, %c0_7, %c2, %c0_8] : memref<1x20x26x4xf32, #tpu.memory_space<vmem>>, vector<1x18x24x4xf32>
    %7 = vector.shape_cast %6 : vector<1x18x24x4xf32> to vector<18x24x4xf32>
    %8 = vector.shape_cast %7 : vector<18x24x4xf32> to vector<432x4xf32>
    %c0_9 = arith.constant 0 : index
    %c1_10 = arith.constant 1 : index
    %c0_11 = arith.constant 0 : index
    %c0_12 = arith.constant 0 : index
    %9 = vector.load %arg1[%c0_9, %c1_10, %c0_11, %c0_12] : memref<1x20x26x4xf32, #tpu.memory_space<vmem>>, vector<1x18x24x4xf32>
    %10 = vector.shape_cast %9 : vector<1x18x24x4xf32> to vector<18x24x4xf32>
    %11 = vector.shape_cast %10 : vector<18x24x4xf32> to vector<432x4xf32>
    %c0_13 = arith.constant 0 : index
    %c1_14 = arith.constant 1 : index
    %c1_15 = arith.constant 1 : index
    %c0_16 = arith.constant 0 : index
    %12 = vector.load %arg1[%c0_13, %c1_14, %c1_15, %c0_16] : memref<1x20x26x4xf32, #tpu.memory_space<vmem>>, vector<1x18x24x4xf32>
    %13 = vector.shape_cast %12 : vector<1x18x24x4xf32> to vector<18x24x4xf32>
    %14 = vector.shape_cast %13 : vector<18x24x4xf32> to vector<432x4xf32>
    %c0_17 = arith.constant 0 : index
    %c1_18 = arith.constant 1 : index
    %c2_19 = arith.constant 2 : index
    %c0_20 = arith.constant 0 : index
    %15 = vector.load %arg1[%c0_17, %c1_18, %c2_19, %c0_20] : memref<1x20x26x4xf32, #tpu.memory_space<vmem>>, vector<1x18x24x4xf32>
    %16 = vector.shape_cast %15 : vector<1x18x24x4xf32> to vector<18x24x4xf32>
    %17 = vector.shape_cast %16 : vector<18x24x4xf32> to vector<432x4xf32>
    %c0_21 = arith.constant 0 : index
    %c2_22 = arith.constant 2 : index
    %c0_23 = arith.constant 0 : index
    %c0_24 = arith.constant 0 : index
    %18 = vector.load %arg1[%c0_21, %c2_22, %c0_23, %c0_24] : memref<1x20x26x4xf32, #tpu.memory_space<vmem>>, vector<1x18x24x4xf32>
    %19 = vector.shape_cast %18 : vector<1x18x24x4xf32> to vector<18x24x4xf32>
    %20 = vector.shape_cast %19 : vector<18x24x4xf32> to vector<432x4xf32>
    %c0_25 = arith.constant 0 : index
    %c2_26 = arith.constant 2 : index
    %c1_27 = arith.constant 1 : index
    %c0_28 = arith.constant 0 : index
    %21 = vector.load %arg1[%c0_25, %c2_26, %c1_27, %c0_28] : memref<1x20x26x4xf32, #tpu.memory_space<vmem>>, vector<1x18x24x4xf32>
    %22 = vector.shape_cast %21 : vector<1x18x24x4xf32> to vector<18x24x4xf32>
    %23 = vector.shape_cast %22 : vector<18x24x4xf32> to vector<432x4xf32>
    %c0_29 = arith.constant 0 : index
    %c2_30 = arith.constant 2 : index
    %c2_31 = arith.constant 2 : index
    %c0_32 = arith.constant 0 : index
    %24 = vector.load %arg1[%c0_29, %c2_30, %c2_31, %c0_32] : memref<1x20x26x4xf32, #tpu.memory_space<vmem>>, vector<1x18x24x4xf32>
    %25 = vector.shape_cast %24 : vector<1x18x24x4xf32> to vector<18x24x4xf32>
    %26 = vector.shape_cast %25 : vector<18x24x4xf32> to vector<432x4xf32>
    %27 = tpu.concatenate %2, %5, %8, %11, %14, %17, %20, %23, %26 in 1 : vector<432x4xf32>, vector<432x4xf32>, vector<432x4xf32>, vector<432x4xf32>, vector<432x4xf32>, vector<432x4xf32>, vector<432x4xf32>, vector<432x4xf32>, vector<432x4xf32> -> vector<432x36xf32>
    %28 = arith.truncf %27 : vector<432x36xf32> to vector<432x36xbf16>
    %c0_33 = arith.constant 0 : index
    %c0_34 = arith.constant 0 : index
    %29 = vector.load %arg3[%c0_33, %c0_34] : memref<36x32xbf16, #tpu.memory_space<vmem>>, vector<36x32xbf16>
    %cst = arith.constant dense<0.000000e+00> : vector<432x32xf32>
    %30 = tpu.matmul %28, %29, %cst {dimension_numbers = #tpu.dot_dimension_numbers<[1], [0], [0], [1], [0, 0, 1, 1], [], []>} : vector<432x36xbf16>, vector<36x32xbf16>, vector<432x32xf32> -> vector<432x32xf32>
    %c0_35 = arith.constant 0 : index
    %c0_36 = arith.constant 0 : index
    %31 = vector.load %arg4[%c0_35, %c0_36] : memref<1x32xf32, #tpu.memory_space<vmem>>, vector<1x32xf32>
    %32 = vector.broadcast %31 : vector<1x32xf32> to vector<432x32xf32>
    %33 = arith.mulf %30, %32 : vector<432x32xf32>
    %c0_37 = arith.constant 0 : index
    %c0_38 = arith.constant 0 : index
    %34 = vector.load %arg5[%c0_37, %c0_38] : memref<1x32xf32, #tpu.memory_space<vmem>>, vector<1x32xf32>
    %35 = vector.broadcast %34 : vector<1x32xf32> to vector<432x32xf32>
    %36 = arith.addf %33, %35 : vector<432x32xf32>
    %cst_39 = arith.constant 0.000000e+00 : f32
    %37 = vector.broadcast %cst_39 : f32 to vector<432x32xf32>
    %38 = arith.maximumf %36, %37 : vector<432x32xf32>
    %c0_40 = arith.constant 0 : index
    %c0_41 = arith.constant 0 : index
    %39 = vector.load %arg2[%c0_40, %c0_41] : memref<432x1xf32, #tpu.memory_space<vmem>>, vector<432x1xf32>
    %40 = vector.broadcast %39 : vector<432x1xf32> to vector<432x32xf32>
    %41 = arith.mulf %38, %40 : vector<432x32xf32>
    %42 = vector.shape_cast %41 : vector<432x32xf32> to vector<18x24x32xf32>
    %c0_42 = arith.constant 0 : index
    %c0_43 = arith.constant 0 : index
    %c0_44 = arith.constant 0 : index
    %43 = vector.load %arg14[%c0_42, %c0_43, %c0_44] : memref<18x24x32xf32, #tpu.memory_space<vmem>>, vector<18x24x32xf32>
    tpu.vector_store %arg14[%c0_42, %c0_43, %c0_44], %42 {strides = array<i32>} : memref<18x24x32xf32, #tpu.memory_space<vmem>>, vector<18x24x32xf32>,
    %c0_45 = arith.constant 0 : index
    %c0_46 = arith.constant 0 : index
    %c0_47 = arith.constant 0 : index
    %44 = vector.load %arg14[%c0_45, %c0_46, %c0_47] : memref<18x24x32xf32, #tpu.memory_space<vmem>>, vector<16x16x32xf32>
    %45 = vector.shape_cast %44 : vector<16x16x32xf32> to vector<256x32xf32>
    %c0_48 = arith.constant 0 : index
    %c1_49 = arith.constant 1 : index
    %c0_50 = arith.constant 0 : index
    %46 = vector.load %arg14[%c0_48, %c1_49, %c0_50] : memref<18x24x32xf32, #tpu.memory_space<vmem>>, vector<16x16x32xf32>
    %47 = vector.shape_cast %46 : vector<16x16x32xf32> to vector<256x32xf32>
    %c0_51 = arith.constant 0 : index
    %c2_52 = arith.constant 2 : index
    %c0_53 = arith.constant 0 : index
    %48 = vector.load %arg14[%c0_51, %c2_52, %c0_53] : memref<18x24x32xf32, #tpu.memory_space<vmem>>, vector<16x16x32xf32>
    %49 = vector.shape_cast %48 : vector<16x16x32xf32> to vector<256x32xf32>
    %c1_54 = arith.constant 1 : index
    %c0_55 = arith.constant 0 : index
    %c0_56 = arith.constant 0 : index
    %50 = vector.load %arg14[%c1_54, %c0_55, %c0_56] : memref<18x24x32xf32, #tpu.memory_space<vmem>>, vector<16x16x32xf32>
    %51 = vector.shape_cast %50 : vector<16x16x32xf32> to vector<256x32xf32>
    %c1_57 = arith.constant 1 : index
    %c1_58 = arith.constant 1 : index
    %c0_59 = arith.constant 0 : index
    %52 = vector.load %arg14[%c1_57, %c1_58, %c0_59] : memref<18x24x32xf32, #tpu.memory_space<vmem>>, vector<16x16x32xf32>
    %53 = vector.shape_cast %52 : vector<16x16x32xf32> to vector<256x32xf32>
    %c1_60 = arith.constant 1 : index
    %c2_61 = arith.constant 2 : index
    %c0_62 = arith.constant 0 : index
    %54 = vector.load %arg14[%c1_60, %c2_61, %c0_62] : memref<18x24x32xf32, #tpu.memory_space<vmem>>, vector<16x16x32xf32>
    %55 = vector.shape_cast %54 : vector<16x16x32xf32> to vector<256x32xf32>
    %c2_63 = arith.constant 2 : index
    %c0_64 = arith.constant 0 : index
    %c0_65 = arith.constant 0 : index
    %56 = vector.load %arg14[%c2_63, %c0_64, %c0_65] : memref<18x24x32xf32, #tpu.memory_space<vmem>>, vector<16x16x32xf32>
    %57 = vector.shape_cast %56 : vector<16x16x32xf32> to vector<256x32xf32>
    %c2_66 = arith.constant 2 : index
    %c1_67 = arith.constant 1 : index
    %c0_68 = arith.constant 0 : index
    %58 = vector.load %arg14[%c2_66, %c1_67, %c0_68] : memref<18x24x32xf32, #tpu.memory_space<vmem>>, vector<16x16x32xf32>
    %59 = vector.shape_cast %58 : vector<16x16x32xf32> to vector<256x32xf32>
    %c2_69 = arith.constant 2 : index
    %c2_70 = arith.constant 2 : index
    %c0_71 = arith.constant 0 : index
    %60 = vector.load %arg14[%c2_69, %c2_70, %c0_71] : memref<18x24x32xf32, #tpu.memory_space<vmem>>, vector<16x16x32xf32>
    %61 = vector.shape_cast %60 : vector<16x16x32xf32> to vector<256x32xf32>
    %62 = tpu.concatenate %45, %47, %49, %51, %53, %55, %57, %59, %61 in 1 : vector<256x32xf32>, vector<256x32xf32>, vector<256x32xf32>, vector<256x32xf32>, vector<256x32xf32>, vector<256x32xf32>, vector<256x32xf32>, vector<256x32xf32>, vector<256x32xf32> -> vector<256x288xf32>
    %63 = arith.truncf %62 : vector<256x288xf32> to vector<256x288xbf16>
    %c0_72 = arith.constant 0 : index
    %c0_73 = arith.constant 0 : index
    %64 = vector.load %arg6[%c0_72, %c0_73] : memref<288x128xbf16, #tpu.memory_space<vmem>>, vector<288x128xbf16>
    %cst_74 = arith.constant dense<0.000000e+00> : vector<256x128xf32>
    %65 = tpu.matmul %63, %64, %cst_74 {dimension_numbers = #tpu.dot_dimension_numbers<[1], [0], [0], [1], [0, 0, 1, 1], [], []>} : vector<256x288xbf16>, vector<288x128xbf16>, vector<256x128xf32> -> vector<256x128xf32>
    %c0_75 = arith.constant 0 : index
    %c0_76 = arith.constant 0 : index
    %66 = vector.load %arg7[%c0_75, %c0_76] : memref<1x128xf32, #tpu.memory_space<vmem>>, vector<1x128xf32>
    %67 = vector.broadcast %66 : vector<1x128xf32> to vector<256x128xf32>
    %68 = arith.mulf %65, %67 : vector<256x128xf32>
    %c0_77 = arith.constant 0 : index
    %c0_78 = arith.constant 0 : index
    %69 = vector.load %arg8[%c0_77, %c0_78] : memref<1x128xf32, #tpu.memory_space<vmem>>, vector<1x128xf32>
    %70 = vector.broadcast %69 : vector<1x128xf32> to vector<256x128xf32>
    %71 = arith.addf %68, %70 : vector<256x128xf32>
    %cst_79 = arith.constant 0.000000e+00 : f32
    %72 = vector.broadcast %cst_79 : f32 to vector<256x128xf32>
    %73 = arith.maximumf %71, %72 : vector<256x128xf32>
    %cst_80 = arith.constant dense<0.000000e+00> : vector<128xf32>
    %74 = vector.multi_reduction <add>, %73, %cst_80 [0] : vector<256x128xf32> to vector<128xf32>
    %75 = vector.shape_cast %74 : vector<128xf32> to vector<1x128xf32>
    %cst_81 = arith.constant 3.906250e-03 : f32
    %76 = vector.broadcast %cst_81 : f32 to vector<1x128xf32>
    %77 = arith.mulf %75, %76 : vector<1x128xf32>
    %c0_82 = arith.constant 0 : index
    %c0_83 = arith.constant 0 : index
    %78 = vector.load %arg9[%c0_82, %c0_83] : memref<128x4xf32, #tpu.memory_space<vmem>>, vector<128x4xf32>
    %cst_84 = arith.constant dense<0.000000e+00> : vector<1x4xf32>
    %79 = tpu.matmul %77, %78, %cst_84 {dimension_numbers = #tpu.dot_dimension_numbers<[1], [0], [0], [1], [0, 0, 1, 1], [], []>} : vector<1x128xf32>, vector<128x4xf32>, vector<1x4xf32> -> vector<1x4xf32>
    %c0_85 = arith.constant 0 : index
    %c0_86 = arith.constant 0 : index
    %80 = vector.load %arg10[%c0_85, %c0_86] : memref<1x4xf32, #tpu.memory_space<vmem>>, vector<1x4xf32>
    %81 = arith.addf %79, %80 : vector<1x4xf32>
    %cst_87 = arith.constant 0.000000e+00 : f32
    %82 = vector.broadcast %cst_87 : f32 to vector<1x4xf32>
    %83 = arith.maximumf %81, %82 : vector<1x4xf32>
    %c0_88 = arith.constant 0 : index
    %c0_89 = arith.constant 0 : index
    %84 = vector.load %arg11[%c0_88, %c0_89] : memref<4x128xf32, #tpu.memory_space<vmem>>, vector<4x128xf32>
    %cst_90 = arith.constant dense<0.000000e+00> : vector<1x128xf32>
    %85 = tpu.matmul %83, %84, %cst_90 {dimension_numbers = #tpu.dot_dimension_numbers<[1], [0], [0], [1], [0, 0, 1, 1], [], []>} : vector<1x4xf32>, vector<4x128xf32>, vector<1x128xf32> -> vector<1x128xf32>
    %c0_91 = arith.constant 0 : index
    %c0_92 = arith.constant 0 : index
    %86 = vector.load %arg12[%c0_91, %c0_92] : memref<1x128xf32, #tpu.memory_space<vmem>>, vector<1x128xf32>
    %87 = arith.addf %85, %86 : vector<1x128xf32>
    %cst_93 = arith.constant 0.000000e+00 : f32
    %88 = vector.broadcast %cst_93 : f32 to vector<1x128xf32>
    %89 = arith.subf %88, %87 : vector<1x128xf32>
    %90 = math.exp %89 : vector<1x128xf32>
    %cst_94 = arith.constant 1.000000e+00 : f32
    %91 = vector.broadcast %cst_94 : f32 to vector<1x128xf32>
    %92 = arith.addf %91, %90 : vector<1x128xf32>
    %cst_95 = arith.constant 1.000000e+00 : f32
    %93 = vector.broadcast %cst_95 : f32 to vector<1x128xf32>
    %94 = arith.divf %93, %92 : vector<1x128xf32>
    %95 = vector.broadcast %94 : vector<1x128xf32> to vector<256x128xf32>
    %96 = arith.mulf %73, %95 : vector<256x128xf32>
    %c0_96 = arith.constant 0 : index
    %c0_97 = arith.constant 0 : index
    %c0_98 = arith.constant 0 : index
    %97 = vector.load %arg13[%c0_96, %c0_97, %c0_98] : memref<1x256x128xf32, #tpu.memory_space<vmem>>, vector<1x256x128xf32>
    %98 = vector.shape_cast %97 : vector<1x256x128xf32> to vector<256x128xf32>
    %99 = vector.shape_cast %96 : vector<256x128xf32> to vector<1x256x128xf32>
    tpu.vector_store %arg13[%c0_96, %c0_97, %c0_98], %99 {strides = array<i32>} : memref<1x256x128xf32, #tpu.memory_space<vmem>>, vector<1x256x128xf32>,
    return
  }
  func.func @transform_0(%arg0: i32) -> (i32, i32, i32, i32) {
    %c0_i32 = arith.constant 0 : i32
    %c0_i32_0 = arith.constant 0 : i32
    %c0_i32_1 = arith.constant 0 : i32
    %c0_i32_2 = arith.constant 0 : i32
    return %arg0, %c0_i32, %c0_i32_0, %c0_i32_1 : i32, i32, i32, i32
  }
  func.func @transform_1(%arg0: i32) -> (i32, i32) {
    %c0_i32 = arith.constant 0 : i32
    %c0_i32_0 = arith.constant 0 : i32
    %c0_i32_1 = arith.constant 0 : i32
    return %c0_i32, %c0_i32_0 : i32, i32
  }
  func.func @transform_2(%arg0: i32) -> (i32, i32) {
    %c0_i32 = arith.constant 0 : i32
    %c0_i32_0 = arith.constant 0 : i32
    %c0_i32_1 = arith.constant 0 : i32
    return %c0_i32, %c0_i32_0 : i32, i32
  }
  func.func @transform_3(%arg0: i32) -> (i32, i32) {
    %c0_i32 = arith.constant 0 : i32
    %c0_i32_0 = arith.constant 0 : i32
    %c0_i32_1 = arith.constant 0 : i32
    return %c0_i32, %c0_i32_0 : i32, i32
  }
  func.func @transform_4(%arg0: i32) -> (i32, i32) {
    %c0_i32 = arith.constant 0 : i32
    %c0_i32_0 = arith.constant 0 : i32
    %c0_i32_1 = arith.constant 0 : i32
    return %c0_i32, %c0_i32_0 : i32, i32
  }
  func.func @transform_5(%arg0: i32) -> (i32, i32) {
    %c0_i32 = arith.constant 0 : i32
    %c0_i32_0 = arith.constant 0 : i32
    %c0_i32_1 = arith.constant 0 : i32
    return %c0_i32, %c0_i32_0 : i32, i32
  }
  func.func @transform_6(%arg0: i32) -> (i32, i32) {
    %c0_i32 = arith.constant 0 : i32
    %c0_i32_0 = arith.constant 0 : i32
    %c0_i32_1 = arith.constant 0 : i32
    return %c0_i32, %c0_i32_0 : i32, i32
  }
  func.func @transform_7(%arg0: i32) -> (i32, i32) {
    %c0_i32 = arith.constant 0 : i32
    %c0_i32_0 = arith.constant 0 : i32
    %c0_i32_1 = arith.constant 0 : i32
    return %c0_i32, %c0_i32_0 : i32, i32
  }
  func.func @transform_8(%arg0: i32) -> (i32, i32) {
    %c0_i32 = arith.constant 0 : i32
    %c0_i32_0 = arith.constant 0 : i32
    %c0_i32_1 = arith.constant 0 : i32
    return %c0_i32, %c0_i32_0 : i32, i32
  }
  func.func @transform_9(%arg0: i32) -> (i32, i32) {
    %c0_i32 = arith.constant 0 : i32
    %c0_i32_0 = arith.constant 0 : i32
    %c0_i32_1 = arith.constant 0 : i32
    return %c0_i32, %c0_i32_0 : i32, i32
  }
  func.func @transform_10(%arg0: i32) -> (i32, i32) {
    %c0_i32 = arith.constant 0 : i32
    %c0_i32_0 = arith.constant 0 : i32
    %c0_i32_1 = arith.constant 0 : i32
    return %c0_i32, %c0_i32_0 : i32, i32
  }
  func.func @transform_11(%arg0: i32) -> (i32, i32) {
    %c0_i32 = arith.constant 0 : i32
    %c0_i32_0 = arith.constant 0 : i32
    %c0_i32_1 = arith.constant 0 : i32
    return %c0_i32, %c0_i32_0 : i32, i32
  }
  func.func @transform_12(%arg0: i32) -> (i32, i32, i32) {
    %c0_i32 = arith.constant 0 : i32
    %c0_i32_0 = arith.constant 0 : i32
    %c0_i32_1 = arith.constant 0 : i32
    return %arg0, %c0_i32, %c0_i32_0 : i32, i32, i32
  }
}

</mosaic_0001>

<llo_original>
// kernel: en_blocks_forward.1
$region0: #{en_blocks_forward.1}
  #allocation0 [shape = 'u32[]', space=smem, size = 0x4, offset = 0x4, fixed_abs, tag = 'smem constant byte address 0x4 - core index']
  #allocation1 [shape = 'u32[144,128]{1,0:T(1,128)}', space=vmem, size = 0x12000, scoped, tag = 'internal scratch']
  #allocation2 [shape = 'f32[18,24,32]{2,1,0:T(8,128)}', space=vmem, size = 0x36000, scoped, tag = 'scratch operand']
  %s0 = inlined_call_operand.vmem [shape: f32[2,20,26,4], index: 0, kind: input, shape index: {}]
  %s1 = inlined_call_operand.vmem [shape: f32[432,1], index: 1, kind: input, shape index: {}]
  %s2 = inlined_call_operand.vmem [shape: bf16[36,32], index: 2, kind: input, shape index: {}]
  %s3 = inlined_call_operand.vmem [shape: f32[1,32], index: 3, kind: input, shape index: {}]
  %s4 = inlined_call_operand.vmem [shape: f32[1,32], index: 4, kind: input, shape index: {}]
  %s5 = inlined_call_operand.vmem [shape: bf16[288,128], index: 5, kind: input, shape index: {}]
  %s6 = inlined_call_operand.vmem [shape: f32[1,128], index: 6, kind: input, shape index: {}]
  %s7 = inlined_call_operand.vmem [shape: f32[1,128], index: 7, kind: input, shape index: {}]
  %s8 = inlined_call_operand.vmem [shape: f32[128,4], index: 8, kind: input, shape index: {}]
  %s9 = inlined_call_operand.vmem [shape: f32[1,4], index: 9, kind: input, shape index: {}]
  %s10 = inlined_call_operand.vmem [shape: f32[4,128], index: 10, kind: input, shape index: {}]
  %s11 = inlined_call_operand.vmem [shape: f32[1,128], index: 11, kind: input, shape index: {}]
  %s12 = inlined_call_operand.hbm [shape: f32[2,256,128], index: 12, kind: output, shape index: {}]
  %s13 = sld [smem:[#allocation0]]
  $region81: #{en_blocks_forward.1} parent=0
    _
  %s15 = ssub.s32 1, %s13
  %s16 = scalar_select 0, %s15, %s13
  $region1: #{en_blocks_forward.1} parent=0
    #allocation3 [shape = 'u8[262144]{0}', space=vmem, size = 0x40000, scoped, tag = 'output window, operand 0']
    #allocation4 [shape = 's32[2]{0}', space=sflag, size = 0x8, scoped, tag = 'scoped memory for en_blocks_forward.1']
    %17 = vsyncpa [#allocation4], 0
    %s18 = scalar_lea.sflag [#allocation4], 1
    %19 = vsyncpa %s18, 0
    loop: start=0, step=1, limit=4
    $region2: #{en_blocks_forward.1} parent=1 // loop_pre_header
      _
    $region3: #{en_blocks_forward.1} parent=1 // loop_header
      %s21 = sphi 0, %s25
      %p22 = scmp.ge.s32.totalorder %s21, 4
      %s31 = sphi 0, %s33
      %s34 = sphi 0, %s31
      %s35 = sphi 0, %s34
      %s51 = sphi 0, %s35
      %s55 = sphi 0, %s55
      %s57 = sphi 0, %s55
      %s58 = sphi 0, %s57
      %s72 = sphi 0, %s58
      %s76 = sphi 0, %s76
      %s78 = sphi 0, %s76
      %s79 = sphi 0, %s78
      %s93 = sphi 0, %s79
      %s97 = sphi 0, %s97
      %s99 = sphi 0, %s97
      %s100 = sphi 0, %s99
      %s114 = sphi 0, %s100
      %s118 = sphi 0, %s118
      %s120 = sphi 0, %s118
      %s121 = sphi 0, %s120
      %s135 = sphi 0, %s121
      %s139 = sphi 0, %s139
      %s141 = sphi 0, %s139
      %s142 = sphi 0, %s141
      %s156 = sphi 0, %s142
      %s160 = sphi 0, %s160
      %s162 = sphi 0, %s160
      %s163 = sphi 0, %s162
      %s177 = sphi 0, %s163
      %s181 = sphi 0, %s181
      %s183 = sphi 0, %s181
      %s184 = sphi 0, %s183
      %s198 = sphi 0, %s184
      %s202 = sphi 0, %s202
      %s204 = sphi 0, %s202
      %s205 = sphi 0, %s204
      %s219 = sphi 0, %s205
      %s223 = sphi 0, %s223
      %s225 = sphi 0, %s223
      %s226 = sphi 0, %s225
      %s240 = sphi 0, %s226
      %s244 = sphi 0, %s244
      %s246 = sphi 0, %s244
      %s247 = sphi 0, %s246
      %s261 = sphi 0, %s247
      %s265 = sphi 0, %s265
      %s267 = sphi 0, %s265
      %s268 = sphi 0, %s267
      %s282 = sphi 0, %s268
      %s288 = sphi 0, %s290
      %s291 = sphi 0, %s288
      %s292 = sphi 0, %s291
      %s308 = sphi 0, %s292
    $region4: #{en_blocks_forward.1} parent=1 // loop_header_branch
      %24 = sbr.rel (%p22) target = $region8
    $region5: #{en_blocks_forward.1} parent=1 // loop_body
      %s26 = ssub.s32 %s21, 1
      %s27 = ssub.s32 %s21, 2
      %s28 = sadd.s32 %s21, 1
      %s29 = ssub.s32 %s21, %s28
      %p30 = scmp.eq.s32.totalorder %s29, 0
      %s32 = sadd.s32 %s31, 1
      %s33 = scalar_select %p30, %s31, %s32
      %p36 = pneg %p30
      %p37 = scmp.eq.s32.totalorder %s21, 1
      %p38 = por %p36, %p37
      %p39 = scmp.ne.s32.totalorder %s31, %s34
      %p40 = scmp.eq.s32.totalorder %s21, 0
      %p41 = por %p39, %p40
      %p42 = scmp.ne.s32.totalorder %s31, %s34
      %p43 = scmp.eq.s32.totalorder %s26, 1
      %p44 = por %p42, %p43
      %p45 = scmp.ne.s32.totalorder %s34, %s35
      %p46 = scmp.eq.s32.totalorder %s26, 0
      %p47 = por %p45, %p46
      %p48 = scmp.ne.s32.totalorder %s34, %s35
      %p49 = scmp.eq.s32.totalorder %s27, 1
      %p50 = por %p48, %p49
      %p52 = scmp.ne.s32.totalorder %s35, %s51
      %p53 = scmp.eq.s32.totalorder %s27, 0
      %p54 = por %p52, %p53
      %s56 = sadd.s32 %s55, 1
      %p59 = scmp.eq.s32.totalorder %s21, 1
      %p60 = scmp.ne.s32.totalorder %s55, %s57
      %p61 = scmp.eq.s32.totalorder %s21, 0
      %p62 = por %p60, %p61
      %p63 = scmp.ne.s32.totalorder %s55, %s57
      %p64 = scmp.eq.s32.totalorder %s26, 1
      %p65 = por %p63, %p64
      %p66 = scmp.ne.s32.totalorder %s57, %s58
      %p67 = scmp.eq.s32.totalorder %s26, 0
      %p68 = por %p66, %p67
      %p69 = scmp.ne.s32.totalorder %s57, %s58
      %p70 = scmp.eq.s32.totalorder %s27, 1
      %p71 = por %p69, %p70
      %p73 = scmp.ne.s32.totalorder %s58, %s72
      %p74 = scmp.eq.s32.totalorder %s27, 0
      %p75 = por %p73, %p74
      %s77 = sadd.s32 %s76, 1
      %p80 = scmp.eq.s32.totalorder %s21, 1
      %p81 = scmp.ne.s32.totalorder %s76, %s78
      %p82 = scmp.eq.s32.totalorder %s21, 0
      %p83 = por %p81, %p82
      %p84 = scmp.ne.s32.totalorder %s76, %s78
      %p85 = scmp.eq.s32.totalorder %s26, 1
      %p86 = por %p84, %p85
      %p87 = scmp.ne.s32.totalorder %s78, %s79
      %p88 = scmp.eq.s32.totalorder %s26, 0
      %p89 = por %p87, %p88
      %p90 = scmp.ne.s32.totalorder %s78, %s79
      %p91 = scmp.eq.s32.totalorder %s27, 1
      %p92 = por %p90, %p91
      %p94 = scmp.ne.s32.totalorder %s79, %s93
      %p95 = scmp.eq.s32.totalorder %s27, 0
      %p96 = por %p94, %p95
      %s98 = sadd.s32 %s97, 1
      %p101 = scmp.eq.s32.totalorder %s21, 1
      %p102 = scmp.ne.s32.totalorder %s97, %s99
      %p103 = scmp.eq.s32.totalorder %s21, 0
      %p104 = por %p102, %p103
      %p105 = scmp.ne.s32.totalorder %s97, %s99
      %p106 = scmp.eq.s32.totalorder %s26, 1
      %p107 = por %p105, %p106
      %p108 = scmp.ne.s32.totalorder %s99, %s100
      %p109 = scmp.eq.s32.totalorder %s26, 0
      %p110 = por %p108, %p109
      %p111 = scmp.ne.s32.totalorder %s99, %s100
      %p112 = scmp.eq.s32.totalorder %s27, 1
      %p113 = por %p111, %p112
      %p115 = scmp.ne.s32.totalorder %s100, %s114
      %p116 = scmp.eq.s32.totalorder %s27, 0
      %p117 = por %p115, %p116
      %s119 = sadd.s32 %s118, 1
      %p122 = scmp.eq.s32.totalorder %s21, 1
      %p123 = scmp.ne.s32.totalorder %s118, %s120
      %p124 = scmp.eq.s32.totalorder %s21, 0
      %p125 = por %p123, %p124
      %p126 = scmp.ne.s32.totalorder %s118, %s120
      %p127 = scmp.eq.s32.totalorder %s26, 1
      %p128 = por %p126, %p127
      %p129 = scmp.ne.s32.totalorder %s120, %s121
      %p130 = scmp.eq.s32.totalorder %s26, 0
      %p131 = por %p129, %p130
      %p132 = scmp.ne.s32.totalorder %s120, %s121
      %p133 = scmp.eq.s32.totalorder %s27, 1
      %p134 = por %p132, %p133
      %p136 = scmp.ne.s32.totalorder %s121, %s135
      %p137 = scmp.eq.s32.totalorder %s27, 0
      %p138 = por %p136, %p137
      %s140 = sadd.s32 %s139, 1
      %p143 = scmp.eq.s32.totalorder %s21, 1
      %p144 = scmp.ne.s32.totalorder %s139, %s141
      %p145 = scmp.eq.s32.totalorder %s21, 0
      %p146 = por %p144, %p145
      %p147 = scmp.ne.s32.totalorder %s139, %s141
      %p148 = scmp.eq.s32.totalorder %s26, 1
      %p149 = por %p147, %p148
      %p150 = scmp.ne.s32.totalorder %s141, %s142
      %p151 = scmp.eq.s32.totalorder %s26, 0
      %p152 = por %p150, %p151
      %p153 = scmp.ne.s32.totalorder %s141, %s142
      %p154 = scmp.eq.s32.totalorder %s27, 1
      %p155 = por %p153, %p154
      %p157 = scmp.ne.s32.totalorder %s142, %s156
      %p158 = scmp.eq.s32.totalorder %s27, 0
      %p159 = por %p157, %p158
      %s161 = sadd.s32 %s160, 1
      %p164 = scmp.eq.s32.totalorder %s21, 1
      %p165 = scmp.ne.s32.totalorder %s160, %s162
      %p166 = scmp.eq.s32.totalorder %s21, 0
      %p167 = por %p165, %p166
      %p168 = scmp.ne.s32.totalorder %s160, %s162
      %p169 = scmp.eq.s32.totalorder %s26, 1
      %p170 = por %p168, %p169
      %p171 = scmp.ne.s32.totalorder %s162, %s163
      %p172 = scmp.eq.s32.totalorder %s26, 0
      %p173 = por %p171, %p172
      %p174 = scmp.ne.s32.totalorder %s162, %s163
      %p175 = scmp.eq.s32.totalorder %s27, 1
      %p176 = por %p174, %p175
      %p178 = scmp.ne.s32.totalorder %s163, %s177
      %p179 = scmp.eq.s32.totalorder %s27, 0
      %p180 = por %p178, %p179
      %s182 = sadd.s32 %s181, 1
      %p185 = scmp.eq.s32.totalorder %s21, 1
      %p186 = scmp.ne.s32.totalorder %s181, %s183
      %p187 = scmp.eq.s32.totalorder %s21, 0
      %p188 = por %p186, %p187
      %p189 = scmp.ne.s32.totalorder %s181, %s183
      %p190 = scmp.eq.s32.totalorder %s26, 1
      %p191 = por %p189, %p190
      %p192 = scmp.ne.s32.totalorder %s183, %s184
      %p193 = scmp.eq.s32.totalorder %s26, 0
      %p194 = por %p192, %p193
      %p195 = scmp.ne.s32.totalorder %s183, %s184
      %p196 = scmp.eq.s32.totalorder %s27, 1
      %p197 = por %p195, %p196
      %p199 = scmp.ne.s32.totalorder %s184, %s198
      %p200 = scmp.eq.s32.totalorder %s27, 0
      %p201 = por %p199, %p200
      %s203 = sadd.s32 %s202, 1
      %p206 = scmp.eq.s32.totalorder %s21, 1
      %p207 = scmp.ne.s32.totalorder %s202, %s204
      %p208 = scmp.eq.s32.totalorder %s21, 0
      %p209 = por %p207, %p208
      %p210 = scmp.ne.s32.totalorder %s202, %s204
      %p211 = scmp.eq.s32.totalorder %s26, 1
      %p212 = por %p210, %p211
      %p213 = scmp.ne.s32.totalorder %s204, %s205
      %p214 = scmp.eq.s32.totalorder %s26, 0
      %p215 = por %p213, %p214
      %p216 = scmp.ne.s32.totalorder %s204, %s205
      %p217 = scmp.eq.s32.totalorder %s27, 1
      %p218 = por %p216, %p217
      %p220 = scmp.ne.s32.totalorder %s205, %s219
      %p221 = scmp.eq.s32.totalorder %s27, 0
      %p222 = por %p220, %p221
      %s224 = sadd.s32 %s223, 1
      %p227 = scmp.eq.s32.totalorder %s21, 1
      %p228 = scmp.ne.s32.totalorder %s223, %s225
      %p229 = scmp.eq.s32.totalorder %s21, 0
      %p230 = por %p228, %p229
      %p231 = scmp.ne.s32.totalorder %s223, %s225
      %p232 = scmp.eq.s32.totalorder %s26, 1
      %p233 = por %p231, %p232
      %p234 = scmp.ne.s32.totalorder %s225, %s226
      %p235 = scmp.eq.s32.totalorder %s26, 0
      %p236 = por %p234, %p235
      %p237 = scmp.ne.s32.totalorder %s225, %s226
      %p238 = scmp.eq.s32.totalorder %s27, 1
      %p239 = por %p237, %p238
      %p241 = scmp.ne.s32.totalorder %s226, %s240
      %p242 = scmp.eq.s32.totalorder %s27, 0
      %p243 = por %p241, %p242
      %s245 = sadd.s32 %s244, 1
      %p248 = scmp.eq.s32.totalorder %s21, 1
      %p249 = scmp.ne.s32.totalorder %s244, %s246
      %p250 = scmp.eq.s32.totalorder %s21, 0
      %p251 = por %p249, %p250
      %p252 = scmp.ne.s32.totalorder %s244, %s246
      %p253 = scmp.eq.s32.totalorder %s26, 1
      %p254 = por %p252, %p253
      %p255 = scmp.ne.s32.totalorder %s246, %s247
      %p256 = scmp.eq.s32.totalorder %s26, 0
      %p257 = por %p255, %p256
      %p258 = scmp.ne.s32.totalorder %s246, %s247
      %p259 = scmp.eq.s32.totalorder %s27, 1
      %p260 = por %p258, %p259
      %p262 = scmp.ne.s32.totalorder %s247, %s261
      %p263 = scmp.eq.s32.totalorder %s27, 0
      %p264 = por %p262, %p263
      %s266 = sadd.s32 %s265, 1
      %p269 = scmp.eq.s32.totalorder %s21, 1
      %p270 = scmp.ne.s32.totalorder %s265, %s267
      %p271 = scmp.eq.s32.totalorder %s21, 0
      %p272 = por %p270, %p271
      %p273 = scmp.ne.s32.totalorder %s265, %s267
      %p274 = scmp.eq.s32.totalorder %s26, 1
      %p275 = por %p273, %p274
      %p276 = scmp.ne.s32.totalorder %s267, %s268
      %p277 = scmp.eq.s32.totalorder %s26, 0
      %p278 = por %p276, %p277
      %p279 = scmp.ne.s32.totalorder %s267, %s268
      %p280 = scmp.eq.s32.totalorder %s27, 1
      %p281 = por %p279, %p280
      %p283 = scmp.ne.s32.totalorder %s268, %s282
      %p284 = scmp.eq.s32.totalorder %s27, 0
      %p285 = por %p283, %p284
      %s286 = ssub.s32 %s21, %s28
      %p287 = scmp.eq.s32.totalorder %s286, 0
      %s289 = sadd.s32 %s288, 1
      %s290 = scalar_select %p287, %s288, %s289
      %p293 = pneg %p287
      %p294 = scmp.eq.s32.totalorder %s21, 1
      %p295 = por %p293, %p294
      %p296 = scmp.ne.s32.totalorder %s288, %s291
      %p297 = scmp.eq.s32.totalorder %s21, 0
      %p298 = por %p296, %p297
      %p299 = scmp.ne.s32.totalorder %s288, %s291
      %p300 = scmp.eq.s32.totalorder %s26, 1
      %p301 = por %p299, %p300
      %p302 = scmp.ne.s32.totalorder %s291, %s292
      %p303 = scmp.eq.s32.totalorder %s26, 0
      %p304 = por %p302, %p303
      %p305 = scmp.ne.s32.totalorder %s291, %s292
      %p306 = scmp.eq.s32.totalorder %s27, 1
      %p307 = por %p305, %p306
      %p309 = scmp.ne.s32.totalorder %s292, %s308
      %p310 = scmp.eq.s32.totalorder %s27, 0
      %p311 = por %p309, %p310
      %p312 = scmp.le.s32.totalorder 1, %s21
      %p313 = scmp.lt.s32.totalorder %s21, 3
      %p314 = pnand %p312, %p313
      %p315 = pneg %p314
      // Predicated region
      $region9: #{en_blocks_forward.1} parent=5 // pred_check
        _
      $region10: #{en_blocks_forward.1} parent=5 // pred_check_branch
        %317 = sbr.rel (%p314) target = $region12
      $region11: #{en_blocks_forward.1} parent=5 // pred_region
        %s318 = ssub.s32 %s21, 1
        // Predicated region
        $region13: #{en_blocks_forward.1} parent=11 // pred_check
          %p319 = pneg %p68
        $region14: #{en_blocks_forward.1} parent=11 // pred_check_branch
          %321 = sbr.rel (%p319) target = $region16
        $region15: #{en_blocks_forward.1} parent=11 // pred_region
          _
        $region16: #{en_blocks_forward.1} parent=11 // pred_fallthru
          _
        // Predicated region
        $region17: #{en_blocks_forward.1} parent=11 // pred_check
          %p322 = pneg %p89
        $region18: #{en_blocks_forward.1} parent=11 // pred_check_branch
          %324 = sbr.rel (%p322) target = $region20
        $region19: #{en_blocks_forward.1} parent=11 // pred_region
          _
        $region20: #{en_blocks_forward.1} parent=11 // pred_fallthru
          _
        // Predicated region
        $region21: #{en_blocks_forward.1} parent=11 // pred_check
          %p325 = pneg %p110
        $region22: #{en_blocks_forward.1} parent=11 // pred_check_branch
          %327 = sbr.rel (%p325) target = $region24
        $region23: #{en_blocks_forward.1} parent=11 // pred_region
          _
        $region24: #{en_blocks_forward.1} parent=11 // pred_fallthru
          _
        // Predicated region
        $region25: #{en_blocks_forward.1} parent=11 // pred_check
          %p328 = pneg %p131
        $region26: #{en_blocks_forward.1} parent=11 // pred_check_branch
          %330 = sbr.rel (%p328) target = $region28
        $region27: #{en_blocks_forward.1} parent=11 // pred_region
          _
        $region28: #{en_blocks_forward.1} parent=11 // pred_fallthru
          _
        // Predicated region
        $region29: #{en_blocks_forward.1} parent=11 // pred_check
          %p331 = pneg %p152
        $region30: #{en_blocks_forward.1} parent=11 // pred_check_branch
          %333 = sbr.rel (%p331) target = $region32
        $region31: #{en_blocks_forward.1} parent=11 // pred_region
          _
        $region32: #{en_blocks_forward.1} parent=11 // pred_fallthru
          _
        // Predicated region
        $region33: #{en_blocks_forward.1} parent=11 // pred_check
          %p334 = pneg %p173
        $region34: #{en_blocks_forward.1} parent=11 // pred_check_branch
          %336 = sbr.rel (%p334) target = $region36
        $region35: #{en_blocks_forward.1} parent=11 // pred_region
          _
        $region36: #{en_blocks_forward.1} parent=11 // pred_fallthru
          _
        // Predicated region
        $region37: #{en_blocks_forward.1} parent=11 // pred_check
          %p337 = pneg %p194
        $region38: #{en_blocks_forward.1} parent=11 // pred_check_branch
          %339 = sbr.rel (%p337) target = $region40
        $region39: #{en_blocks_forward.1} parent=11 // pred_region
          _
        $region40: #{en_blocks_forward.1} parent=11 // pred_fallthru
          _
        // Predicated region
        $region41: #{en_blocks_forward.1} parent=11 // pred_check
          %p340 = pneg %p215
        $region42: #{en_blocks_forward.1} parent=11 // pred_check_branch
          %342 = sbr.rel (%p340) target = $region44
        $region43: #{en_blocks_forward.1} parent=11 // pred_region
          _
        $region44: #{en_blocks_forward.1} parent=11 // pred_fallthru
          _
        // Predicated region
        $region45: #{en_blocks_forward.1} parent=11 // pred_check
          %p343 = pneg %p236
        $region46: #{en_blocks_forward.1} parent=11 // pred_check_branch
          %345 = sbr.rel (%p343) target = $region48
        $region47: #{en_blocks_forward.1} parent=11 // pred_region
          _
        $region48: #{en_blocks_forward.1} parent=11 // pred_fallthru
          _
        // Predicated region
        $region49: #{en_blocks_forward.1} parent=11 // pred_check
          %p346 = pneg %p257
        $region50: #{en_blocks_forward.1} parent=11 // pred_check_branch
          %348 = sbr.rel (%p346) target = $region52
        $region51: #{en_blocks_forward.1} parent=11 // pred_region
          _
        $region52: #{en_blocks_forward.1} parent=11 // pred_fallthru
          _
        // Predicated region
        $region53: #{en_blocks_forward.1} parent=11 // pred_check
          %p349 = pneg %p278
        $region54: #{en_blocks_forward.1} parent=11 // pred_check_branch
          %351 = sbr.rel (%p349) target = $region56
        $region55: #{en_blocks_forward.1} parent=11 // pred_region
          _
        $region56: #{en_blocks_forward.1} parent=11 // pred_fallthru
          _
      $region12: #{en_blocks_forward.1} parent=5 // pred_fallthru
        _
      %p352 = scmp.lt.s32.totalorder %s21, 2
      // Predicated region
      $region57: #{en_blocks_forward.1} parent=5 // pred_check
        %p353 = pneg %p352
      $region58: #{en_blocks_forward.1} parent=5 // pred_check_branch
        %355 = sbr.rel (%p353) target = $region60
      $region59: #{en_blocks_forward.1} parent=5 // pred_region
        // Predicated region
        $region61: #{en_blocks_forward.1} parent=59 // pred_check
          %p356 = pneg %p41
        $region62: #{en_blocks_forward.1} parent=59 // pred_check_branch
          %358 = sbr.rel (%p356) target = $region64
        $region63: #{en_blocks_forward.1} parent=59 // pred_region
          %p359 = scmp.lt.s32.totalorder %s21, 1
          %s360 = scalar_select %p359, %s21, 1
          %s361 = smul.addr %s360, 80
          %s362 = smul.addr %s361, 8
          %s363 = scalar_lea.vmem %s0, %s362
        $region64: #{en_blocks_forward.1} parent=59 // pred_fallthru
          _
      $region60: #{en_blocks_forward.1} parent=5 // pred_fallthru
        _
      %p364 = scmp.le.s32.totalorder 1, %s21
      %p365 = scmp.lt.s32.totalorder %s21, 3
      %p366 = pnand %p364, %p365
      %p367 = pneg %p366
      // Predicated region
      $region65: #{en_blocks_forward.1} parent=5 // pred_check
        _
      $region66: #{en_blocks_forward.1} parent=5 // pred_check_branch
        %369 = sbr.rel (%p366) target = $region68
      $region67: #{en_blocks_forward.1} parent=5 // pred_region
        %s370 = ssub.s32 %s21, 1
        %p371 = scmp.lt.s32.totalorder %s26, 1
        %s372 = scalar_select %p371, %s26, 1
        %s373 = smul.addr %s372, 80
        %s374 = smul.addr %s373, 8
        %s375 = scalar_lea.vmem %s0, %s374
        %p376 = pneg %p47
        %p377 = pneg %p44
        %p378 = pneg %p68
        %p379 = pneg %p65
        %p380 = pneg %p89
        %p381 = pneg %p86
        %p382 = pneg %p110
        %p383 = pneg %p107
        %p384 = pneg %p131
        %p385 = pneg %p128
        %p386 = pneg %p152
        %p387 = pneg %p149
        %p388 = pneg %p173
        %p389 = pneg %p170
        %p390 = pneg %p194
        %p391 = pneg %p191
        %p392 = pneg %p215
        %p393 = pneg %p212
        %p394 = pneg %p236
        %p395 = pneg %p233
        %p396 = pneg %p257
        %p397 = pneg %p254
        %p398 = pneg %p278
        %p399 = pneg %p275
        %p400 = pneg %p304
        %p401 = pneg %p301
        %s402 = sand.u32 %s291, 1
        %s403 = scalar_lea.sflag [#allocation4], %s402
        %s404 = sand.u32 %s291, 1
        %s405 = smul.addr %s404, 256
        %s406 = scalar_lea.vmem [#allocation3], %s405
        %p407 = scmp.lt.s32.totalorder %s26, 1
        %s408 = scalar_select %p407, %s26, 1
        %s409 = smul.addr %s408, 80
        %s410 = smul.addr %s409, 8
        %s411 = scalar_lea.vmem %s0, %s410
        %v413 = vld [vmem:[%s411] sm:$0xff]
        %v414 = vld [vmem:[%s411 + $0x8] sm:$0xff]
        %v415 = vld [vmem:[%s411 + $0x10] sm:$0xff]
        %v416 = vld [vmem:[%s411 + $0x20] sm:$0xff]
        %v417 = vld [vmem:[%s411 + $0x28] sm:$0xff]
        %v418 = vld [vmem:[%s411 + $0x30] sm:$0xff]
        %v419 = vld [vmem:[%s411 + $0x40] sm:$0xff]
        %v420 = vld [vmem:[%s411 + $0x48] sm:$0xff]
        %v421 = vld [vmem:[%s411 + $0x50] sm:$0xff]
        %v422 = vld [vmem:[%s411 + $0x60] sm:$0xff]
        %v423 = vld [vmem:[%s411 + $0x68] sm:$0xff]
        %v424 = vld [vmem:[%s411 + $0x70] sm:$0xff]
        %v425 = vld [vmem:[%s411 + $0x80] sm:$0xff]
        %v426 = vld [vmem:[%s411 + $0x88] sm:$0xff]
        %v427 = vld [vmem:[%s411 + $0x90] sm:$0xff]
        %v428 = vld [vmem:[%s411 + $0xa0] sm:$0xff]
        %v429 = vld [vmem:[%s411 + $0xa8] sm:$0xff]
        %v430 = vld [vmem:[%s411 + $0xb0] sm:$0xff]
        %v431 = vld [vmem:[%s411 + $0xc0] sm:$0xff]
        %v432 = vld [vmem:[%s411 + $0xc8] sm:$0xff]
        %v433 = vld [vmem:[%s411 + $0xd0] sm:$0xff]
        %v434 = vld [vmem:[%s411 + $0xe0] sm:$0xff]
        %v435 = vld [vmem:[%s411 + $0xe8] sm:$0xff]
        %v436 = vld [vmem:[%s411 + $0xf0] sm:$0xff]
        %v437 = vld [vmem:[%s411 + $0x100] sm:$0xff]
        %v438 = vld [vmem:[%s411 + $0x108] sm:$0xff]
        %v439 = vld [vmem:[%s411 + $0x110] sm:$0xff]
        %v440 = vld [vmem:[%s411 + $0x120] sm:$0xff]
        %v441 = vld [vmem:[%s411 + $0x128] sm:$0xff]
        %v442 = vld [vmem:[%s411 + $0x130] sm:$0xff]
        %v443 = vld [vmem:[%s411 + $0x140] sm:$0xff]
        %v444 = vld [vmem:[%s411 + $0x148] sm:$0xff]
        %v445 = vld [vmem:[%s411 + $0x150] sm:$0xff]
        %v446 = vld [vmem:[%s411 + $0x160] sm:$0xff]
        %v447 = vld [vmem:[%s411 + $0x168] sm:$0xff]
        %v448 = vld [vmem:[%s411 + $0x170] sm:$0xff]
        %v449 = vld [vmem:[%s411 + $0x180] sm:$0xff]
        %v450 = vld [vmem:[%s411 + $0x188] sm:$0xff]
        %v451 = vld [vmem:[%s411 + $0x190] sm:$0xff]
        %v452 = vld [vmem:[%s411 + $0x1a0] sm:$0xff]
        %v453 = vld [vmem:[%s411 + $0x1a8] sm:$0xff]
        %v454 = vld [vmem:[%s411 + $0x1b0] sm:$0xff]
        %v455 = vld [vmem:[%s411 + $0x1c0] sm:$0xff]
        %v456 = vld [vmem:[%s411 + $0x1c8] sm:$0xff]
        %v457 = vld [vmem:[%s411 + $0x1d0] sm:$0xff]
        %v458 = vld [vmem:[%s411 + $0x1e0] sm:$0xff]
        %v459 = vld [vmem:[%s411 + $0x1e8] sm:$0xff]
        %v460 = vld [vmem:[%s411 + $0x1f0] sm:$0xff]
        %v461 = vld [vmem:[%s411 + $0x200] sm:$0xff]
        %v462 = vld [vmem:[%s411 + $0x208] sm:$0xff]
        %v463 = vld [vmem:[%s411 + $0x210] sm:$0xff]
        %v464 = vld [vmem:[%s411 + $0x220] sm:$0xff]
        %v465 = vld [vmem:[%s411 + $0x228] sm:$0xff]
        %v466 = vld [vmem:[%s411 + $0x230] sm:$0xff]
        %v467 = vld [vmem:[%s411 + $0x1] sm:$0xff]
        %v468 = vld [vmem:[%s411 + $0x9] sm:$0xff]
        %v469 = vld [vmem:[%s411 + $0x11] sm:$0xff]
        %v470 = vld [vmem:[%s411 + $0x21] sm:$0xff]
        %v471 = vld [vmem:[%s411 + $0x29] sm:$0xff]
        %v472 = vld [vmem:[%s411 + $0x31] sm:$0xff]
        %v473 = vld [vmem:[%s411 + $0x41] sm:$0xff]
        %v474 = vld [vmem:[%s411 + $0x49] sm:$0xff]
        %v475 = vld [vmem:[%s411 + $0x51] sm:$0xff]
        %v476 = vld [vmem:[%s411 + $0x61] sm:$0xff]
        %v477 = vld [vmem:[%s411 + $0x69] sm:$0xff]
        %v478 = vld [vmem:[%s411 + $0x71] sm:$0xff]
        %v479 = vld [vmem:[%s411 + $0x81] sm:$0xff]
        %v480 = vld [vmem:[%s411 + $0x89] sm:$0xff]
        %v481 = vld [vmem:[%s411 + $0x91] sm:$0xff]
        %v482 = vld [vmem:[%s411 + $0xa1] sm:$0xff]
        %v483 = vld [vmem:[%s411 + $0xa9] sm:$0xff]
        %v484 = vld [vmem:[%s411 + $0xb1] sm:$0xff]
        %v485 = vld [vmem:[%s411 + $0xc1] sm:$0xff]
        %v486 = vld [vmem:[%s411 + $0xc9] sm:$0xff]
        %v487 = vld [vmem:[%s411 + $0xd1] sm:$0xff]
        %v488 = vld [vmem:[%s411 + $0xe1] sm:$0xff]
        %v489 = vld [vmem:[%s411 + $0xe9] sm:$0xff]
        %v490 = vld [vmem:[%s411 + $0xf1] sm:$0xff]
        %v491 = vld [vmem:[%s411 + $0x101] sm:$0xff]
        %v492 = vld [vmem:[%s411 + $0x109] sm:$0xff]
        %v493 = vld [vmem:[%s411 + $0x111] sm:$0xff]
        %v494 = vld [vmem:[%s411 + $0x121] sm:$0xff]
        %v495 = vld [vmem:[%s411 + $0x129] sm:$0xff]
        %v496 = vld [vmem:[%s411 + $0x131] sm:$0xff]
        %v497 = vld [vmem:[%s411 + $0x141] sm:$0xff]
        %v498 = vld [vmem:[%s411 + $0x149] sm:$0xff]
        %v499 = vld [vmem:[%s411 + $0x151] sm:$0xff]
        %v500 = vld [vmem:[%s411 + $0x161] sm:$0xff]
        %v501 = vld [vmem:[%s411 + $0x169] sm:$0xff]
        %v502 = vld [vmem:[%s411 + $0x171] sm:$0xff]
        %v503 = vld [vmem:[%s411 + $0x181] sm:$0xff]
        %v504 = vld [vmem:[%s411 + $0x189] sm:$0xff]
        %v505 = vld [vmem:[%s411 + $0x191] sm:$0xff]
        %v506 = vld [vmem:[%s411 + $0x1a1] sm:$0xff]
        %v507 = vld [vmem:[%s411 + $0x1a9] sm:$0xff]
        %v508 = vld [vmem:[%s411 + $0x1b1] sm:$0xff]
        %v509 = vld [vmem:[%s411 + $0x1c1] sm:$0xff]
        %v510 = vld [vmem:[%s411 + $0x1c9] sm:$0xff]
        %v511 = vld [vmem:[%s411 + $0x1d1] sm:$0xff]
        %v512 = vld [vmem:[%s411 + $0x1e1] sm:$0xff]
        %v513 = vld [vmem:[%s411 + $0x1e9] sm:$0xff]
        %v514 = vld [vmem:[%s411 + $0x1f1] sm:$0xff]
        %v515 = vld [vmem:[%s411 + $0x201] sm:$0xff]
        %v516 = vld [vmem:[%s411 + $0x209] sm:$0xff]
        %v517 = vld [vmem:[%s411 + $0x211] sm:$0xff]
        %v518 = vld [vmem:[%s411 + $0x221] sm:$0xff]
        %v519 = vld [vmem:[%s411 + $0x229] sm:$0xff]
        %v520 = vld [vmem:[%s411 + $0x231] sm:$0xff]
        %v521 = vld [vmem:[%s411 + $0x2] sm:$0xff]
        %v522 = vld [vmem:[%s411 + $0xa] sm:$0xff]
        %v523 = vld [vmem:[%s411 + $0x12] sm:$0xff]
        %v524 = vld [vmem:[%s411 + $0x22] sm:$0xff]
        %v525 = vld [vmem:[%s411 + $0x2a] sm:$0xff]
        %v526 = vld [vmem:[%s411 + $0x32] sm:$0xff]
        %v527 = vld [vmem:[%s411 + $0x42] sm:$0xff]
        %v528 = vld [vmem:[%s411 + $0x4a] sm:$0xff]
        %v529 = vld [vmem:[%s411 + $0x52] sm:$0xff]
        %v530 = vld [vmem:[%s411 + $0x62] sm:$0xff]
        %v531 = vld [vmem:[%s411 + $0x6a] sm:$0xff]
        %v532 = vld [vmem:[%s411 + $0x72] sm:$0xff]
        %v533 = vld [vmem:[%s411 + $0x82] sm:$0xff]
        %v534 = vld [vmem:[%s411 + $0x8a] sm:$0xff]
        %v535 = vld [vmem:[%s411 + $0x92] sm:$0xff]
        %v536 = vld [vmem:[%s411 + $0xa2] sm:$0xff]
        %v537 = vld [vmem:[%s411 + $0xaa] sm:$0xff]
        %v538 = vld [vmem:[%s411 + $0xb2] sm:$0xff]
        %v539 = vld [vmem:[%s411 + $0xc2] sm:$0xff]
        %v540 = vld [vmem:[%s411 + $0xca] sm:$0xff]
        %v541 = vld [vmem:[%s411 + $0xd2] sm:$0xff]
        %v542 = vld [vmem:[%s411 + $0xe2] sm:$0xff]
        %v543 = vld [vmem:[%s411 + $0xea] sm:$0xff]
        %v544 = vld [vmem:[%s411 + $0xf2] sm:$0xff]
        %v545 = vld [vmem:[%s411 + $0x102] sm:$0xff]
        %v546 = vld [vmem:[%s411 + $0x10a] sm:$0xff]
        %v547 = vld [vmem:[%s411 + $0x112] sm:$0xff]
        %v548 = vld [vmem:[%s411 + $0x122] sm:$0xff]
        %v549 = vld [vmem:[%s411 + $0x12a] sm:$0xff]
        %v550 = vld [vmem:[%s411 + $0x132] sm:$0xff]
        %v551 = vld [vmem:[%s411 + $0x142] sm:$0xff]
        %v552 = vld [vmem:[%s411 + $0x14a] sm:$0xff]
        %v553 = vld [vmem:[%s411 + $0x152] sm:$0xff]
        %v554 = vld [vmem:[%s411 + $0x162] sm:$0xff]
        %v555 = vld [vmem:[%s411 + $0x16a] sm:$0xff]
        %v556 = vld [vmem:[%s411 + $0x172] sm:$0xff]
        %v557 = vld [vmem:[%s411 + $0x182] sm:$0xff]
        %v558 = vld [vmem:[%s411 + $0x18a] sm:$0xff]
        %v559 = vld [vmem:[%s411 + $0x192] sm:$0xff]
        %v560 = vld [vmem:[%s411 + $0x1a2] sm:$0xff]
        %v561 = vld [vmem:[%s411 + $0x1aa] sm:$0xff]
        %v562 = vld [vmem:[%s411 + $0x1b2] sm:$0xff]
        %v563 = vld [vmem:[%s411 + $0x1c2] sm:$0xff]
        %v564 = vld [vmem:[%s411 + $0x1ca] sm:$0xff]
        %v565 = vld [vmem:[%s411 + $0x1d2] sm:$0xff]
        %v566 = vld [vmem:[%s411 + $0x1e2] sm:$0xff]
        %v567 = vld [vmem:[%s411 + $0x1ea] sm:$0xff]
        %v568 = vld [vmem:[%s411 + $0x1f2] sm:$0xff]
        %v569 = vld [vmem:[%s411 + $0x202] sm:$0xff]
        %v570 = vld [vmem:[%s411 + $0x20a] sm:$0xff]
        %v571 = vld [vmem:[%s411 + $0x212] sm:$0xff]
        %v572 = vld [vmem:[%s411 + $0x222] sm:$0xff]
        %v573 = vld [vmem:[%s411 + $0x22a] sm:$0xff]
        %v574 = vld [vmem:[%s411 + $0x232] sm:$0xff]
        %s575 = scalar_lea.vmem %s411, 32
        %v576 = vld [vmem:[%s575] sm:$0xff]
        %v577 = vld [vmem:[%s575 + $0x8] sm:$0xff]
        %v578 = vld [vmem:[%s575 + $0x10] sm:$0xff]
        %v579 = vld [vmem:[%s575 + $0x20] sm:$0xff]
        %v580 = vld [vmem:[%s575 + $0x28] sm:$0xff]
        %v581 = vld [vmem:[%s575 + $0x30] sm:$0xff]
        %v582 = vld [vmem:[%s575 + $0x40] sm:$0xff]
        %v583 = vld [vmem:[%s575 + $0x48] sm:$0xff]
        %v584 = vld [vmem:[%s575 + $0x50] sm:$0xff]
        %v585 = vld [vmem:[%s575 + $0x60] sm:$0xff]
        %v586 = vld [vmem:[%s575 + $0x68] sm:$0xff]
        %v587 = vld [vmem:[%s575 + $0x70] sm:$0xff]
        %v588 = vld [vmem:[%s575 + $0x80] sm:$0xff]
        %v589 = vld [vmem:[%s575 + $0x88] sm:$0xff]
        %v590 = vld [vmem:[%s575 + $0x90] sm:$0xff]
        %v591 = vld [vmem:[%s575 + $0xa0] sm:$0xff]
        %v592 = vld [vmem:[%s575 + $0xa8] sm:$0xff]
        %v593 = vld [vmem:[%s575 + $0xb0] sm:$0xff]
        %v594 = vld [vmem:[%s575 + $0xc0] sm:$0xff]
        %v595 = vld [vmem:[%s575 + $0xc8] sm:$0xff]
        %v596 = vld [vmem:[%s575 + $0xd0] sm:$0xff]
        %v597 = vld [vmem:[%s575 + $0xe0] sm:$0xff]
        %v598 = vld [vmem:[%s575 + $0xe8] sm:$0xff]
        %v599 = vld [vmem:[%s575 + $0xf0] sm:$0xff]
        %v600 = vld [vmem:[%s575 + $0x100] sm:$0xff]
        %v601 = vld [vmem:[%s575 + $0x108] sm:$0xff]
        %v602 = vld [vmem:[%s575 + $0x110] sm:$0xff]
        %v603 = vld [vmem:[%s575 + $0x120] sm:$0xff]
        %v604 = vld [vmem:[%s575 + $0x128] sm:$0xff]
        %v605 = vld [vmem:[%s575 + $0x130] sm:$0xff]
        %v606 = vld [vmem:[%s575 + $0x140] sm:$0xff]
        %v607 = vld [vmem:[%s575 + $0x148] sm:$0xff]
        %v608 = vld [vmem:[%s575 + $0x150] sm:$0xff]
        %v609 = vld [vmem:[%s575 + $0x160] sm:$0xff]
        %v610 = vld [vmem:[%s575 + $0x168] sm:$0xff]
        %v611 = vld [vmem:[%s575 + $0x170] sm:$0xff]
        %v612 = vld [vmem:[%s575 + $0x180] sm:$0xff]
        %v613 = vld [vmem:[%s575 + $0x188] sm:$0xff]
        %v614 = vld [vmem:[%s575 + $0x190] sm:$0xff]
        %v615 = vld [vmem:[%s575 + $0x1a0] sm:$0xff]
        %v616 = vld [vmem:[%s575 + $0x1a8] sm:$0xff]
        %v617 = vld [vmem:[%s575 + $0x1b0] sm:$0xff]
        %v618 = vld [vmem:[%s575 + $0x1c0] sm:$0xff]
        %v619 = vld [vmem:[%s575 + $0x1c8] sm:$0xff]
        %v620 = vld [vmem:[%s575 + $0x1d0] sm:$0xff]
        %v621 = vld [vmem:[%s575 + $0x1e0] sm:$0xff]
        %v622 = vld [vmem:[%s575 + $0x1e8] sm:$0xff]
        %v623 = vld [vmem:[%s575 + $0x1f0] sm:$0xff]
        %v624 = vld [vmem:[%s575 + $0x200] sm:$0xff]
        %v625 = vld [vmem:[%s575 + $0x208] sm:$0xff]
        %v626 = vld [vmem:[%s575 + $0x210] sm:$0xff]
        %v627 = vld [vmem:[%s575 + $0x220] sm:$0xff]
        %v628 = vld [vmem:[%s575 + $0x228] sm:$0xff]
        %v629 = vld [vmem:[%s575 + $0x230] sm:$0xff]
        %v630 = vld [vmem:[%s575 + $0x1] sm:$0xff]
        %v631 = vld [vmem:[%s575 + $0x9] sm:$0xff]
        %v632 = vld [vmem:[%s575 + $0x11] sm:$0xff]
        %v633 = vld [vmem:[%s575 + $0x21] sm:$0xff]
        %v634 = vld [vmem:[%s575 + $0x29] sm:$0xff]
        %v635 = vld [vmem:[%s575 + $0x31] sm:$0xff]
        %v636 = vld [vmem:[%s575 + $0x41] sm:$0xff]
        %v637 = vld [vmem:[%s575 + $0x49] sm:$0xff]
        %v638 = vld [vmem:[%s575 + $0x51] sm:$0xff]
        %v639 = vld [vmem:[%s575 + $0x61] sm:$0xff]
        %v640 = vld [vmem:[%s575 + $0x69] sm:$0xff]
        %v641 = vld [vmem:[%s575 + $0x71] sm:$0xff]
        %v642 = vld [vmem:[%s575 + $0x81] sm:$0xff]
        %v643 = vld [vmem:[%s575 + $0x89] sm:$0xff]
        %v644 = vld [vmem:[%s575 + $0x91] sm:$0xff]
        %v645 = vld [vmem:[%s575 + $0xa1] sm:$0xff]
        %v646 = vld [vmem:[%s575 + $0xa9] sm:$0xff]
        %v647 = vld [vmem:[%s575 + $0xb1] sm:$0xff]
        %v648 = vld [vmem:[%s575 + $0xc1] sm:$0xff]
        %v649 = vld [vmem:[%s575 + $0xc9] sm:$0xff]
        %v650 = vld [vmem:[%s575 + $0xd1] sm:$0xff]
        %v651 = vld [vmem:[%s575 + $0xe1] sm:$0xff]
        %v652 = vld [vmem:[%s575 + $0xe9] sm:$0xff]
        %v653 = vld [vmem:[%s575 + $0xf1] sm:$0xff]
        %v654 = vld [vmem:[%s575 + $0x101] sm:$0xff]
        %v655 = vld [vmem:[%s575 + $0x109] sm:$0xff]
        %v656 = vld [vmem:[%s575 + $0x111] sm:$0xff]
        %v657 = vld [vmem:[%s575 + $0x121] sm:$0xff]
        %v658 = vld [vmem:[%s575 + $0x129] sm:$0xff]
        %v659 = vld [vmem:[%s575 + $0x131] sm:$0xff]
        %v660 = vld [vmem:[%s575 + $0x141] sm:$0xff]
        %v661 = vld [vmem:[%s575 + $0x149] sm:$0xff]
        %v662 = vld [vmem:[%s575 + $0x151] sm:$0xff]
        %v663 = vld [vmem:[%s575 + $0x161] sm:$0xff]
        %v664 = vld [vmem:[%s575 + $0x169] sm:$0xff]
        %v665 = vld [vmem:[%s575 + $0x171] sm:$0xff]
        %v666 = vld [vmem:[%s575 + $0x181] sm:$0xff]
        %v667 = vld [vmem:[%s575 + $0x189] sm:$0xff]
        %v668 = vld [vmem:[%s575 + $0x191] sm:$0xff]
        %v669 = vld [vmem:[%s575 + $0x1a1] sm:$0xff]
        %v670 = vld [vmem:[%s575 + $0x1a9] sm:$0xff]
        %v671 = vld [vmem:[%s575 + $0x1b1] sm:$0xff]
        %v672 = vld [vmem:[%s575 + $0x1c1] sm:$0xff]
        %v673 = vld [vmem:[%s575 + $0x1c9] sm:$0xff]
        %v674 = vld [vmem:[%s575 + $0x1d1] sm:$0xff]
        %v675 = vld [vmem:[%s575 + $0x1e1] sm:$0xff]
        %v676 = vld [vmem:[%s575 + $0x1e9] sm:$0xff]
        %v677 = vld [vmem:[%s575 + $0x1f1] sm:$0xff]
        %v678 = vld [vmem:[%s575 + $0x201] sm:$0xff]
        %v679 = vld [vmem:[%s575 + $0x209] sm:$0xff]
        %v680 = vld [vmem:[%s575 + $0x211] sm:$0xff]
        %v681 = vld [vmem:[%s575 + $0x221] sm:$0xff]
        %v682 = vld [vmem:[%s575 + $0x229] sm:$0xff]
        %v683 = vld [vmem:[%s575 + $0x231] sm:$0xff]
        %v684 = vld [vmem:[%s575 + $0x2] sm:$0xff]
        %v685 = vld [vmem:[%s575 + $0xa] sm:$0xff]
        %v686 = vld [vmem:[%s575 + $0x12] sm:$0xff]
        %v687 = vld [vmem:[%s575 + $0x22] sm:$0xff]
        %v688 = vld [vmem:[%s575 + $0x2a] sm:$0xff]
        %v689 = vld [vmem:[%s575 + $0x32] sm:$0xff]
        %v690 = vld [vmem:[%s575 + $0x42] sm:$0xff]
        %v691 = vld [vmem:[%s575 + $0x4a] sm:$0xff]
        %v692 = vld [vmem:[%s575 + $0x52] sm:$0xff]
        %v693 = vld [vmem:[%s575 + $0x62] sm:$0xff]
        %v694 = vld [vmem:[%s575 + $0x6a] sm:$0xff]
        %v695 = vld [vmem:[%s575 + $0x72] sm:$0xff]
        %v696 = vld [vmem:[%s575 + $0x82] sm:$0xff]
        %v697 = vld [vmem:[%s575 + $0x8a] sm:$0xff]
        %v698 = vld [vmem:[%s575 + $0x92] sm:$0xff]
        %v699 = vld [vmem:[%s575 + $0xa2] sm:$0xff]
        %v700 = vld [vmem:[%s575 + $0xaa] sm:$0xff]
        %v701 = vld [vmem:[%s575 + $0xb2] sm:$0xff]
        %v702 = vld [vmem:[%s575 + $0xc2] sm:$0xff]
        %v703 = vld [vmem:[%s575 + $0xca] sm:$0xff]
        %v704 = vld [vmem:[%s575 + $0xd2] sm:$0xff]
        %v705 = vld [vmem:[%s575 + $0xe2] sm:$0xff]
        %v706 = vld [vmem:[%s575 + $0xea] sm:$0xff]
        %v707 = vld [vmem:[%s575 + $0xf2] sm:$0xff]
        %v708 = vld [vmem:[%s575 + $0x102] sm:$0xff]
        %v709 = vld [vmem:[%s575 + $0x10a] sm:$0xff]
        %v710 = vld [vmem:[%s575 + $0x112] sm:$0xff]
        %v711 = vld [vmem:[%s575 + $0x122] sm:$0xff]
        %v712 = vld [vmem:[%s575 + $0x12a] sm:$0xff]
        %v713 = vld [vmem:[%s575 + $0x132] sm:$0xff]
        %v714 = vld [vmem:[%s575 + $0x142] sm:$0xff]
        %v715 = vld [vmem:[%s575 + $0x14a] sm:$0xff]
        %v716 = vld [vmem:[%s575 + $0x152] sm:$0xff]
        %v717 = vld [vmem:[%s575 + $0x162] sm:$0xff]
        %v718 = vld [vmem:[%s575 + $0x16a] sm:$0xff]
        %v719 = vld [vmem:[%s575 + $0x172] sm:$0xff]
        %v720 = vld [vmem:[%s575 + $0x182] sm:$0xff]
        %v721 = vld [vmem:[%s575 + $0x18a] sm:$0xff]
        %v722 = vld [vmem:[%s575 + $0x192] sm:$0xff]
        %v723 = vld [vmem:[%s575 + $0x1a2] sm:$0xff]
        %v724 = vld [vmem:[%s575 + $0x1aa] sm:$0xff]
        %v725 = vld [vmem:[%s575 + $0x1b2] sm:$0xff]
        %v726 = vld [vmem:[%s575 + $0x1c2] sm:$0xff]
        %v727 = vld [vmem:[%s575 + $0x1ca] sm:$0xff]
        %v728 = vld [vmem:[%s575 + $0x1d2] sm:$0xff]
        %v729 = vld [vmem:[%s575 + $0x1e2] sm:$0xff]
        %v730 = vld [vmem:[%s575 + $0x1ea] sm:$0xff]
        %v731 = vld [vmem:[%s575 + $0x1f2] sm:$0xff]
        %v732 = vld [vmem:[%s575 + $0x202] sm:$0xff]
        %v733 = vld [vmem:[%s575 + $0x20a] sm:$0xff]
        %v734 = vld [vmem:[%s575 + $0x212] sm:$0xff]
        %v735 = vld [vmem:[%s575 + $0x222] sm:$0xff]
        %v736 = vld [vmem:[%s575 + $0x22a] sm:$0xff]
        %v737 = vld [vmem:[%s575 + $0x232] sm:$0xff]
        %s738 = scalar_lea.vmem %s411, 64
        %v739 = vld [vmem:[%s738] sm:$0xff]
        %v740 = vld [vmem:[%s738 + $0x8] sm:$0xff]
        %v741 = vld [vmem:[%s738 + $0x10] sm:$0xff]
        %v742 = vld [vmem:[%s738 + $0x20] sm:$0xff]
        %v743 = vld [vmem:[%s738 + $0x28] sm:$0xff]
        %v744 = vld [vmem:[%s738 + $0x30] sm:$0xff]
        %v745 = vld [vmem:[%s738 + $0x40] sm:$0xff]
        %v746 = vld [vmem:[%s738 + $0x48] sm:$0xff]
        %v747 = vld [vmem:[%s738 + $0x50] sm:$0xff]
        %v748 = vld [vmem:[%s738 + $0x60] sm:$0xff]
        %v749 = vld [vmem:[%s738 + $0x68] sm:$0xff]
        %v750 = vld [vmem:[%s738 + $0x70] sm:$0xff]
        %v751 = vld [vmem:[%s738 + $0x80] sm:$0xff]
        %v752 = vld [vmem:[%s738 + $0x88] sm:$0xff]
        %v753 = vld [vmem:[%s738 + $0x90] sm:$0xff]
        %v754 = vld [vmem:[%s738 + $0xa0] sm:$0xff]
        %v755 = vld [vmem:[%s738 + $0xa8] sm:$0xff]
        %v756 = vld [vmem:[%s738 + $0xb0] sm:$0xff]
        %v757 = vld [vmem:[%s738 + $0xc0] sm:$0xff]
        %v758 = vld [vmem:[%s738 + $0xc8] sm:$0xff]
        %v759 = vld [vmem:[%s738 + $0xd0] sm:$0xff]
        %v760 = vld [vmem:[%s738 + $0xe0] sm:$0xff]
        %v761 = vld [vmem:[%s738 + $0xe8] sm:$0xff]
        %v762 = vld [vmem:[%s738 + $0xf0] sm:$0xff]
        %v763 = vld [vmem:[%s738 + $0x100] sm:$0xff]
        %v764 = vld [vmem:[%s738 + $0x108] sm:$0xff]
        %v765 = vld [vmem:[%s738 + $0x110] sm:$0xff]
        %v766 = vld [vmem:[%s738 + $0x120] sm:$0xff]
        %v767 = vld [vmem:[%s738 + $0x128] sm:$0xff]
        %v768 = vld [vmem:[%s738 + $0x130] sm:$0xff]
        %v769 = vld [vmem:[%s738 + $0x140] sm:$0xff]
        %v770 = vld [vmem:[%s738 + $0x148] sm:$0xff]
        %v771 = vld [vmem:[%s738 + $0x150] sm:$0xff]
        %v772 = vld [vmem:[%s738 + $0x160] sm:$0xff]
        %v773 = vld [vmem:[%s738 + $0x168] sm:$0xff]
        %v774 = vld [vmem:[%s738 + $0x170] sm:$0xff]
        %v775 = vld [vmem:[%s738 + $0x180] sm:$0xff]
        %v776 = vld [vmem:[%s738 + $0x188] sm:$0xff]
        %v777 = vld [vmem:[%s738 + $0x190] sm:$0xff]
        %v778 = vld [vmem:[%s738 + $0x1a0] sm:$0xff]
        %v779 = vld [vmem:[%s738 + $0x1a8] sm:$0xff]
        %v780 = vld [vmem:[%s738 + $0x1b0] sm:$0xff]
        %v781 = vld [vmem:[%s738 + $0x1c0] sm:$0xff]
        %v782 = vld [vmem:[%s738 + $0x1c8] sm:$0xff]
        %v783 = vld [vmem:[%s738 + $0x1d0] sm:$0xff]
        %v784 = vld [vmem:[%s738 + $0x1e0] sm:$0xff]
        %v785 = vld [vmem:[%s738 + $0x1e8] sm:$0xff]
        %v786 = vld [vmem:[%s738 + $0x1f0] sm:$0xff]
        %v787 = vld [vmem:[%s738 + $0x200] sm:$0xff]
        %v788 = vld [vmem:[%s738 + $0x208] sm:$0xff]
        %v789 = vld [vmem:[%s738 + $0x210] sm:$0xff]
        %v790 = vld [vmem:[%s738 + $0x220] sm:$0xff]
        %v791 = vld [vmem:[%s738 + $0x228] sm:$0xff]
        %v792 = vld [vmem:[%s738 + $0x230] sm:$0xff]
        %v793 = vld [vmem:[%s738 + $0x1] sm:$0xff]
        %v794 = vld [vmem:[%s738 + $0x9] sm:$0xff]
        %v795 = vld [vmem:[%s738 + $0x11] sm:$0xff]
        %v796 = vld [vmem:[%s738 + $0x21] sm:$0xff]
        %v797 = vld [vmem:[%s738 + $0x29] sm:$0xff]
        %v798 = vld [vmem:[%s738 + $0x31] sm:$0xff]
        %v799 = vld [vmem:[%s738 + $0x41] sm:$0xff]
        %v800 = vld [vmem:[%s738 + $0x49] sm:$0xff]
        %v801 = vld [vmem:[%s738 + $0x51] sm:$0xff]
        %v802 = vld [vmem:[%s738 + $0x61] sm:$0xff]
        %v803 = vld [vmem:[%s738 + $0x69] sm:$0xff]
        %v804 = vld [vmem:[%s738 + $0x71] sm:$0xff]
        %v805 = vld [vmem:[%s738 + $0x81] sm:$0xff]
        %v806 = vld [vmem:[%s738 + $0x89] sm:$0xff]
        %v807 = vld [vmem:[%s738 + $0x91] sm:$0xff]
        %v808 = vld [vmem:[%s738 + $0xa1] sm:$0xff]
        %v809 = vld [vmem:[%s738 + $0xa9] sm:$0xff]
        %v810 = vld [vmem:[%s738 + $0xb1] sm:$0xff]
        %v811 = vld [vmem:[%s738 + $0xc1] sm:$0xff]
        %v812 = vld [vmem:[%s738 + $0xc9] sm:$0xff]
        %v813 = vld [vmem:[%s738 + $0xd1] sm:$0xff]
        %v814 = vld [vmem:[%s738 + $0xe1] sm:$0xff]
        %v815 = vld [vmem:[%s738 + $0xe9] sm:$0xff]
        %v816 = vld [vmem:[%s738 + $0xf1] sm:$0xff]
        %v817 = vld [vmem:[%s738 + $0x101] sm:$0xff]
        %v818 = vld [vmem:[%s738 + $0x109] sm:$0xff]
        %v819 = vld [vmem:[%s738 + $0x111] sm:$0xff]
        %v820 = vld [vmem:[%s738 + $0x121] sm:$0xff]
        %v821 = vld [vmem:[%s738 + $0x129] sm:$0xff]
        %v822 = vld [vmem:[%s738 + $0x131] sm:$0xff]
        %v823 = vld [vmem:[%s738 + $0x141] sm:$0xff]
        %v824 = vld [vmem:[%s738 + $0x149] sm:$0xff]
        %v825 = vld [vmem:[%s738 + $0x151] sm:$0xff]
        %v826 = vld [vmem:[%s738 + $0x161] sm:$0xff]
        %v827 = vld [vmem:[%s738 + $0x169] sm:$0xff]
        %v828 = vld [vmem:[%s738 + $0x171] sm:$0xff]
        %v829 = vld [vmem:[%s738 + $0x181] sm:$0xff]
        %v830 = vld [vmem:[%s738 + $0x189] sm:$0xff]
        %v831 = vld [vmem:[%s738 + $0x191] sm:$0xff]
        %v832 = vld [vmem:[%s738 + $0x1a1] sm:$0xff]
        %v833 = vld [vmem:[%s738 + $0x1a9] sm:$0xff]
        %v834 = vld [vmem:[%s738 + $0x1b1] sm:$0xff]
        %v835 = vld [vmem:[%s738 + $0x1c1] sm:$0xff]
        %v836 = vld [vmem:[%s738 + $0x1c9] sm:$0xff]
        %v837 = vld [vmem:[%s738 + $0x1d1] sm:$0xff]
        %v838 = vld [vmem:[%s738 + $0x1e1] sm:$0xff]
        %v839 = vld [vmem:[%s738 + $0x1e9] sm:$0xff]
        %v840 = vld [vmem:[%s738 + $0x1f1] sm:$0xff]
        %v841 = vld [vmem:[%s738 + $0x201] sm:$0xff]
        %v842 = vld [vmem:[%s738 + $0x209] sm:$0xff]
        %v843 = vld [vmem:[%s738 + $0x211] sm:$0xff]
        %v844 = vld [vmem:[%s738 + $0x221] sm:$0xff]
        %v845 = vld [vmem:[%s738 + $0x229] sm:$0xff]
        %v846 = vld [vmem:[%s738 + $0x231] sm:$0xff]
        %v847 = vld [vmem:[%s738 + $0x2] sm:$0xff]
        %v848 = vld [vmem:[%s738 + $0xa] sm:$0xff]
        %v849 = vld [vmem:[%s738 + $0x12] sm:$0xff]
        %v850 = vld [vmem:[%s738 + $0x22] sm:$0xff]
        %v851 = vld [vmem:[%s738 + $0x2a] sm:$0xff]
        %v852 = vld [vmem:[%s738 + $0x32] sm:$0xff]
        %v853 = vld [vmem:[%s738 + $0x42] sm:$0xff]
        %v854 = vld [vmem:[%s738 + $0x4a] sm:$0xff]
        %v855 = vld [vmem:[%s738 + $0x52] sm:$0xff]
        %v856 = vld [vmem:[%s738 + $0x62] sm:$0xff]
        %v857 = vld [vmem:[%s738 + $0x6a] sm:$0xff]
        %v858 = vld [vmem:[%s738 + $0x72] sm:$0xff]
        %v859 = vld [vmem:[%s738 + $0x82] sm:$0xff]
        %v860 = vld [vmem:[%s738 + $0x8a] sm:$0xff]
        %v861 = vld [vmem:[%s738 + $0x92] sm:$0xff]
        %v862 = vld [vmem:[%s738 + $0xa2] sm:$0xff]
        %v863 = vld [vmem:[%s738 + $0xaa] sm:$0xff]
        %v864 = vld [vmem:[%s738 + $0xb2] sm:$0xff]
        %v865 = vld [vmem:[%s738 + $0xc2] sm:$0xff]
        %v866 = vld [vmem:[%s738 + $0xca] sm:$0xff]
        %v867 = vld [vmem:[%s738 + $0xd2] sm:$0xff]
        %v868 = vld [vmem:[%s738 + $0xe2] sm:$0xff]
        %v869 = vld [vmem:[%s738 + $0xea] sm:$0xff]
        %v870 = vld [vmem:[%s738 + $0xf2] sm:$0xff]
        %v871 = vld [vmem:[%s738 + $0x102] sm:$0xff]
        %v872 = vld [vmem:[%s738 + $0x10a] sm:$0xff]
        %v873 = vld [vmem:[%s738 + $0x112] sm:$0xff]
        %v874 = vld [vmem:[%s738 + $0x122] sm:$0xff]
        %v875 = vld [vmem:[%s738 + $0x12a] sm:$0xff]
        %v876 = vld [vmem:[%s738 + $0x132] sm:$0xff]
        %v877 = vld [vmem:[%s738 + $0x142] sm:$0xff]
        %v878 = vld [vmem:[%s738 + $0x14a] sm:$0xff]
        %v879 = vld [vmem:[%s738 + $0x152] sm:$0xff]
        %v880 = vld [vmem:[%s738 + $0x162] sm:$0xff]
        %v881 = vld [vmem:[%s738 + $0x16a] sm:$0xff]
        %v882 = vld [vmem:[%s738 + $0x172] sm:$0xff]
        %v883 = vld [vmem:[%s738 + $0x182] sm:$0xff]
        %v884 = vld [vmem:[%s738 + $0x18a] sm:$0xff]
        %v885 = vld [vmem:[%s738 + $0x192] sm:$0xff]
        %v886 = vld [vmem:[%s738 + $0x1a2] sm:$0xff]
        %v887 = vld [vmem:[%s738 + $0x1aa] sm:$0xff]
        %v888 = vld [vmem:[%s738 + $0x1b2] sm:$0xff]
        %v889 = vld [vmem:[%s738 + $0x1c2] sm:$0xff]
        %v890 = vld [vmem:[%s738 + $0x1ca] sm:$0xff]
        %v891 = vld [vmem:[%s738 + $0x1d2] sm:$0xff]
        %v892 = vld [vmem:[%s738 + $0x1e2] sm:$0xff]
        %v893 = vld [vmem:[%s738 + $0x1ea] sm:$0xff]
        %v894 = vld [vmem:[%s738 + $0x1f2] sm:$0xff]
        %v895 = vld [vmem:[%s738 + $0x202] sm:$0xff]
        %v896 = vld [vmem:[%s738 + $0x20a] sm:$0xff]
        %v897 = vld [vmem:[%s738 + $0x212] sm:$0xff]
        %v898 = vld [vmem:[%s738 + $0x222] sm:$0xff]
        %v899 = vld [vmem:[%s738 + $0x22a] sm:$0xff]
        %v900 = vld [vmem:[%s738 + $0x232] sm:$0xff]
        %955 = vrot.lane.b32.xlu0 %v467, 4
        %v956 = vpop.permute.xlu0 %955
        %957 = vrot.lane.b32.xlu0 %v468, 4
        %v958 = vpop.permute.xlu0 %957
        %959 = vrot.lane.b32.xlu0 %v469, 4
        %v960 = vpop.permute.xlu0 %959
        %961 = vrot.lane.b32.xlu0 %v470, 4
        %v962 = vpop.permute.xlu0 %961
        %963 = vrot.lane.b32.xlu0 %v471, 4
        %v964 = vpop.permute.xlu0 %963
        %965 = vrot.lane.b32.xlu0 %v472, 4
        %v966 = vpop.permute.xlu0 %965
        %967 = vrot.lane.b32.xlu0 %v473, 4
        %v968 = vpop.permute.xlu0 %967
        %969 = vrot.lane.b32.xlu0 %v474, 4
        %v970 = vpop.permute.xlu0 %969
        %971 = vrot.lane.b32.xlu0 %v475, 4
        %v972 = vpop.permute.xlu0 %971
        %973 = vrot.lane.b32.xlu0 %v476, 4
        %v974 = vpop.permute.xlu0 %973
        %975 = vrot.lane.b32.xlu0 %v477, 4
        %v976 = vpop.permute.xlu0 %975
        %977 = vrot.lane.b32.xlu0 %v478, 4
        %v978 = vpop.permute.xlu0 %977
        %979 = vrot.lane.b32.xlu0 %v479, 4
        %v980 = vpop.permute.xlu0 %979
        %981 = vrot.lane.b32.xlu0 %v480, 4
        %v982 = vpop.permute.xlu0 %981
        %983 = vrot.lane.b32.xlu0 %v481, 4
        %v984 = vpop.permute.xlu0 %983
        %985 = vrot.lane.b32.xlu0 %v482, 4
        %v986 = vpop.permute.xlu0 %985
        %987 = vrot.lane.b32.xlu0 %v483, 4
        %v988 = vpop.permute.xlu0 %987
        %989 = vrot.lane.b32.xlu0 %v484, 4
        %v990 = vpop.permute.xlu0 %989
        %991 = vrot.lane.b32.xlu0 %v485, 4
        %v992 = vpop.permute.xlu0 %991
        %993 = vrot.lane.b32.xlu0 %v486, 4
        %v994 = vpop.permute.xlu0 %993
        %995 = vrot.lane.b32.xlu0 %v487, 4
        %v996 = vpop.permute.xlu0 %995
        %997 = vrot.lane.b32.xlu0 %v488, 4
        %v998 = vpop.permute.xlu0 %997
        %999 = vrot.lane.b32.xlu0 %v489, 4
        %v1000 = vpop.permute.xlu0 %999
        %1001 = vrot.lane.b32.xlu0 %v490, 4
        %v1002 = vpop.permute.xlu0 %1001
        %1003 = vrot.lane.b32.xlu0 %v491, 4
        %v1004 = vpop.permute.xlu0 %1003
        %1005 = vrot.lane.b32.xlu0 %v492, 4
        %v1006 = vpop.permute.xlu0 %1005
        %1007 = vrot.lane.b32.xlu0 %v493, 4
        %v1008 = vpop.permute.xlu0 %1007
        %1009 = vrot.lane.b32.xlu0 %v494, 4
        %v1010 = vpop.permute.xlu0 %1009
        %1011 = vrot.lane.b32.xlu0 %v495, 4
        %v1012 = vpop.permute.xlu0 %1011
        %1013 = vrot.lane.b32.xlu0 %v496, 4
        %v1014 = vpop.permute.xlu0 %1013
        %1015 = vrot.lane.b32.xlu0 %v497, 4
        %v1016 = vpop.permute.xlu0 %1015
        %1017 = vrot.lane.b32.xlu0 %v498, 4
        %v1018 = vpop.permute.xlu0 %1017
        %1019 = vrot.lane.b32.xlu0 %v499, 4
        %v1020 = vpop.permute.xlu0 %1019
        %1021 = vrot.lane.b32.xlu0 %v500, 4
        %v1022 = vpop.permute.xlu0 %1021
        %1023 = vrot.lane.b32.xlu0 %v501, 4
        %v1024 = vpop.permute.xlu0 %1023
        %1025 = vrot.lane.b32.xlu0 %v502, 4
        %v1026 = vpop.permute.xlu0 %1025
        %1027 = vrot.lane.b32.xlu0 %v503, 4
        %v1028 = vpop.permute.xlu0 %1027
        %1029 = vrot.lane.b32.xlu0 %v504, 4
        %v1030 = vpop.permute.xlu0 %1029
        %1031 = vrot.lane.b32.xlu0 %v505, 4
        %v1032 = vpop.permute.xlu0 %1031
        %1033 = vrot.lane.b32.xlu0 %v506, 4
        %v1034 = vpop.permute.xlu0 %1033
        %1035 = vrot.lane.b32.xlu0 %v507, 4
        %v1036 = vpop.permute.xlu0 %1035
        %1037 = vrot.lane.b32.xlu0 %v508, 4
        %v1038 = vpop.permute.xlu0 %1037
        %1039 = vrot.lane.b32.xlu0 %v509, 4
        %v1040 = vpop.permute.xlu0 %1039
        %1041 = vrot.lane.b32.xlu0 %v510, 4
        %v1042 = vpop.permute.xlu0 %1041
        %1043 = vrot.lane.b32.xlu0 %v511, 4
        %v1044 = vpop.permute.xlu0 %1043
        %1045 = vrot.lane.b32.xlu0 %v512, 4
        %v1046 = vpop.permute.xlu0 %1045
        %1047 = vrot.lane.b32.xlu0 %v513, 4
        %v1048 = vpop.permute.xlu0 %1047
        %1049 = vrot.lane.b32.xlu0 %v514, 4
        %v1050 = vpop.permute.xlu0 %1049
        %1051 = vrot.lane.b32.xlu0 %v515, 4
        %v1052 = vpop.permute.xlu0 %1051
        %1053 = vrot.lane.b32.xlu0 %v516, 4
        %v1054 = vpop.permute.xlu0 %1053
        %1055 = vrot.lane.b32.xlu0 %v517, 4
        %v1056 = vpop.permute.xlu0 %1055
        %1057 = vrot.lane.b32.xlu0 %v518, 4
        %v1058 = vpop.permute.xlu0 %1057
        %1059 = vrot.lane.b32.xlu0 %v519, 4
        %v1060 = vpop.permute.xlu0 %1059
        %1061 = vrot.lane.b32.xlu0 %v520, 4
        %v1062 = vpop.permute.xlu0 %1061
        %1171 = vrot.lane.b32.xlu0 %v521, 8
        %v1172 = vpop.permute.xlu0 %1171
        %1173 = vrot.lane.b32.xlu0 %v522, 8
        %v1174 = vpop.permute.xlu0 %1173
        %1175 = vrot.lane.b32.xlu0 %v523, 8
        %v1176 = vpop.permute.xlu0 %1175
        %1177 = vrot.lane.b32.xlu0 %v524, 8
        %v1178 = vpop.permute.xlu0 %1177
        %1179 = vrot.lane.b32.xlu0 %v525, 8
        %v1180 = vpop.permute.xlu0 %1179
        %1181 = vrot.lane.b32.xlu0 %v526, 8
        %v1182 = vpop.permute.xlu0 %1181
        %1183 = vrot.lane.b32.xlu0 %v527, 8
        %v1184 = vpop.permute.xlu0 %1183
        %1185 = vrot.lane.b32.xlu0 %v528, 8
        %v1186 = vpop.permute.xlu0 %1185
        %1187 = vrot.lane.b32.xlu0 %v529, 8
        %v1188 = vpop.permute.xlu0 %1187
        %1189 = vrot.lane.b32.xlu0 %v530, 8
        %v1190 = vpop.permute.xlu0 %1189
        %1191 = vrot.lane.b32.xlu0 %v531, 8
        %v1192 = vpop.permute.xlu0 %1191
        %1193 = vrot.lane.b32.xlu0 %v532, 8
        %v1194 = vpop.permute.xlu0 %1193
        %1195 = vrot.lane.b32.xlu0 %v533, 8
        %v1196 = vpop.permute.xlu0 %1195
        %1197 = vrot.lane.b32.xlu0 %v534, 8
        %v1198 = vpop.permute.xlu0 %1197
        %1199 = vrot.lane.b32.xlu0 %v535, 8
        %v1200 = vpop.permute.xlu0 %1199
        %1201 = vrot.lane.b32.xlu0 %v536, 8
        %v1202 = vpop.permute.xlu0 %1201
        %1203 = vrot.lane.b32.xlu0 %v537, 8
        %v1204 = vpop.permute.xlu0 %1203
        %1205 = vrot.lane.b32.xlu0 %v538, 8
        %v1206 = vpop.permute.xlu0 %1205
        %1207 = vrot.lane.b32.xlu0 %v539, 8
        %v1208 = vpop.permute.xlu0 %1207
        %1209 = vrot.lane.b32.xlu0 %v540, 8
        %v1210 = vpop.permute.xlu0 %1209
        %1211 = vrot.lane.b32.xlu0 %v541, 8
        %v1212 = vpop.permute.xlu0 %1211
        %1213 = vrot.lane.b32.xlu0 %v542, 8
        %v1214 = vpop.permute.xlu0 %1213
        %1215 = vrot.lane.b32.xlu0 %v543, 8
        %v1216 = vpop.permute.xlu0 %1215
        %1217 = vrot.lane.b32.xlu0 %v544, 8
        %v1218 = vpop.permute.xlu0 %1217
        %1219 = vrot.lane.b32.xlu0 %v545, 8
        %v1220 = vpop.permute.xlu0 %1219
        %1221 = vrot.lane.b32.xlu0 %v546, 8
        %v1222 = vpop.permute.xlu0 %1221
        %1223 = vrot.lane.b32.xlu0 %v547, 8
        %v1224 = vpop.permute.xlu0 %1223
        %1225 = vrot.lane.b32.xlu0 %v548, 8
        %v1226 = vpop.permute.xlu0 %1225
        %1227 = vrot.lane.b32.xlu0 %v549, 8
        %v1228 = vpop.permute.xlu0 %1227
        %1229 = vrot.lane.b32.xlu0 %v550, 8
        %v1230 = vpop.permute.xlu0 %1229
        %1231 = vrot.lane.b32.xlu0 %v551, 8
        %v1232 = vpop.permute.xlu0 %1231
        %1233 = vrot.lane.b32.xlu0 %v552, 8
        %v1234 = vpop.permute.xlu0 %1233
        %1235 = vrot.lane.b32.xlu0 %v553, 8
        %v1236 = vpop.permute.xlu0 %1235
        %1237 = vrot.lane.b32.xlu0 %v554, 8
        %v1238 = vpop.permute.xlu0 %1237
        %1239 = vrot.lane.b32.xlu0 %v555, 8
        %v1240 = vpop.permute.xlu0 %1239
        %1241 = vrot.lane.b32.xlu0 %v556, 8
        %v1242 = vpop.permute.xlu0 %1241
        %1243 = vrot.lane.b32.xlu0 %v557, 8
        %v1244 = vpop.permute.xlu0 %1243
        %1245 = vrot.lane.b32.xlu0 %v558, 8
        %v1246 = vpop.permute.xlu0 %1245
        %1247 = vrot.lane.b32.xlu0 %v559, 8
        %v1248 = vpop.permute.xlu0 %1247
        %1249 = vrot.lane.b32.xlu0 %v560, 8
        %v1250 = vpop.permute.xlu0 %1249
        %1251 = vrot.lane.b32.xlu0 %v561, 8
        %v1252 = vpop.permute.xlu0 %1251
        %1253 = vrot.lane.b32.xlu0 %v562, 8
        %v1254 = vpop.permute.xlu0 %1253
        %1255 = vrot.lane.b32.xlu0 %v563, 8
        %v1256 = vpop.permute.xlu0 %1255
        %1257 = vrot.lane.b32.xlu0 %v564, 8
        %v1258 = vpop.permute.xlu0 %1257
        %1259 = vrot.lane.b32.xlu0 %v565, 8
        %v1260 = vpop.permute.xlu0 %1259
        %1261 = vrot.lane.b32.xlu0 %v566, 8
        %v1262 = vpop.permute.xlu0 %1261
        %1263 = vrot.lane.b32.xlu0 %v567, 8
        %v1264 = vpop.permute.xlu0 %1263
        %1265 = vrot.lane.b32.xlu0 %v568, 8
        %v1266 = vpop.permute.xlu0 %1265
        %1267 = vrot.lane.b32.xlu0 %v569, 8
        %v1268 = vpop.permute.xlu0 %1267
        %1269 = vrot.lane.b32.xlu0 %v570, 8
        %v1270 = vpop.permute.xlu0 %1269
        %1271 = vrot.lane.b32.xlu0 %v571, 8
        %v1272 = vpop.permute.xlu0 %1271
        %1273 = vrot.lane.b32.xlu0 %v572, 8
        %v1274 = vpop.permute.xlu0 %1273
        %1275 = vrot.lane.b32.xlu0 %v573, 8
        %v1276 = vpop.permute.xlu0 %1275
        %1277 = vrot.lane.b32.xlu0 %v574, 8
        %v1278 = vpop.permute.xlu0 %1277
        %1387 = vrot.lane.b32.xlu0 %v576, 12
        %v1388 = vpop.permute.xlu0 %1387
        %1389 = vrot.lane.b32.xlu0 %v577, 12
        %v1390 = vpop.permute.xlu0 %1389
        %1391 = vrot.lane.b32.xlu0 %v578, 12
        %v1392 = vpop.permute.xlu0 %1391
        %1393 = vrot.lane.b32.xlu0 %v579, 12
        %v1394 = vpop.permute.xlu0 %1393
        %1395 = vrot.lane.b32.xlu0 %v580, 12
        %v1396 = vpop.permute.xlu0 %1395
        %1397 = vrot.lane.b32.xlu0 %v581, 12
        %v1398 = vpop.permute.xlu0 %1397
        %1399 = vrot.lane.b32.xlu0 %v582, 12
        %v1400 = vpop.permute.xlu0 %1399
        %1401 = vrot.lane.b32.xlu0 %v583, 12
        %v1402 = vpop.permute.xlu0 %1401
        %1403 = vrot.lane.b32.xlu0 %v584, 12
        %v1404 = vpop.permute.xlu0 %1403
        %1405 = vrot.lane.b32.xlu0 %v585, 12
        %v1406 = vpop.permute.xlu0 %1405
        %1407 = vrot.lane.b32.xlu0 %v586, 12
        %v1408 = vpop.permute.xlu0 %1407
        %1409 = vrot.lane.b32.xlu0 %v587, 12
        %v1410 = vpop.permute.xlu0 %1409
        %1411 = vrot.lane.b32.xlu0 %v588, 12
        %v1412 = vpop.permute.xlu0 %1411
        %1413 = vrot.lane.b32.xlu0 %v589, 12
        %v1414 = vpop.permute.xlu0 %1413
        %1415 = vrot.lane.b32.xlu0 %v590, 12
        %v1416 = vpop.permute.xlu0 %1415
        %1417 = vrot.lane.b32.xlu0 %v591, 12
        %v1418 = vpop.permute.xlu0 %1417
        %1419 = vrot.lane.b32.xlu0 %v592, 12
        %v1420 = vpop.permute.xlu0 %1419
        %1421 = vrot.lane.b32.xlu0 %v593, 12
        %v1422 = vpop.permute.xlu0 %1421
        %1423 = vrot.lane.b32.xlu0 %v594, 12
        %v1424 = vpop.permute.xlu0 %1423
        %1425 = vrot.lane.b32.xlu0 %v595, 12
        %v1426 = vpop.permute.xlu0 %1425
        %1427 = vrot.lane.b32.xlu0 %v596, 12
        %v1428 = vpop.permute.xlu0 %1427
        %1429 = vrot.lane.b32.xlu0 %v597, 12
        %v1430 = vpop.permute.xlu0 %1429
        %1431 = vrot.lane.b32.xlu0 %v598, 12
        %v1432 = vpop.permute.xlu0 %1431
        %1433 = vrot.lane.b32.xlu0 %v599, 12
        %v1434 = vpop.permute.xlu0 %1433
        %1435 = vrot.lane.b32.xlu0 %v600, 12
        %v1436 = vpop.permute.xlu0 %1435
        %1437 = vrot.lane.b32.xlu0 %v601, 12
        %v1438 = vpop.permute.xlu0 %1437
        %1439 = vrot.lane.b32.xlu0 %v602, 12
        %v1440 = vpop.permute.xlu0 %1439
        %1441 = vrot.lane.b32.xlu0 %v603, 12
        %v1442 = vpop.permute.xlu0 %1441
        %1443 = vrot.lane.b32.xlu0 %v604, 12
        %v1444 = vpop.permute.xlu0 %1443
        %1445 = vrot.lane.b32.xlu0 %v605, 12
        %v1446 = vpop.permute.xlu0 %1445
        %1447 = vrot.lane.b32.xlu0 %v606, 12
        %v1448 = vpop.permute.xlu0 %1447
        %1449 = vrot.lane.b32.xlu0 %v607, 12
        %v1450 = vpop.permute.xlu0 %1449
        %1451 = vrot.lane.b32.xlu0 %v608, 12
        %v1452 = vpop.permute.xlu0 %1451
        %1453 = vrot.lane.b32.xlu0 %v609, 12
        %v1454 = vpop.permute.xlu0 %1453
        %1455 = vrot.lane.b32.xlu0 %v610, 12
        %v1456 = vpop.permute.xlu0 %1455
        %1457 = vrot.lane.b32.xlu0 %v611, 12
        %v1458 = vpop.permute.xlu0 %1457
        %1459 = vrot.lane.b32.xlu0 %v612, 12
        %v1460 = vpop.permute.xlu0 %1459
        %1461 = vrot.lane.b32.xlu0 %v613, 12
        %v1462 = vpop.permute.xlu0 %1461
        %1463 = vrot.lane.b32.xlu0 %v614, 12
        %v1464 = vpop.permute.xlu0 %1463
        %1465 = vrot.lane.b32.xlu0 %v615, 12
        %v1466 = vpop.permute.xlu0 %1465
        %1467 = vrot.lane.b32.xlu0 %v616, 12
        %v1468 = vpop.permute.xlu0 %1467
        %1469 = vrot.lane.b32.xlu0 %v617, 12
        %v1470 = vpop.permute.xlu0 %1469
        %1471 = vrot.lane.b32.xlu0 %v618, 12
        %v1472 = vpop.permute.xlu0 %1471
        %1473 = vrot.lane.b32.xlu0 %v619, 12
        %v1474 = vpop.permute.xlu0 %1473
        %1475 = vrot.lane.b32.xlu0 %v620, 12
        %v1476 = vpop.permute.xlu0 %1475
        %1477 = vrot.lane.b32.xlu0 %v621, 12
        %v1478 = vpop.permute.xlu0 %1477
        %1479 = vrot.lane.b32.xlu0 %v622, 12
        %v1480 = vpop.permute.xlu0 %1479
        %1481 = vrot.lane.b32.xlu0 %v623, 12
        %v1482 = vpop.permute.xlu0 %1481
        %1483 = vrot.lane.b32.xlu0 %v624, 12
        %v1484 = vpop.permute.xlu0 %1483
        %1485 = vrot.lane.b32.xlu0 %v625, 12
        %v1486 = vpop.permute.xlu0 %1485
        %1487 = vrot.lane.b32.xlu0 %v626, 12
        %v1488 = vpop.permute.xlu0 %1487
        %1489 = vrot.lane.b32.xlu0 %v627, 12
        %v1490 = vpop.permute.xlu0 %1489
        %1491 = vrot.lane.b32.xlu0 %v628, 12
        %v1492 = vpop.permute.xlu0 %1491
        %1493 = vrot.lane.b32.xlu0 %v629, 12
        %v1494 = vpop.permute.xlu0 %1493
        %1603 = vrot.lane.b32.xlu0 %v630, 16
        %v1604 = vpop.permute.xlu0 %1603
        %1605 = vrot.lane.b32.xlu0 %v631, 16
        %v1606 = vpop.permute.xlu0 %1605
        %1607 = vrot.lane.b32.xlu0 %v632, 16
        %v1608 = vpop.permute.xlu0 %1607
        %1609 = vrot.lane.b32.xlu0 %v633, 16
        %v1610 = vpop.permute.xlu0 %1609
        %1611 = vrot.lane.b32.xlu0 %v634, 16
        %v1612 = vpop.permute.xlu0 %1611
        %1613 = vrot.lane.b32.xlu0 %v635, 16
        %v1614 = vpop.permute.xlu0 %1613
        %1615 = vrot.lane.b32.xlu0 %v636, 16
        %v1616 = vpop.permute.xlu0 %1615
        %1617 = vrot.lane.b32.xlu0 %v637, 16
        %v1618 = vpop.permute.xlu0 %1617
        %1619 = vrot.lane.b32.xlu0 %v638, 16
        %v1620 = vpop.permute.xlu0 %1619
        %1621 = vrot.lane.b32.xlu0 %v639, 16
        %v1622 = vpop.permute.xlu0 %1621
        %1623 = vrot.lane.b32.xlu0 %v640, 16
        %v1624 = vpop.permute.xlu0 %1623
        %1625 = vrot.lane.b32.xlu0 %v641, 16
        %v1626 = vpop.permute.xlu0 %1625
        %1627 = vrot.lane.b32.xlu0 %v642, 16
        %v1628 = vpop.permute.xlu0 %1627
        %1629 = vrot.lane.b32.xlu0 %v643, 16
        %v1630 = vpop.permute.xlu0 %1629
        %1631 = vrot.lane.b32.xlu0 %v644, 16
        %v1632 = vpop.permute.xlu0 %1631
        %1633 = vrot.lane.b32.xlu0 %v645, 16
        %v1634 = vpop.permute.xlu0 %1633
        %1635 = vrot.lane.b32.xlu0 %v646, 16
        %v1636 = vpop.permute.xlu0 %1635
        %1637 = vrot.lane.b32.xlu0 %v647, 16
        %v1638 = vpop.permute.xlu0 %1637
        %1639 = vrot.lane.b32.xlu0 %v648, 16
        %v1640 = vpop.permute.xlu0 %1639
        %1641 = vrot.lane.b32.xlu0 %v649, 16
        %v1642 = vpop.permute.xlu0 %1641
        %1643 = vrot.lane.b32.xlu0 %v650, 16
        %v1644 = vpop.permute.xlu0 %1643
        %1645 = vrot.lane.b32.xlu0 %v651, 16
        %v1646 = vpop.permute.xlu0 %1645
        %1647 = vrot.lane.b32.xlu0 %v652, 16
        %v1648 = vpop.permute.xlu0 %1647
        %1649 = vrot.lane.b32.xlu0 %v653, 16
        %v1650 = vpop.permute.xlu0 %1649
        %1651 = vrot.lane.b32.xlu0 %v654, 16
        %v1652 = vpop.permute.xlu0 %1651
        %1653 = vrot.lane.b32.xlu0 %v655, 16
        %v1654 = vpop.permute.xlu0 %1653
        %1655 = vrot.lane.b32.xlu0 %v656, 16
        %v1656 = vpop.permute.xlu0 %1655
        %1657 = vrot.lane.b32.xlu0 %v657, 16
        %v1658 = vpop.permute.xlu0 %1657
        %1659 = vrot.lane.b32.xlu0 %v658, 16
        %v1660 = vpop.permute.xlu0 %1659
        %1661 = vrot.lane.b32.xlu0 %v659, 16
        %v1662 = vpop.permute.xlu0 %1661
        %1663 = vrot.lane.b32.xlu0 %v660, 16
        %v1664 = vpop.permute.xlu0 %1663
        %1665 = vrot.lane.b32.xlu0 %v661, 16
        %v1666 = vpop.permute.xlu0 %1665
        %1667 = vrot.lane.b32.xlu0 %v662, 16
        %v1668 = vpop.permute.xlu0 %1667
        %1669 = vrot.lane.b32.xlu0 %v663, 16
        %v1670 = vpop.permute.xlu0 %1669
        %1671 = vrot.lane.b32.xlu0 %v664, 16
        %v1672 = vpop.permute.xlu0 %1671
        %1673 = vrot.lane.b32.xlu0 %v665, 16
        %v1674 = vpop.permute.xlu0 %1673
        %1675 = vrot.lane.b32.xlu0 %v666, 16
        %v1676 = vpop.permute.xlu0 %1675
        %1677 = vrot.lane.b32.xlu0 %v667, 16
        %v1678 = vpop.permute.xlu0 %1677
        %1679 = vrot.lane.b32.xlu0 %v668, 16
        %v1680 = vpop.permute.xlu0 %1679
        %1681 = vrot.lane.b32.xlu0 %v669, 16
        %v1682 = vpop.permute.xlu0 %1681
        %1683 = vrot.lane.b32.xlu0 %v670, 16
        %v1684 = vpop.permute.xlu0 %1683
        %1685 = vrot.lane.b32.xlu0 %v671, 16
        %v1686 = vpop.permute.xlu0 %1685
        %1687 = vrot.lane.b32.xlu0 %v672, 16
        %v1688 = vpop.permute.xlu0 %1687
        %1689 = vrot.lane.b32.xlu0 %v673, 16
        %v1690 = vpop.permute.xlu0 %1689
        %1691 = vrot.lane.b32.xlu0 %v674, 16
        %v1692 = vpop.permute.xlu0 %1691
        %1693 = vrot.lane.b32.xlu0 %v675, 16
        %v1694 = vpop.permute.xlu0 %1693
        %1695 = vrot.lane.b32.xlu0 %v676, 16
        %v1696 = vpop.permute.xlu0 %1695
        %1697 = vrot.lane.b32.xlu0 %v677, 16
        %v1698 = vpop.permute.xlu0 %1697
        %1699 = vrot.lane.b32.xlu0 %v678, 16
        %v1700 = vpop.permute.xlu0 %1699
        %1701 = vrot.lane.b32.xlu0 %v679, 16
        %v1702 = vpop.permute.xlu0 %1701
        %1703 = vrot.lane.b32.xlu0 %v680, 16
        %v1704 = vpop.permute.xlu0 %1703
        %1705 = vrot.lane.b32.xlu0 %v681, 16
        %v1706 = vpop.permute.xlu0 %1705
        %1707 = vrot.lane.b32.xlu0 %v682, 16
        %v1708 = vpop.permute.xlu0 %1707
        %1709 = vrot.lane.b32.xlu0 %v683, 16
        %v1710 = vpop.permute.xlu0 %1709
        %1819 = vrot.lane.b32.xlu0 %v684, 20
        %v1820 = vpop.permute.xlu0 %1819
        %1821 = vrot.lane.b32.xlu0 %v685, 20
        %v1822 = vpop.permute.xlu0 %1821
        %1823 = vrot.lane.b32.xlu0 %v686, 20
        %v1824 = vpop.permute.xlu0 %1823
        %1825 = vrot.lane.b32.xlu0 %v687, 20
        %v1826 = vpop.permute.xlu0 %1825
        %1827 = vrot.lane.b32.xlu0 %v688, 20
        %v1828 = vpop.permute.xlu0 %1827
        %1829 = vrot.lane.b32.xlu0 %v689, 20
        %v1830 = vpop.permute.xlu0 %1829
        %1831 = vrot.lane.b32.xlu0 %v690, 20
        %v1832 = vpop.permute.xlu0 %1831
        %1833 = vrot.lane.b32.xlu0 %v691, 20
        %v1834 = vpop.permute.xlu0 %1833
        %1835 = vrot.lane.b32.xlu0 %v692, 20
        %v1836 = vpop.permute.xlu0 %1835
        %1837 = vrot.lane.b32.xlu0 %v693, 20
        %v1838 = vpop.permute.xlu0 %1837
        %1839 = vrot.lane.b32.xlu0 %v694, 20
        %v1840 = vpop.permute.xlu0 %1839
        %1841 = vrot.lane.b32.xlu0 %v695, 20
        %v1842 = vpop.permute.xlu0 %1841
        %1843 = vrot.lane.b32.xlu0 %v696, 20
        %v1844 = vpop.permute.xlu0 %1843
        %1845 = vrot.lane.b32.xlu0 %v697, 20
        %v1846 = vpop.permute.xlu0 %1845
        %1847 = vrot.lane.b32.xlu0 %v698, 20
        %v1848 = vpop.permute.xlu0 %1847
        %1849 = vrot.lane.b32.xlu0 %v699, 20
        %v1850 = vpop.permute.xlu0 %1849
        %1851 = vrot.lane.b32.xlu0 %v700, 20
        %v1852 = vpop.permute.xlu0 %1851
        %1853 = vrot.lane.b32.xlu0 %v701, 20
        %v1854 = vpop.permute.xlu0 %1853
        %1855 = vrot.lane.b32.xlu0 %v702, 20
        %v1856 = vpop.permute.xlu0 %1855
        %1857 = vrot.lane.b32.xlu0 %v703, 20
        %v1858 = vpop.permute.xlu0 %1857
        %1859 = vrot.lane.b32.xlu0 %v704, 20
        %v1860 = vpop.permute.xlu0 %1859
        %1861 = vrot.lane.b32.xlu0 %v705, 20
        %v1862 = vpop.permute.xlu0 %1861
        %1863 = vrot.lane.b32.xlu0 %v706, 20
        %v1864 = vpop.permute.xlu0 %1863
        %1865 = vrot.lane.b32.xlu0 %v707, 20
        %v1866 = vpop.permute.xlu0 %1865
        %1867 = vrot.lane.b32.xlu0 %v708, 20
        %v1868 = vpop.permute.xlu0 %1867
        %1869 = vrot.lane.b32.xlu0 %v709, 20
        %v1870 = vpop.permute.xlu0 %1869
        %1871 = vrot.lane.b32.xlu0 %v710, 20
        %v1872 = vpop.permute.xlu0 %1871
        %1873 = vrot.lane.b32.xlu0 %v711, 20
        %v1874 = vpop.permute.xlu0 %1873
        %1875 = vrot.lane.b32.xlu0 %v712, 20
        %v1876 = vpop.permute.xlu0 %1875
        %1877 = vrot.lane.b32.xlu0 %v713, 20
        %v1878 = vpop.permute.xlu0 %1877
        %1879 = vrot.lane.b32.xlu0 %v714, 20
        %v1880 = vpop.permute.xlu0 %1879
        %1881 = vrot.lane.b32.xlu0 %v715, 20
        %v1882 = vpop.permute.xlu0 %1881
        %1883 = vrot.lane.b32.xlu0 %v716, 20
        %v1884 = vpop.permute.xlu0 %1883
        %1885 = vrot.lane.b32.xlu0 %v717, 20
        %v1886 = vpop.permute.xlu0 %1885
        %1887 = vrot.lane.b32.xlu0 %v718, 20
        %v1888 = vpop.permute.xlu0 %1887
        %1889 = vrot.lane.b32.xlu0 %v719, 20
        %v1890 = vpop.permute.xlu0 %1889
        %1891 = vrot.lane.b32.xlu0 %v720, 20
        %v1892 = vpop.permute.xlu0 %1891
        %1893 = vrot.lane.b32.xlu0 %v721, 20
        %v1894 = vpop.permute.xlu0 %1893
        %1895 = vrot.lane.b32.xlu0 %v722, 20
        %v1896 = vpop.permute.xlu0 %1895
        %1897 = vrot.lane.b32.xlu0 %v723, 20
        %v1898 = vpop.permute.xlu0 %1897
        %1899 = vrot.lane.b32.xlu0 %v724, 20
        %v1900 = vpop.permute.xlu0 %1899
        %1901 = vrot.lane.b32.xlu0 %v725, 20
        %v1902 = vpop.permute.xlu0 %1901
        %1903 = vrot.lane.b32.xlu0 %v726, 20
        %v1904 = vpop.permute.xlu0 %1903
        %1905 = vrot.lane.b32.xlu0 %v727, 20
        %v1906 = vpop.permute.xlu0 %1905
        %1907 = vrot.lane.b32.xlu0 %v728, 20
        %v1908 = vpop.permute.xlu0 %1907
        %1909 = vrot.lane.b32.xlu0 %v729, 20
        %v1910 = vpop.permute.xlu0 %1909
        %1911 = vrot.lane.b32.xlu0 %v730, 20
        %v1912 = vpop.permute.xlu0 %1911
        %1913 = vrot.lane.b32.xlu0 %v731, 20
        %v1914 = vpop.permute.xlu0 %1913
        %1915 = vrot.lane.b32.xlu0 %v732, 20
        %v1916 = vpop.permute.xlu0 %1915
        %1917 = vrot.lane.b32.xlu0 %v733, 20
        %v1918 = vpop.permute.xlu0 %1917
        %1919 = vrot.lane.b32.xlu0 %v734, 20
        %v1920 = vpop.permute.xlu0 %1919
        %1921 = vrot.lane.b32.xlu0 %v735, 20
        %v1922 = vpop.permute.xlu0 %1921
        %1923 = vrot.lane.b32.xlu0 %v736, 20
        %v1924 = vpop.permute.xlu0 %1923
        %1925 = vrot.lane.b32.xlu0 %v737, 20
        %v1926 = vpop.permute.xlu0 %1925
        %2035 = vrot.lane.b32.xlu0 %v739, 24
        %v2036 = vpop.permute.xlu0 %2035
        %2037 = vrot.lane.b32.xlu0 %v740, 24
        %v2038 = vpop.permute.xlu0 %2037
        %2039 = vrot.lane.b32.xlu0 %v741, 24
        %v2040 = vpop.permute.xlu0 %2039
        %2041 = vrot.lane.b32.xlu0 %v742, 24
        %v2042 = vpop.permute.xlu0 %2041
        %2043 = vrot.lane.b32.xlu0 %v743, 24
        %v2044 = vpop.permute.xlu0 %2043
        %2045 = vrot.lane.b32.xlu0 %v744, 24
        %v2046 = vpop.permute.xlu0 %2045
        %2047 = vrot.lane.b32.xlu0 %v745, 24
        %v2048 = vpop.permute.xlu0 %2047
        %2049 = vrot.lane.b32.xlu0 %v746, 24
        %v2050 = vpop.permute.xlu0 %2049
        %2051 = vrot.lane.b32.xlu0 %v747, 24
        %v2052 = vpop.permute.xlu0 %2051
        %2053 = vrot.lane.b32.xlu0 %v748, 24
        %v2054 = vpop.permute.xlu0 %2053
        %2055 = vrot.lane.b32.xlu0 %v749, 24
        %v2056 = vpop.permute.xlu0 %2055
        %2057 = vrot.lane.b32.xlu0 %v750, 24
        %v2058 = vpop.permute.xlu0 %2057
        %2059 = vrot.lane.b32.xlu0 %v751, 24
        %v2060 = vpop.permute.xlu0 %2059
        %2061 = vrot.lane.b32.xlu0 %v752, 24
        %v2062 = vpop.permute.xlu0 %2061
        %2063 = vrot.lane.b32.xlu0 %v753, 24
        %v2064 = vpop.permute.xlu0 %2063
        %2065 = vrot.lane.b32.xlu0 %v754, 24
        %v2066 = vpop.permute.xlu0 %2065
        %2067 = vrot.lane.b32.xlu0 %v755, 24
        %v2068 = vpop.permute.xlu0 %2067
        %2069 = vrot.lane.b32.xlu0 %v756, 24
        %v2070 = vpop.permute.xlu0 %2069
        %2071 = vrot.lane.b32.xlu0 %v757, 24
        %v2072 = vpop.permute.xlu0 %2071
        %2073 = vrot.lane.b32.xlu0 %v758, 24
        %v2074 = vpop.permute.xlu0 %2073
        %2075 = vrot.lane.b32.xlu0 %v759, 24
        %v2076 = vpop.permute.xlu0 %2075
        %2077 = vrot.lane.b32.xlu0 %v760, 24
        %v2078 = vpop.permute.xlu0 %2077
        %2079 = vrot.lane.b32.xlu0 %v761, 24
        %v2080 = vpop.permute.xlu0 %2079
        %2081 = vrot.lane.b32.xlu0 %v762, 24
        %v2082 = vpop.permute.xlu0 %2081
        %2083 = vrot.lane.b32.xlu0 %v763, 24
        %v2084 = vpop.permute.xlu0 %2083
        %2085 = vrot.lane.b32.xlu0 %v764, 24
        %v2086 = vpop.permute.xlu0 %2085
        %2087 = vrot.lane.b32.xlu0 %v765, 24
        %v2088 = vpop.permute.xlu0 %2087
        %2089 = vrot.lane.b32.xlu0 %v766, 24
        %v2090 = vpop.permute.xlu0 %2089
        %2091 = vrot.lane.b32.xlu0 %v767, 24
        %v2092 = vpop.permute.xlu0 %2091
        %2093 = vrot.lane.b32.xlu0 %v768, 24
        %v2094 = vpop.permute.xlu0 %2093
        %2095 = vrot.lane.b32.xlu0 %v769, 24
        %v2096 = vpop.permute.xlu0 %2095
        %2097 = vrot.lane.b32.xlu0 %v770, 24
        %v2098 = vpop.permute.xlu0 %2097
        %2099 = vrot.lane.b32.xlu0 %v771, 24
        %v2100 = vpop.permute.xlu0 %2099
        %2101 = vrot.lane.b32.xlu0 %v772, 24
        %v2102 = vpop.permute.xlu0 %2101
        %2103 = vrot.lane.b32.xlu0 %v773, 24
        %v2104 = vpop.permute.xlu0 %2103
        %2105 = vrot.lane.b32.xlu0 %v774, 24
        %v2106 = vpop.permute.xlu0 %2105
        %2107 = vrot.lane.b32.xlu0 %v775, 24
        %v2108 = vpop.permute.xlu0 %2107
        %2109 = vrot.lane.b32.xlu0 %v776, 24
        %v2110 = vpop.permute.xlu0 %2109
        %2111 = vrot.lane.b32.xlu0 %v777, 24
        %v2112 = vpop.permute.xlu0 %2111
        %2113 = vrot.lane.b32.xlu0 %v778, 24
        %v2114 = vpop.permute.xlu0 %2113
        %2115 = vrot.lane.b32.xlu0 %v779, 24
        %v2116 = vpop.permute.xlu0 %2115
        %2117 = vrot.lane.b32.xlu0 %v780, 24
        %v2118 = vpop.permute.xlu0 %2117
        %2119 = vrot.lane.b32.xlu0 %v781, 24
        %v2120 = vpop.permute.xlu0 %2119
        %2121 = vrot.lane.b32.xlu0 %v782, 24
        %v2122 = vpop.permute.xlu0 %2121
        %2123 = vrot.lane.b32.xlu0 %v783, 24
        %v2124 = vpop.permute.xlu0 %2123
        %2125 = vrot.lane.b32.xlu0 %v784, 24
        %v2126 = vpop.permute.xlu0 %2125
        %2127 = vrot.lane.b32.xlu0 %v785, 24
        %v2128 = vpop.permute.xlu0 %2127
        %2129 = vrot.lane.b32.xlu0 %v786, 24
        %v2130 = vpop.permute.xlu0 %2129
        %2131 = vrot.lane.b32.xlu0 %v787, 24
        %v2132 = vpop.permute.xlu0 %2131
        %2133 = vrot.lane.b32.xlu0 %v788, 24
        %v2134 = vpop.permute.xlu0 %2133
        %2135 = vrot.lane.b32.xlu0 %v789, 24
        %v2136 = vpop.permute.xlu0 %2135
        %2137 = vrot.lane.b32.xlu0 %v790, 24
        %v2138 = vpop.permute.xlu0 %2137
        %2139 = vrot.lane.b32.xlu0 %v791, 24
        %v2140 = vpop.permute.xlu0 %2139
        %2141 = vrot.lane.b32.xlu0 %v792, 24
        %v2142 = vpop.permute.xlu0 %2141
        %2251 = vrot.lane.b32.xlu0 %v793, 28
        %v2252 = vpop.permute.xlu0 %2251
        %2253 = vrot.lane.b32.xlu0 %v794, 28
        %v2254 = vpop.permute.xlu0 %2253
        %2255 = vrot.lane.b32.xlu0 %v795, 28
        %v2256 = vpop.permute.xlu0 %2255
        %2257 = vrot.lane.b32.xlu0 %v796, 28
        %v2258 = vpop.permute.xlu0 %2257
        %2259 = vrot.lane.b32.xlu0 %v797, 28
        %v2260 = vpop.permute.xlu0 %2259
        %2261 = vrot.lane.b32.xlu0 %v798, 28
        %v2262 = vpop.permute.xlu0 %2261
        %2263 = vrot.lane.b32.xlu0 %v799, 28
        %v2264 = vpop.permute.xlu0 %2263
        %2265 = vrot.lane.b32.xlu0 %v800, 28
        %v2266 = vpop.permute.xlu0 %2265
        %2267 = vrot.lane.b32.xlu0 %v801, 28
        %v2268 = vpop.permute.xlu0 %2267
        %2269 = vrot.lane.b32.xlu0 %v802, 28
        %v2270 = vpop.permute.xlu0 %2269
        %2271 = vrot.lane.b32.xlu0 %v803, 28
        %v2272 = vpop.permute.xlu0 %2271
        %2273 = vrot.lane.b32.xlu0 %v804, 28
        %v2274 = vpop.permute.xlu0 %2273
        %2275 = vrot.lane.b32.xlu0 %v805, 28
        %v2276 = vpop.permute.xlu0 %2275
        %2277 = vrot.lane.b32.xlu0 %v806, 28
        %v2278 = vpop.permute.xlu0 %2277
        %2279 = vrot.lane.b32.xlu0 %v807, 28
        %v2280 = vpop.permute.xlu0 %2279
        %2281 = vrot.lane.b32.xlu0 %v808, 28
        %v2282 = vpop.permute.xlu0 %2281
        %2283 = vrot.lane.b32.xlu0 %v809, 28
        %v2284 = vpop.permute.xlu0 %2283
        %2285 = vrot.lane.b32.xlu0 %v810, 28
        %v2286 = vpop.permute.xlu0 %2285
        %2287 = vrot.lane.b32.xlu0 %v811, 28
        %v2288 = vpop.permute.xlu0 %2287
        %2289 = vrot.lane.b32.xlu0 %v812, 28
        %v2290 = vpop.permute.xlu0 %2289
        %2291 = vrot.lane.b32.xlu0 %v813, 28
        %v2292 = vpop.permute.xlu0 %2291
        %2293 = vrot.lane.b32.xlu0 %v814, 28
        %v2294 = vpop.permute.xlu0 %2293
        %2295 = vrot.lane.b32.xlu0 %v815, 28
        %v2296 = vpop.permute.xlu0 %2295
        %2297 = vrot.lane.b32.xlu0 %v816, 28
        %v2298 = vpop.permute.xlu0 %2297
        %2299 = vrot.lane.b32.xlu0 %v817, 28
        %v2300 = vpop.permute.xlu0 %2299
        %2301 = vrot.lane.b32.xlu0 %v818, 28
        %v2302 = vpop.permute.xlu0 %2301
        %2303 = vrot.lane.b32.xlu0 %v819, 28
        %v2304 = vpop.permute.xlu0 %2303
        %2305 = vrot.lane.b32.xlu0 %v820, 28
        %v2306 = vpop.permute.xlu0 %2305
        %2307 = vrot.lane.b32.xlu0 %v821, 28
        %v2308 = vpop.permute.xlu0 %2307
        %2309 = vrot.lane.b32.xlu0 %v822, 28
        %v2310 = vpop.permute.xlu0 %2309
        %2311 = vrot.lane.b32.xlu0 %v823, 28
        %v2312 = vpop.permute.xlu0 %2311
        %2313 = vrot.lane.b32.xlu0 %v824, 28
        %v2314 = vpop.permute.xlu0 %2313
        %2315 = vrot.lane.b32.xlu0 %v825, 28
        %v2316 = vpop.permute.xlu0 %2315
        %2317 = vrot.lane.b32.xlu0 %v826, 28
        %v2318 = vpop.permute.xlu0 %2317
        %2319 = vrot.lane.b32.xlu0 %v827, 28
        %v2320 = vpop.permute.xlu0 %2319
        %2321 = vrot.lane.b32.xlu0 %v828, 28
        %v2322 = vpop.permute.xlu0 %2321
        %2323 = vrot.lane.b32.xlu0 %v829, 28
        %v2324 = vpop.permute.xlu0 %2323
        %2325 = vrot.lane.b32.xlu0 %v830, 28
        %v2326 = vpop.permute.xlu0 %2325
        %2327 = vrot.lane.b32.xlu0 %v831, 28
        %v2328 = vpop.permute.xlu0 %2327
        %2329 = vrot.lane.b32.xlu0 %v832, 28
        %v2330 = vpop.permute.xlu0 %2329
        %2331 = vrot.lane.b32.xlu0 %v833, 28
        %v2332 = vpop.permute.xlu0 %2331
        %2333 = vrot.lane.b32.xlu0 %v834, 28
        %v2334 = vpop.permute.xlu0 %2333
        %2335 = vrot.lane.b32.xlu0 %v835, 28
        %v2336 = vpop.permute.xlu0 %2335
        %2337 = vrot.lane.b32.xlu0 %v836, 28
        %v2338 = vpop.permute.xlu0 %2337
        %2339 = vrot.lane.b32.xlu0 %v837, 28
        %v2340 = vpop.permute.xlu0 %2339
        %2341 = vrot.lane.b32.xlu0 %v838, 28
        %v2342 = vpop.permute.xlu0 %2341
        %2343 = vrot.lane.b32.xlu0 %v839, 28
        %v2344 = vpop.permute.xlu0 %2343
        %2345 = vrot.lane.b32.xlu0 %v840, 28
        %v2346 = vpop.permute.xlu0 %2345
        %2347 = vrot.lane.b32.xlu0 %v841, 28
        %v2348 = vpop.permute.xlu0 %2347
        %2349 = vrot.lane.b32.xlu0 %v842, 28
        %v2350 = vpop.permute.xlu0 %2349
        %2351 = vrot.lane.b32.xlu0 %v843, 28
        %v2352 = vpop.permute.xlu0 %2351
        %2353 = vrot.lane.b32.xlu0 %v844, 28
        %v2354 = vpop.permute.xlu0 %2353
        %2355 = vrot.lane.b32.xlu0 %v845, 28
        %v2356 = vpop.permute.xlu0 %2355
        %2357 = vrot.lane.b32.xlu0 %v846, 28
        %v2358 = vpop.permute.xlu0 %2357
        %2467 = vrot.lane.b32.xlu0 %v847, 32
        %v2468 = vpop.permute.xlu0 %2467
        %2469 = vrot.lane.b32.xlu0 %v848, 32
        %v2470 = vpop.permute.xlu0 %2469
        %2471 = vrot.lane.b32.xlu0 %v849, 32
        %v2472 = vpop.permute.xlu0 %2471
        %2473 = vrot.lane.b32.xlu0 %v850, 32
        %v2474 = vpop.permute.xlu0 %2473
        %2475 = vrot.lane.b32.xlu0 %v851, 32
        %v2476 = vpop.permute.xlu0 %2475
        %2477 = vrot.lane.b32.xlu0 %v852, 32
        %v2478 = vpop.permute.xlu0 %2477
        %2479 = vrot.lane.b32.xlu0 %v853, 32
        %v2480 = vpop.permute.xlu0 %2479
        %2481 = vrot.lane.b32.xlu0 %v854, 32
        %v2482 = vpop.permute.xlu0 %2481
        %2483 = vrot.lane.b32.xlu0 %v855, 32
        %v2484 = vpop.permute.xlu0 %2483
        %2485 = vrot.lane.b32.xlu0 %v856, 32
        %v2486 = vpop.permute.xlu0 %2485
        %2487 = vrot.lane.b32.xlu0 %v857, 32
        %v2488 = vpop.permute.xlu0 %2487
        %2489 = vrot.lane.b32.xlu0 %v858, 32
        %v2490 = vpop.permute.xlu0 %2489
        %2491 = vrot.lane.b32.xlu0 %v859, 32
        %v2492 = vpop.permute.xlu0 %2491
        %2493 = vrot.lane.b32.xlu0 %v860, 32
        %v2494 = vpop.permute.xlu0 %2493
        %2495 = vrot.lane.b32.xlu0 %v861, 32
        %v2496 = vpop.permute.xlu0 %2495
        %2497 = vrot.lane.b32.xlu0 %v862, 32
        %v2498 = vpop.permute.xlu0 %2497
        %2499 = vrot.lane.b32.xlu0 %v863, 32
        %v2500 = vpop.permute.xlu0 %2499
        %2501 = vrot.lane.b32.xlu0 %v864, 32
        %v2502 = vpop.permute.xlu0 %2501
        %2503 = vrot.lane.b32.xlu0 %v865, 32
        %v2504 = vpop.permute.xlu0 %2503
        %2505 = vrot.lane.b32.xlu0 %v866, 32
        %v2506 = vpop.permute.xlu0 %2505
        %2507 = vrot.lane.b32.xlu0 %v867, 32
        %v2508 = vpop.permute.xlu0 %2507
        %2509 = vrot.lane.b32.xlu0 %v868, 32
        %v2510 = vpop.permute.xlu0 %2509
        %2511 = vrot.lane.b32.xlu0 %v869, 32
        %v2512 = vpop.permute.xlu0 %2511
        %2513 = vrot.lane.b32.xlu0 %v870, 32
        %v2514 = vpop.permute.xlu0 %2513
        %2515 = vrot.lane.b32.xlu0 %v871, 32
        %v2516 = vpop.permute.xlu0 %2515
        %2517 = vrot.lane.b32.xlu0 %v872, 32
        %v2518 = vpop.permute.xlu0 %2517
        %2519 = vrot.lane.b32.xlu0 %v873, 32
        %v2520 = vpop.permute.xlu0 %2519
        %2521 = vrot.lane.b32.xlu0 %v874, 32
        %v2522 = vpop.permute.xlu0 %2521
        %2523 = vrot.lane.b32.xlu0 %v875, 32
        %v2524 = vpop.permute.xlu0 %2523
        %2525 = vrot.lane.b32.xlu0 %v876, 32
        %v2526 = vpop.permute.xlu0 %2525
        %2527 = vrot.lane.b32.xlu0 %v877, 32
        %v2528 = vpop.permute.xlu0 %2527
        %2529 = vrot.lane.b32.xlu0 %v878, 32
        %v2530 = vpop.permute.xlu0 %2529
        %2531 = vrot.lane.b32.xlu0 %v879, 32
        %v2532 = vpop.permute.xlu0 %2531
        %2533 = vrot.lane.b32.xlu0 %v880, 32
        %v2534 = vpop.permute.xlu0 %2533
        %2535 = vrot.lane.b32.xlu0 %v881, 32
        %v2536 = vpop.permute.xlu0 %2535
        %2537 = vrot.lane.b32.xlu0 %v882, 32
        %v2538 = vpop.permute.xlu0 %2537
        %2539 = vrot.lane.b32.xlu0 %v883, 32
        %v2540 = vpop.permute.xlu0 %2539
        %2541 = vrot.lane.b32.xlu0 %v884, 32
        %v2542 = vpop.permute.xlu0 %2541
        %2543 = vrot.lane.b32.xlu0 %v885, 32
        %v2544 = vpop.permute.xlu0 %2543
        %2545 = vrot.lane.b32.xlu0 %v886, 32
        %v2546 = vpop.permute.xlu0 %2545
        %2547 = vrot.lane.b32.xlu0 %v887, 32
        %v2548 = vpop.permute.xlu0 %2547
        %2549 = vrot.lane.b32.xlu0 %v888, 32
        %v2550 = vpop.permute.xlu0 %2549
        %2551 = vrot.lane.b32.xlu0 %v889, 32
        %v2552 = vpop.permute.xlu0 %2551
        %2553 = vrot.lane.b32.xlu0 %v890, 32
        %v2554 = vpop.permute.xlu0 %2553
        %2555 = vrot.lane.b32.xlu0 %v891, 32
        %v2556 = vpop.permute.xlu0 %2555
        %2557 = vrot.lane.b32.xlu0 %v892, 32
        %v2558 = vpop.permute.xlu0 %2557
        %2559 = vrot.lane.b32.xlu0 %v893, 32
        %v2560 = vpop.permute.xlu0 %2559
        %2561 = vrot.lane.b32.xlu0 %v894, 32
        %v2562 = vpop.permute.xlu0 %2561
        %2563 = vrot.lane.b32.xlu0 %v895, 32
        %v2564 = vpop.permute.xlu0 %2563
        %2565 = vrot.lane.b32.xlu0 %v896, 32
        %v2566 = vpop.permute.xlu0 %2565
        %2567 = vrot.lane.b32.xlu0 %v897, 32
        %v2568 = vpop.permute.xlu0 %2567
        %2569 = vrot.lane.b32.xlu0 %v898, 32
        %v2570 = vpop.permute.xlu0 %2569
        %2571 = vrot.lane.b32.xlu0 %v899, 32
        %v2572 = vpop.permute.xlu0 %2571
        %2573 = vrot.lane.b32.xlu0 %v900, 32
        %v2574 = vpop.permute.xlu0 %2573
        %vm2629 = vcmask 31744
        %v2630 = vsel %vm2629, %v413, %v956
        %v2631 = vsel %vm2629, %v414, %v958
        %v2632 = vsel %vm2629, %v415, %v960
        %v2633 = vsel %vm2629, %v416, %v962
        %v2634 = vsel %vm2629, %v417, %v964
        %v2635 = vsel %vm2629, %v418, %v966
        %v2636 = vsel %vm2629, %v419, %v968
        %v2637 = vsel %vm2629, %v420, %v970
        %v2638 = vsel %vm2629, %v421, %v972
        %v2639 = vsel %vm2629, %v422, %v974
        %v2640 = vsel %vm2629, %v423, %v976
        %v2641 = vsel %vm2629, %v424, %v978
        %v2642 = vsel %vm2629, %v425, %v980
        %v2643 = vsel %vm2629, %v426, %v982
        %v2644 = vsel %vm2629, %v427, %v984
        %v2645 = vsel %vm2629, %v428, %v986
        %v2646 = vsel %vm2629, %v429, %v988
        %v2647 = vsel %vm2629, %v430, %v990
        %v2648 = vsel %vm2629, %v431, %v992
        %v2649 = vsel %vm2629, %v432, %v994
        %v2650 = vsel %vm2629, %v433, %v996
        %v2651 = vsel %vm2629, %v434, %v998
        %v2652 = vsel %vm2629, %v435, %v1000
        %v2653 = vsel %vm2629, %v436, %v1002
        %v2654 = vsel %vm2629, %v437, %v1004
        %v2655 = vsel %vm2629, %v438, %v1006
        %v2656 = vsel %vm2629, %v439, %v1008
        %v2657 = vsel %vm2629, %v440, %v1010
        %v2658 = vsel %vm2629, %v441, %v1012
        %v2659 = vsel %vm2629, %v442, %v1014
        %v2660 = vsel %vm2629, %v443, %v1016
        %v2661 = vsel %vm2629, %v444, %v1018
        %v2662 = vsel %vm2629, %v445, %v1020
        %v2663 = vsel %vm2629, %v446, %v1022
        %v2664 = vsel %vm2629, %v447, %v1024
        %v2665 = vsel %vm2629, %v448, %v1026
        %v2666 = vsel %vm2629, %v449, %v1028
        %v2667 = vsel %vm2629, %v450, %v1030
        %v2668 = vsel %vm2629, %v451, %v1032
        %v2669 = vsel %vm2629, %v452, %v1034
        %v2670 = vsel %vm2629, %v453, %v1036
        %v2671 = vsel %vm2629, %v454, %v1038
        %v2672 = vsel %vm2629, %v455, %v1040
        %v2673 = vsel %vm2629, %v456, %v1042
        %v2674 = vsel %vm2629, %v457, %v1044
        %v2675 = vsel %vm2629, %v458, %v1046
        %v2676 = vsel %vm2629, %v459, %v1048
        %v2677 = vsel %vm2629, %v460, %v1050
        %v2678 = vsel %vm2629, %v461, %v1052
        %v2679 = vsel %vm2629, %v462, %v1054
        %v2680 = vsel %vm2629, %v463, %v1056
        %v2681 = vsel %vm2629, %v464, %v1058
        %v2682 = vsel %vm2629, %v465, %v1060
        %v2683 = vsel %vm2629, %v466, %v1062
        %vm2684 = vcmask 64512
        %v2685 = vsel %vm2684, %v2630, %v1172
        %v2686 = vsel %vm2684, %v2631, %v1174
        %v2687 = vsel %vm2684, %v2632, %v1176
        %v2688 = vsel %vm2684, %v2633, %v1178
        %v2689 = vsel %vm2684, %v2634, %v1180
        %v2690 = vsel %vm2684, %v2635, %v1182
        %v2691 = vsel %vm2684, %v2636, %v1184
        %v2692 = vsel %vm2684, %v2637, %v1186
        %v2693 = vsel %vm2684, %v2638, %v1188
        %v2694 = vsel %vm2684, %v2639, %v1190
        %v2695 = vsel %vm2684, %v2640, %v1192
        %v2696 = vsel %vm2684, %v2641, %v1194
        %v2697 = vsel %vm2684, %v2642, %v1196
        %v2698 = vsel %vm2684, %v2643, %v1198
        %v2699 = vsel %vm2684, %v2644, %v1200
        %v2700 = vsel %vm2684, %v2645, %v1202
        %v2701 = vsel %vm2684, %v2646, %v1204
        %v2702 = vsel %vm2684, %v2647, %v1206
        %v2703 = vsel %vm2684, %v2648, %v1208
        %v2704 = vsel %vm2684, %v2649, %v1210
        %v2705 = vsel %vm2684, %v2650, %v1212
        %v2706 = vsel %vm2684, %v2651, %v1214
        %v2707 = vsel %vm2684, %v2652, %v1216
        %v2708 = vsel %vm2684, %v2653, %v1218
        %v2709 = vsel %vm2684, %v2654, %v1220
        %v2710 = vsel %vm2684, %v2655, %v1222
        %v2711 = vsel %vm2684, %v2656, %v1224
        %v2712 = vsel %vm2684, %v2657, %v1226
        %v2713 = vsel %vm2684, %v2658, %v1228
        %v2714 = vsel %vm2684, %v2659, %v1230
        %v2715 = vsel %vm2684, %v2660, %v1232
        %v2716 = vsel %vm2684, %v2661, %v1234
        %v2717 = vsel %vm2684, %v2662, %v1236
        %v2718 = vsel %vm2684, %v2663, %v1238
        %v2719 = vsel %vm2684, %v2664, %v1240
        %v2720 = vsel %vm2684, %v2665, %v1242
        %v2721 = vsel %vm2684, %v2666, %v1244
        %v2722 = vsel %vm2684, %v2667, %v1246
        %v2723 = vsel %vm2684, %v2668, %v1248
        %v2724 = vsel %vm2684, %v2669, %v1250
        %v2725 = vsel %vm2684, %v2670, %v1252
        %v2726 = vsel %vm2684, %v2671, %v1254
        %v2727 = vsel %vm2684, %v2672, %v1256
        %v2728 = vsel %vm2684, %v2673, %v1258
        %v2729 = vsel %vm2684, %v2674, %v1260
        %v2730 = vsel %vm2684, %v2675, %v1262
        %v2731 = vsel %vm2684, %v2676, %v1264
        %v2732 = vsel %vm2684, %v2677, %v1266
        %v2733 = vsel %vm2684, %v2678, %v1268
        %v2734 = vsel %vm2684, %v2679, %v1270
        %v2735 = vsel %vm2684, %v2680, %v1272
        %v2736 = vsel %vm2684, %v2681, %v1274
        %v2737 = vsel %vm2684, %v2682, %v1276
        %v2738 = vsel %vm2684, %v2683, %v1278
        %vm2739 = vcmask 97280
        %v2740 = vsel %vm2739, %v2685, %v1388
        %v2741 = vsel %vm2739, %v2686, %v1390
        %v2742 = vsel %vm2739, %v2687, %v1392
        %v2743 = vsel %vm2739, %v2688, %v1394
        %v2744 = vsel %vm2739, %v2689, %v1396
        %v2745 = vsel %vm2739, %v2690, %v1398
        %v2746 = vsel %vm2739, %v2691, %v1400
        %v2747 = vsel %vm2739, %v2692, %v1402
        %v2748 = vsel %vm2739, %v2693, %v1404
        %v2749 = vsel %vm2739, %v2694, %v1406
        %v2750 = vsel %vm2739, %v2695, %v1408
        %v2751 = vsel %vm2739, %v2696, %v1410
        %v2752 = vsel %vm2739, %v2697, %v1412
        %v2753 = vsel %vm2739, %v2698, %v1414
        %v2754 = vsel %vm2739, %v2699, %v1416
        %v2755 = vsel %vm2739, %v2700, %v1418
        %v2756 = vsel %vm2739, %v2701, %v1420
        %v2757 = vsel %vm2739, %v2702, %v1422
        %v2758 = vsel %vm2739, %v2703, %v1424
        %v2759 = vsel %vm2739, %v2704, %v1426
        %v2760 = vsel %vm2739, %v2705, %v1428
        %v2761 = vsel %vm2739, %v2706, %v1430
        %v2762 = vsel %vm2739, %v2707, %v1432
        %v2763 = vsel %vm2739, %v2708, %v1434
        %v2764 = vsel %vm2739, %v2709, %v1436
        %v2765 = vsel %vm2739, %v2710, %v1438
        %v2766 = vsel %vm2739, %v2711, %v1440
        %v2767 = vsel %vm2739, %v2712, %v1442
        %v2768 = vsel %vm2739, %v2713, %v1444
        %v2769 = vsel %vm2739, %v2714, %v1446
        %v2770 = vsel %vm2739, %v2715, %v1448
        %v2771 = vsel %vm2739, %v2716, %v1450
        %v2772 = vsel %vm2739, %v2717, %v1452
        %v2773 = vsel %vm2739, %v2718, %v1454
        %v2774 = vsel %vm2739, %v2719, %v1456
        %v2775 = vsel %vm2739, %v2720, %v1458
        %v2776 = vsel %vm2739, %v2721, %v1460
        %v2777 = vsel %vm2739, %v2722, %v1462
        %v2778 = vsel %vm2739, %v2723, %v1464
        %v2779 = vsel %vm2739, %v2724, %v1466
        %v2780 = vsel %vm2739, %v2725, %v1468
        %v2781 = vsel %vm2739, %v2726, %v1470
        %v2782 = vsel %vm2739, %v2727, %v1472
        %v2783 = vsel %vm2739, %v2728, %v1474
        %v2784 = vsel %vm2739, %v2729, %v1476
        %v2785 = vsel %vm2739, %v2730, %v1478
        %v2786 = vsel %vm2739, %v2731, %v1480
        %v2787 = vsel %vm2739, %v2732, %v1482
        %v2788 = vsel %vm2739, %v2733, %v1484
        %v2789 = vsel %vm2739, %v2734, %v1486
        %v2790 = vsel %vm2739, %v2735, %v1488
        %v2791 = vsel %vm2739, %v2736, %v1490
        %v2792 = vsel %vm2739, %v2737, %v1492
        %v2793 = vsel %vm2739, %v2738, %v1494
        %vm2794 = vcmask 130048
        %v2795 = vsel %vm2794, %v2740, %v1604
        %v2796 = vsel %vm2794, %v2741, %v1606
        %v2797 = vsel %vm2794, %v2742, %v1608
        %v2798 = vsel %vm2794, %v2743, %v1610
        %v2799 = vsel %vm2794, %v2744, %v1612
        %v2800 = vsel %vm2794, %v2745, %v1614
        %v2801 = vsel %vm2794, %v2746, %v1616
        %v2802 = vsel %vm2794, %v2747, %v1618
        %v2803 = vsel %vm2794, %v2748, %v1620
        %v2804 = vsel %vm2794, %v2749, %v1622
        %v2805 = vsel %vm2794, %v2750, %v1624
        %v2806 = vsel %vm2794, %v2751, %v1626
        %v2807 = vsel %vm2794, %v2752, %v1628
        %v2808 = vsel %vm2794, %v2753, %v1630
        %v2809 = vsel %vm2794, %v2754, %v1632
        %v2810 = vsel %vm2794, %v2755, %v1634
        %v2811 = vsel %vm2794, %v2756, %v1636
        %v2812 = vsel %vm2794, %v2757, %v1638
        %v2813 = vsel %vm2794, %v2758, %v1640
        %v2814 = vsel %vm2794, %v2759, %v1642
        %v2815 = vsel %vm2794, %v2760, %v1644
        %v2816 = vsel %vm2794, %v2761, %v1646
        %v2817 = vsel %vm2794, %v2762, %v1648
        %v2818 = vsel %vm2794, %v2763, %v1650
        %v2819 = vsel %vm2794, %v2764, %v1652
        %v2820 = vsel %vm2794, %v2765, %v1654
        %v2821 = vsel %vm2794, %v2766, %v1656
        %v2822 = vsel %vm2794, %v2767, %v1658
        %v2823 = vsel %vm2794, %v2768, %v1660
        %v2824 = vsel %vm2794, %v2769, %v1662
        %v2825 = vsel %vm2794, %v2770, %v1664
        %v2826 = vsel %vm2794, %v2771, %v1666
        %v2827 = vsel %vm2794, %v2772, %v1668
        %v2828 = vsel %vm2794, %v2773, %v1670
        %v2829 = vsel %vm2794, %v2774, %v1672
        %v2830 = vsel %vm2794, %v2775, %v1674
        %v2831 = vsel %vm2794, %v2776, %v1676
        %v2832 = vsel %vm2794, %v2777, %v1678
        %v2833 = vsel %vm2794, %v2778, %v1680
        %v2834 = vsel %vm2794, %v2779, %v1682
        %v2835 = vsel %vm2794, %v2780, %v1684
        %v2836 = vsel %vm2794, %v2781, %v1686
        %v2837 = vsel %vm2794, %v2782, %v1688
        %v2838 = vsel %vm2794, %v2783, %v1690
        %v2839 = vsel %vm2794, %v2784, %v1692
        %v2840 = vsel %vm2794, %v2785, %v1694
        %v2841 = vsel %vm2794, %v2786, %v1696
        %v2842 = vsel %vm2794, %v2787, %v1698
        %v2843 = vsel %vm2794, %v2788, %v1700
        %v2844 = vsel %vm2794, %v2789, %v1702
        %v2845 = vsel %vm2794, %v2790, %v1704
        %v2846 = vsel %vm2794, %v2791, %v1706
        %v2847 = vsel %vm2794, %v2792, %v1708
        %v2848 = vsel %vm2794, %v2793, %v1710
        %vm2849 = vcmask 162816
        %v2850 = vsel %vm2849, %v2795, %v1820
        %v2851 = vsel %vm2849, %v2796, %v1822
        %v2852 = vsel %vm2849, %v2797, %v1824
        %v2853 = vsel %vm2849, %v2798, %v1826
        %v2854 = vsel %vm2849, %v2799, %v1828
        %v2855 = vsel %vm2849, %v2800, %v1830
        %v2856 = vsel %vm2849, %v2801, %v1832
        %v2857 = vsel %vm2849, %v2802, %v1834
        %v2858 = vsel %vm2849, %v2803, %v1836
        %v2859 = vsel %vm2849, %v2804, %v1838
        %v2860 = vsel %vm2849, %v2805, %v1840
        %v2861 = vsel %vm2849, %v2806, %v1842
        %v2862 = vsel %vm2849, %v2807, %v1844
        %v2863 = vsel %vm2849, %v2808, %v1846
        %v2864 = vsel %vm2849, %v2809, %v1848
        %v2865 = vsel %vm2849, %v2810, %v1850
        %v2866 = vsel %vm2849, %v2811, %v1852
        %v2867 = vsel %vm2849, %v2812, %v1854
        %v2868 = vsel %vm2849, %v2813, %v1856
        %v2869 = vsel %vm2849, %v2814, %v1858
        %v2870 = vsel %vm2849, %v2815, %v1860
        %v2871 = vsel %vm2849, %v2816, %v1862
        %v2872 = vsel %vm2849, %v2817, %v1864
        %v2873 = vsel %vm2849, %v2818, %v1866
        %v2874 = vsel %vm2849, %v2819, %v1868
        %v2875 = vsel %vm2849, %v2820, %v1870
        %v2876 = vsel %vm2849, %v2821, %v1872
        %v2877 = vsel %vm2849, %v2822, %v1874
        %v2878 = vsel %vm2849, %v2823, %v1876
        %v2879 = vsel %vm2849, %v2824, %v1878
        %v2880 = vsel %vm2849, %v2825, %v1880
        %v2881 = vsel %vm2849, %v2826, %v1882
        %v2882 = vsel %vm2849, %v2827, %v1884
        %v2883 = vsel %vm2849, %v2828, %v1886
        %v2884 = vsel %vm2849, %v2829, %v1888
        %v2885 = vsel %vm2849, %v2830, %v1890
        %v2886 = vsel %vm2849, %v2831, %v1892
        %v2887 = vsel %vm2849, %v2832, %v1894
        %v2888 = vsel %vm2849, %v2833, %v1896
        %v2889 = vsel %vm2849, %v2834, %v1898
        %v2890 = vsel %vm2849, %v2835, %v1900
        %v2891 = vsel %vm2849, %v2836, %v1902
        %v2892 = vsel %vm2849, %v2837, %v1904
        %v2893 = vsel %vm2849, %v2838, %v1906
        %v2894 = vsel %vm2849, %v2839, %v1908
        %v2895 = vsel %vm2849, %v2840, %v1910
        %v2896 = vsel %vm2849, %v2841, %v1912
        %v2897 = vsel %vm2849, %v2842, %v1914
        %v2898 = vsel %vm2849, %v2843, %v1916
        %v2899 = vsel %vm2849, %v2844, %v1918
        %v2900 = vsel %vm2849, %v2845, %v1920
        %v2901 = vsel %vm2849, %v2846, %v1922
        %v2902 = vsel %vm2849, %v2847, %v1924
        %v2903 = vsel %vm2849, %v2848, %v1926
        %vm2904 = vcmask 195584
        %v2905 = vsel %vm2904, %v2850, %v2036
        %v2906 = vsel %vm2904, %v2851, %v2038
        %v2907 = vsel %vm2904, %v2852, %v2040
        %v2908 = vsel %vm2904, %v2853, %v2042
        %v2909 = vsel %vm2904, %v2854, %v2044
        %v2910 = vsel %vm2904, %v2855, %v2046
        %v2911 = vsel %vm2904, %v2856, %v2048
        %v2912 = vsel %vm2904, %v2857, %v2050
        %v2913 = vsel %vm2904, %v2858, %v2052
        %v2914 = vsel %vm2904, %v2859, %v2054
        %v2915 = vsel %vm2904, %v2860, %v2056
        %v2916 = vsel %vm2904, %v2861, %v2058
        %v2917 = vsel %vm2904, %v2862, %v2060
        %v2918 = vsel %vm2904, %v2863, %v2062
        %v2919 = vsel %vm2904, %v2864, %v2064
        %v2920 = vsel %vm2904, %v2865, %v2066
        %v2921 = vsel %vm2904, %v2866, %v2068
        %v2922 = vsel %vm2904, %v2867, %v2070
        %v2923 = vsel %vm2904, %v2868, %v2072
        %v2924 = vsel %vm2904, %v2869, %v2074
        %v2925 = vsel %vm2904, %v2870, %v2076
        %v2926 = vsel %vm2904, %v2871, %v2078
        %v2927 = vsel %vm2904, %v2872, %v2080
        %v2928 = vsel %vm2904, %v2873, %v2082
        %v2929 = vsel %vm2904, %v2874, %v2084
        %v2930 = vsel %vm2904, %v2875, %v2086
        %v2931 = vsel %vm2904, %v2876, %v2088
        %v2932 = vsel %vm2904, %v2877, %v2090
        %v2933 = vsel %vm2904, %v2878, %v2092
        %v2934 = vsel %vm2904, %v2879, %v2094
        %v2935 = vsel %vm2904, %v2880, %v2096
        %v2936 = vsel %vm2904, %v2881, %v2098
        %v2937 = vsel %vm2904, %v2882, %v2100
        %v2938 = vsel %vm2904, %v2883, %v2102
        %v2939 = vsel %vm2904, %v2884, %v2104
        %v2940 = vsel %vm2904, %v2885, %v2106
        %v2941 = vsel %vm2904, %v2886, %v2108
        %v2942 = vsel %vm2904, %v2887, %v2110
        %v2943 = vsel %vm2904, %v2888, %v2112
        %v2944 = vsel %vm2904, %v2889, %v2114
        %v2945 = vsel %vm2904, %v2890, %v2116
        %v2946 = vsel %vm2904, %v2891, %v2118
        %v2947 = vsel %vm2904, %v2892, %v2120
        %v2948 = vsel %vm2904, %v2893, %v2122
        %v2949 = vsel %vm2904, %v2894, %v2124
        %v2950 = vsel %vm2904, %v2895, %v2126
        %v2951 = vsel %vm2904, %v2896, %v2128
        %v2952 = vsel %vm2904, %v2897, %v2130
        %v2953 = vsel %vm2904, %v2898, %v2132
        %v2954 = vsel %vm2904, %v2899, %v2134
        %v2955 = vsel %vm2904, %v2900, %v2136
        %v2956 = vsel %vm2904, %v2901, %v2138
        %v2957 = vsel %vm2904, %v2902, %v2140
        %v2958 = vsel %vm2904, %v2903, %v2142
        %vm2959 = vcmask 228352
        %v2960 = vsel %vm2959, %v2905, %v2252
        %v2961 = vsel %vm2959, %v2906, %v2254
        %v2962 = vsel %vm2959, %v2907, %v2256
        %v2963 = vsel %vm2959, %v2908, %v2258
        %v2964 = vsel %vm2959, %v2909, %v2260
        %v2965 = vsel %vm2959, %v2910, %v2262
        %v2966 = vsel %vm2959, %v2911, %v2264
        %v2967 = vsel %vm2959, %v2912, %v2266
        %v2968 = vsel %vm2959, %v2913, %v2268
        %v2969 = vsel %vm2959, %v2914, %v2270
        %v2970 = vsel %vm2959, %v2915, %v2272
        %v2971 = vsel %vm2959, %v2916, %v2274
        %v2972 = vsel %vm2959, %v2917, %v2276
        %v2973 = vsel %vm2959, %v2918, %v2278
        %v2974 = vsel %vm2959, %v2919, %v2280
        %v2975 = vsel %vm2959, %v2920, %v2282
        %v2976 = vsel %vm2959, %v2921, %v2284
        %v2977 = vsel %vm2959, %v2922, %v2286
        %v2978 = vsel %vm2959, %v2923, %v2288
        %v2979 = vsel %vm2959, %v2924, %v2290
        %v2980 = vsel %vm2959, %v2925, %v2292
        %v2981 = vsel %vm2959, %v2926, %v2294
        %v2982 = vsel %vm2959, %v2927, %v2296
        %v2983 = vsel %vm2959, %v2928, %v2298
        %v2984 = vsel %vm2959, %v2929, %v2300
        %v2985 = vsel %vm2959, %v2930, %v2302
        %v2986 = vsel %vm2959, %v2931, %v2304
        %v2987 = vsel %vm2959, %v2932, %v2306
        %v2988 = vsel %vm2959, %v2933, %v2308
        %v2989 = vsel %vm2959, %v2934, %v2310
        %v2990 = vsel %vm2959, %v2935, %v2312
        %v2991 = vsel %vm2959, %v2936, %v2314
        %v2992 = vsel %vm2959, %v2937, %v2316
        %v2993 = vsel %vm2959, %v2938, %v2318
        %v2994 = vsel %vm2959, %v2939, %v2320
        %v2995 = vsel %vm2959, %v2940, %v2322
        %v2996 = vsel %vm2959, %v2941, %v2324
        %v2997 = vsel %vm2959, %v2942, %v2326
        %v2998 = vsel %vm2959, %v2943, %v2328
        %v2999 = vsel %vm2959, %v2944, %v2330
        %v3000 = vsel %vm2959, %v2945, %v2332
        %v3001 = vsel %vm2959, %v2946, %v2334
        %v3002 = vsel %vm2959, %v2947, %v2336
        %v3003 = vsel %vm2959, %v2948, %v2338
        %v3004 = vsel %vm2959, %v2949, %v2340
        %v3005 = vsel %vm2959, %v2950, %v2342
        %v3006 = vsel %vm2959, %v2951, %v2344
        %v3007 = vsel %vm2959, %v2952, %v2346
        %v3008 = vsel %vm2959, %v2953, %v2348
        %v3009 = vsel %vm2959, %v2954, %v2350
        %v3010 = vsel %vm2959, %v2955, %v2352
        %v3011 = vsel %vm2959, %v2956, %v2354
        %v3012 = vsel %vm2959, %v2957, %v2356
        %v3013 = vsel %vm2959, %v2958, %v2358
        %vm3014 = vcmask 261120
        %v3015 = vsel %vm3014, %v2960, %v2468
        %v3016 = vsel %vm3014, %v2961, %v2470
        %v3017 = vsel %vm3014, %v2962, %v2472
        %v3018 = vsel %vm3014, %v2963, %v2474
        %v3019 = vsel %vm3014, %v2964, %v2476
        %v3020 = vsel %vm3014, %v2965, %v2478
        %v3021 = vsel %vm3014, %v2966, %v2480
        %v3022 = vsel %vm3014, %v2967, %v2482
        %v3023 = vsel %vm3014, %v2968, %v2484
        %v3024 = vsel %vm3014, %v2969, %v2486
        %v3025 = vsel %vm3014, %v2970, %v2488
        %v3026 = vsel %vm3014, %v2971, %v2490
        %v3027 = vsel %vm3014, %v2972, %v2492
        %v3028 = vsel %vm3014, %v2973, %v2494
        %v3029 = vsel %vm3014, %v2974, %v2496
        %v3030 = vsel %vm3014, %v2975, %v2498
        %v3031 = vsel %vm3014, %v2976, %v2500
        %v3032 = vsel %vm3014, %v2977, %v2502
        %v3033 = vsel %vm3014, %v2978, %v2504
        %v3034 = vsel %vm3014, %v2979, %v2506
        %v3035 = vsel %vm3014, %v2980, %v2508
        %v3036 = vsel %vm3014, %v2981, %v2510
        %v3037 = vsel %vm3014, %v2982, %v2512
        %v3038 = vsel %vm3014, %v2983, %v2514
        %v3039 = vsel %vm3014, %v2984, %v2516
        %v3040 = vsel %vm3014, %v2985, %v2518
        %v3041 = vsel %vm3014, %v2986, %v2520
        %v3042 = vsel %vm3014, %v2987, %v2522
        %v3043 = vsel %vm3014, %v2988, %v2524
        %v3044 = vsel %vm3014, %v2989, %v2526
        %v3045 = vsel %vm3014, %v2990, %v2528
        %v3046 = vsel %vm3014, %v2991, %v2530
        %v3047 = vsel %vm3014, %v2992, %v2532
        %v3048 = vsel %vm3014, %v2993, %v2534
        %v3049 = vsel %vm3014, %v2994, %v2536
        %v3050 = vsel %vm3014, %v2995, %v2538
        %v3051 = vsel %vm3014, %v2996, %v2540
        %v3052 = vsel %vm3014, %v2997, %v2542
        %v3053 = vsel %vm3014, %v2998, %v2544
        %v3054 = vsel %vm3014, %v2999, %v2546
        %v3055 = vsel %vm3014, %v3000, %v2548
        %v3056 = vsel %vm3014, %v3001, %v2550
        %v3057 = vsel %vm3014, %v3002, %v2552
        %v3058 = vsel %vm3014, %v3003, %v2554
        %v3059 = vsel %vm3014, %v3004, %v2556
        %v3060 = vsel %vm3014, %v3005, %v2558
        %v3061 = vsel %vm3014, %v3006, %v2560
        %v3062 = vsel %vm3014, %v3007, %v2562
        %v3063 = vsel %vm3014, %v3008, %v2564
        %v3064 = vsel %vm3014, %v3009, %v2566
        %v3065 = vsel %vm3014, %v3010, %v2568
        %v3066 = vsel %vm3014, %v3011, %v2570
        %v3067 = vsel %vm3014, %v3012, %v2572
        %v3068 = vsel %vm3014, %v3013, %v2574
        %v3069 = vpack.c.bf16 %v3016, %v3015
        %v3070 = vpack.c.bf16 %v3018, %v3017
        %v3071 = vpack.c.bf16 %v3020, %v3019
        %v3072 = vpack.c.bf16 %v3022, %v3021
        %v3073 = vpack.c.bf16 %v3024, %v3023
        %v3074 = vpack.c.bf16 %v3026, %v3025
        %v3075 = vpack.c.bf16 %v3028, %v3027
        %v3076 = vpack.c.bf16 %v3030, %v3029
        %v3077 = vpack.c.bf16 %v3032, %v3031
        %v3078 = vpack.c.bf16 %v3034, %v3033
        %v3079 = vpack.c.bf16 %v3036, %v3035
        %v3080 = vpack.c.bf16 %v3038, %v3037
        %v3081 = vpack.c.bf16 %v3040, %v3039
        %v3082 = vpack.c.bf16 %v3042, %v3041
        %v3083 = vpack.c.bf16 %v3044, %v3043
        %v3084 = vpack.c.bf16 %v3046, %v3045
        %v3085 = vpack.c.bf16 %v3048, %v3047
        %v3086 = vpack.c.bf16 %v3050, %v3049
        %v3087 = vpack.c.bf16 %v3052, %v3051
        %v3088 = vpack.c.bf16 %v3054, %v3053
        %v3089 = vpack.c.bf16 %v3056, %v3055
        %v3090 = vpack.c.bf16 %v3058, %v3057
        %v3091 = vpack.c.bf16 %v3060, %v3059
        %v3092 = vpack.c.bf16 %v3062, %v3061
        %v3093 = vpack.c.bf16 %v3064, %v3063
        %v3094 = vpack.c.bf16 %v3066, %v3065
        %v3095 = vpack.c.bf16 %v3068, %v3067
        %v3096 = vld [vmem:[%s2] sm:$0xf]
        %v3097 = vld [vmem:[%s2 + $0x4] sm:$0xf]
        %v3098 = vld [vmem:[%s2 + $0x8] sm:$0xf]
        %v3099 = vld [vmem:[%s2 + $0xc] sm:$0xf]
        %v3100 = vld [vmem:[%s2 + $0x10] sm:$0x3]
        %v3106 = vunpack.c.l.b16 %v3096
        %v3107 = vunpack.c.l.b16 %v3097
        %v3108 = vunpack.c.l.b16 %v3098
        %v3109 = vunpack.c.l.b16 %v3099
        %v3110 = vunpack.c.l.b16 %v3100
        %v3111 = vpack.c.b16 %v3107, %v3106
        %v3112 = vpack.c.b16 %v3109, %v3108
        %v3113 = vpack.c.b16 %v3110, %v3110
        %vm3116 = vcmask 293888
        %v3118 = vsel %vm3116, %v3069, 0
        %v3121 = vsel %vm3116, %v3070, 0
        %v3124 = vsel %vm3116, %v3071, 0
        %v3127 = vsel %vm3116, %v3072, 0
        %v3130 = vsel %vm3116, %v3073, 0
        %v3133 = vsel %vm3116, %v3074, 0
        %v3136 = vsel %vm3116, %v3075, 0
        %v3139 = vsel %vm3116, %v3076, 0
        %v3142 = vsel %vm3116, %v3077, 0
        %v3145 = vsel %vm3116, %v3078, 0
        %v3148 = vsel %vm3116, %v3079, 0
        %v3151 = vsel %vm3116, %v3080, 0
        %v3154 = vsel %vm3116, %v3081, 0
        %v3157 = vsel %vm3116, %v3082, 0
        %v3160 = vsel %vm3116, %v3083, 0
        %v3163 = vsel %vm3116, %v3084, 0
        %v3166 = vsel %vm3116, %v3085, 0
        %v3169 = vsel %vm3116, %v3086, 0
        %v3172 = vsel %vm3116, %v3087, 0
        %v3175 = vsel %vm3116, %v3088, 0
        %v3178 = vsel %vm3116, %v3089, 0
        %v3181 = vsel %vm3116, %v3090, 0
        %v3184 = vsel %vm3116, %v3091, 0
        %v3187 = vsel %vm3116, %v3092, 0
        %v3190 = vsel %vm3116, %v3093, 0
        %v3193 = vsel %vm3116, %v3094, 0
        %v3196 = vsel %vm3116, %v3095, 0
        %vm3198 = vcmask 1041408
        %v3200 = vsel %vm3198, %v3113, 0
        %3202 = vmatprep.subr.bf16.mxu0 0
        %3203 = vmatpush1.bf16.msra.mxu0 %v3111
        %3204 = vmatprep.subr.bf16.mxu0 0
        %3205 = vmatpush1.bf16.msra.mxu0 %v3112
        %3206 = vmatprep.subr.bf16.mxu0 0
        %3207 = vmatpush1.bf16.msra.mxu0 %v3200
        %3208 = vmatprep.subr.bf16.mxu0 0
        %3209 = vmatpush1.bf16.msra.mxu0 0
        %3210 = vmatprep.subr.bf16.mxu0 0
        %3211 = vmatpush1.bf16.msra.mxu0 0
        %3212 = vmatprep.subr.bf16.mxu0 0
        %3213 = vmatpush1.bf16.msra.mxu0 0
        %3214 = vmatprep.subr.bf16.mxu0 0
        %3215 = vmatpush1.bf16.msra.mxu0 0
        %3216 = vmatprep.subr.bf16.mxu0 0
        %3217 = vmatpush1.bf16.msra.mxu0 0
        %3218 = vmatprep.subr.bf16.mxu0 0
        %3219 = vmatpush1.bf16.msra.mxu0 0
        %3220 = vmatprep.subr.bf16.mxu0 0
        %3221 = vmatpush1.bf16.msra.mxu0 0
        %3222 = vmatprep.subr.bf16.mxu0 0
        %3223 = vmatpush1.bf16.msra.mxu0 0
        %3224 = vmatprep.subr.bf16.mxu0 0
        %3225 = vmatpush1.bf16.msra.mxu0 0
        %3226 = vmatprep.subr.bf16.mxu0 0
        %3227 = vmatpush1.bf16.msra.mxu0 0
        %3228 = vmatprep.subr.bf16.mxu0 0
        %3229 = vmatpush1.bf16.msra.mxu0 0
        %3230 = vmatprep.subr.bf16.mxu0 0
        %3231 = vmatpush1.bf16.msra.mxu0 0
        %3232 = vmatprep.subr.bf16.mxu0 0
        %3233 = vmatpush1.bf16.msra.mxu0 0
        %3234 = vmatprep.mubr.bf16.mxu0 0
        %3235 = vmatmul.mubr.bf16.gmra.mrb[0].mxu0 %v3118
        %v3236 = vpop.f32.mrb[0].mxu0
        %v3237 = vadd.f32 0.0, %v3236
        %v3238 = vpop.f32.mrb[0].mxu0
        %v3239 = vpop.f32.mrb[0].mxu0
        %v3240 = vadd.f32 0.0, %v3239
        %v3241 = vpop.f32.mrb[0].mxu0
        %3242 = vmatprep.mubr.bf16.mxu0 0
        %3243 = vmatmul.mubr.bf16.gmra.mrb[0].mxu0 %v3121
        %v3244 = vpop.f32.mrb[0].mxu0
        %v3245 = vadd.f32 0.0, %v3244
        %v3246 = vpop.f32.mrb[0].mxu0
        %v3247 = vpop.f32.mrb[0].mxu0
        %v3248 = vadd.f32 0.0, %v3247
        %v3249 = vpop.f32.mrb[0].mxu0
        %3250 = vmatprep.mubr.bf16.mxu0 0
        %3251 = vmatmul.mubr.bf16.gmra.mrb[0].mxu0 %v3124
        %v3252 = vpop.f32.mrb[0].mxu0
        %v3253 = vadd.f32 0.0, %v3252
        %v3254 = vpop.f32.mrb[0].mxu0
        %v3255 = vpop.f32.mrb[0].mxu0
        %v3256 = vadd.f32 0.0, %v3255
        %v3257 = vpop.f32.mrb[0].mxu0
        %3258 = vmatprep.mubr.bf16.mxu0 0
        %3259 = vmatmul.mubr.bf16.gmra.mrb[0].mxu0 %v3127
        %v3260 = vpop.f32.mrb[0].mxu0
        %v3261 = vadd.f32 0.0, %v3260
        %v3262 = vpop.f32.mrb[0].mxu0
        %v3263 = vpop.f32.mrb[0].mxu0
        %v3264 = vadd.f32 0.0, %v3263
        %v3265 = vpop.f32.mrb[0].mxu0
        %3266 = vmatprep.mubr.bf16.mxu0 0
        %3267 = vmatmul.mubr.bf16.gmra.mrb[0].mxu0 %v3130
        %v3268 = vpop.f32.mrb[0].mxu0
        %v3269 = vadd.f32 0.0, %v3268
        %v3270 = vpop.f32.mrb[0].mxu0
        %v3271 = vpop.f32.mrb[0].mxu0
        %v3272 = vadd.f32 0.0, %v3271
        %v3273 = vpop.f32.mrb[0].mxu0
        %3274 = vmatprep.mubr.bf16.mxu0 0
        %3275 = vmatmul.mubr.bf16.gmra.mrb[0].mxu0 %v3133
        %v3276 = vpop.f32.mrb[0].mxu0
        %v3277 = vadd.f32 0.0, %v3276
        %v3278 = vpop.f32.mrb[0].mxu0
        %v3279 = vpop.f32.mrb[0].mxu0
        %v3280 = vadd.f32 0.0, %v3279
        %v3281 = vpop.f32.mrb[0].mxu0
        %3282 = vmatprep.mubr.bf16.mxu0 0
        %3283 = vmatmul.mubr.bf16.gmra.mrb[0].mxu0 %v3136
        %v3284 = vpop.f32.mrb[0].mxu0
        %v3285 = vadd.f32 0.0, %v3284
        %v3286 = vpop.f32.mrb[0].mxu0
        %v3287 = vpop.f32.mrb[0].mxu0
        %v3288 = vadd.f32 0.0, %v3287
        %v3289 = vpop.f32.mrb[0].mxu0
        %3290 = vmatprep.mubr.bf16.mxu0 0
        %3291 = vmatmul.mubr.bf16.gmra.mrb[0].mxu0 %v3139
        %v3292 = vpop.f32.mrb[0].mxu0
        %v3293 = vadd.f32 0.0, %v3292
        %v3294 = vpop.f32.mrb[0].mxu0
        %v3295 = vpop.f32.mrb[0].mxu0
        %v3296 = vadd.f32 0.0, %v3295
        %v3297 = vpop.f32.mrb[0].mxu0
        %3298 = vmatprep.mubr.bf16.mxu0 0
        %3299 = vmatmul.mubr.bf16.gmra.mrb[0].mxu0 %v3142
        %v3300 = vpop.f32.mrb[0].mxu0
        %v3301 = vadd.f32 0.0, %v3300
        %v3302 = vpop.f32.mrb[0].mxu0
        %v3303 = vpop.f32.mrb[0].mxu0
        %v3304 = vadd.f32 0.0, %v3303
        %v3305 = vpop.f32.mrb[0].mxu0
        %3306 = vmatprep.mubr.bf16.mxu0 0
        %3307 = vmatmul.mubr.bf16.gmra.mrb[0].mxu0 %v3145
        %v3308 = vpop.f32.mrb[0].mxu0
        %v3309 = vadd.f32 0.0, %v3308
        %v3310 = vpop.f32.mrb[0].mxu0
        %v3311 = vpop.f32.mrb[0].mxu0
        %v3312 = vadd.f32 0.0, %v3311
        %v3313 = vpop.f32.mrb[0].mxu0
        %3314 = vmatprep.mubr.bf16.mxu0 0
        %3315 = vmatmul.mubr.bf16.gmra.mrb[0].mxu0 %v3148
        %v3316 = vpop.f32.mrb[0].mxu0
        %v3317 = vadd.f32 0.0, %v3316
        %v3318 = vpop.f32.mrb[0].mxu0
        %v3319 = vpop.f32.mrb[0].mxu0
        %v3320 = vadd.f32 0.0, %v3319
        %v3321 = vpop.f32.mrb[0].mxu0
        %3322 = vmatprep.mubr.bf16.mxu0 0
        %3323 = vmatmul.mubr.bf16.gmra.mrb[0].mxu0 %v3151
        %v3324 = vpop.f32.mrb[0].mxu0
        %v3325 = vadd.f32 0.0, %v3324
        %v3326 = vpop.f32.mrb[0].mxu0
        %v3327 = vpop.f32.mrb[0].mxu0
        %v3328 = vadd.f32 0.0, %v3327
        %v3329 = vpop.f32.mrb[0].mxu0
        %3330 = vmatprep.mubr.bf16.mxu0 0
        %3331 = vmatmul.mubr.bf16.gmra.mrb[0].mxu0 %v3154
        %v3332 = vpop.f32.mrb[0].mxu0
        %v3333 = vadd.f32 0.0, %v3332
        %v3334 = vpop.f32.mrb[0].mxu0
        %v3335 = vpop.f32.mrb[0].mxu0
        %v3336 = vadd.f32 0.0, %v3335
        %v3337 = vpop.f32.mrb[0].mxu0
        %3338 = vmatprep.mubr.bf16.mxu0 0
        %3339 = vmatmul.mubr.bf16.gmra.mrb[0].mxu0 %v3157
        %v3340 = vpop.f32.mrb[0].mxu0
        %v3341 = vadd.f32 0.0, %v3340
        %v3342 = vpop.f32.mrb[0].mxu0
        %v3343 = vpop.f32.mrb[0].mxu0
        %v3344 = vadd.f32 0.0, %v3343
        %v3345 = vpop.f32.mrb[0].mxu0
        %3346 = vmatprep.mubr.bf16.mxu0 0
        %3347 = vmatmul.mubr.bf16.gmra.mrb[0].mxu0 %v3160
        %v3348 = vpop.f32.mrb[0].mxu0
        %v3349 = vadd.f32 0.0, %v3348
        %v3350 = vpop.f32.mrb[0].mxu0
        %v3351 = vpop.f32.mrb[0].mxu0
        %v3352 = vadd.f32 0.0, %v3351
        %v3353 = vpop.f32.mrb[0].mxu0
        %3354 = vmatprep.mubr.bf16.mxu0 0
        %3355 = vmatmul.mubr.bf16.gmra.mrb[0].mxu0 %v3163
        %v3356 = vpop.f32.mrb[0].mxu0
        %v3357 = vadd.f32 0.0, %v3356
        %v3358 = vpop.f32.mrb[0].mxu0
        %v3359 = vpop.f32.mrb[0].mxu0
        %v3360 = vadd.f32 0.0, %v3359
        %v3361 = vpop.f32.mrb[0].mxu0
        %3362 = vmatprep.mubr.bf16.mxu0 0
        %3363 = vmatmul.mubr.bf16.gmra.mrb[0].mxu0 %v3166
        %v3364 = vpop.f32.mrb[0].mxu0
        %v3365 = vadd.f32 0.0, %v3364
        %v3366 = vpop.f32.mrb[0].mxu0
        %v3367 = vpop.f32.mrb[0].mxu0
        %v3368 = vadd.f32 0.0, %v3367
        %v3369 = vpop.f32.mrb[0].mxu0
        %3370 = vmatprep.mubr.bf16.mxu0 0
        %3371 = vmatmul.mubr.bf16.gmra.mrb[0].mxu0 %v3169
        %v3372 = vpop.f32.mrb[0].mxu0
        %v3373 = vadd.f32 0.0, %v3372
        %v3374 = vpop.f32.mrb[0].mxu0
        %v3375 = vpop.f32.mrb[0].mxu0
        %v3376 = vadd.f32 0.0, %v3375
        %v3377 = vpop.f32.mrb[0].mxu0
        %3378 = vmatprep.mubr.bf16.mxu0 0
        %3379 = vmatmul.mubr.bf16.gmra.mrb[0].mxu0 %v3172
        %v3380 = vpop.f32.mrb[0].mxu0
        %v3381 = vadd.f32 0.0, %v3380
        %v3382 = vpop.f32.mrb[0].mxu0
        %v3383 = vpop.f32.mrb[0].mxu0
        %v3384 = vadd.f32 0.0, %v3383
        %v3385 = vpop.f32.mrb[0].mxu0
        %3386 = vmatprep.mubr.bf16.mxu0 0
        %3387 = vmatmul.mubr.bf16.gmra.mrb[0].mxu0 %v3175
        %v3388 = vpop.f32.mrb[0].mxu0
        %v3389 = vadd.f32 0.0, %v3388
        %v3390 = vpop.f32.mrb[0].mxu0
        %v3391 = vpop.f32.mrb[0].mxu0
        %v3392 = vadd.f32 0.0, %v3391
        %v3393 = vpop.f32.mrb[0].mxu0
        %3394 = vmatprep.mubr.bf16.mxu0 0
        %3395 = vmatmul.mubr.bf16.gmra.mrb[0].mxu0 %v3178
        %v3396 = vpop.f32.mrb[0].mxu0
        %v3397 = vadd.f32 0.0, %v3396
        %v3398 = vpop.f32.mrb[0].mxu0
        %v3399 = vpop.f32.mrb[0].mxu0
        %v3400 = vadd.f32 0.0, %v3399
        %v3401 = vpop.f32.mrb[0].mxu0
        %3402 = vmatprep.mubr.bf16.mxu0 0
        %3403 = vmatmul.mubr.bf16.gmra.mrb[0].mxu0 %v3181
        %v3404 = vpop.f32.mrb[0].mxu0
        %v3405 = vadd.f32 0.0, %v3404
        %v3406 = vpop.f32.mrb[0].mxu0
        %v3407 = vpop.f32.mrb[0].mxu0
        %v3408 = vadd.f32 0.0, %v3407
        %v3409 = vpop.f32.mrb[0].mxu0
        %3410 = vmatprep.mubr.bf16.mxu0 0
        %3411 = vmatmul.mubr.bf16.gmra.mrb[0].mxu0 %v3184
        %v3412 = vpop.f32.mrb[0].mxu0
        %v3413 = vadd.f32 0.0, %v3412
        %v3414 = vpop.f32.mrb[0].mxu0
        %v3415 = vpop.f32.mrb[0].mxu0
        %v3416 = vadd.f32 0.0, %v3415
        %v3417 = vpop.f32.mrb[0].mxu0
        %3418 = vmatprep.mubr.bf16.mxu0 0
        %3419 = vmatmul.mubr.bf16.gmra.mrb[0].mxu0 %v3187
        %v3420 = vpop.f32.mrb[0].mxu0
        %v3421 = vadd.f32 0.0, %v3420
        %v3422 = vpop.f32.mrb[0].mxu0
        %v3423 = vpop.f32.mrb[0].mxu0
        %v3424 = vadd.f32 0.0, %v3423
        %v3425 = vpop.f32.mrb[0].mxu0
        %3426 = vmatprep.mubr.bf16.mxu0 0
        %3427 = vmatmul.mubr.bf16.gmra.mrb[0].mxu0 %v3190
        %v3428 = vpop.f32.mrb[0].mxu0
        %v3429 = vadd.f32 0.0, %v3428
        %v3430 = vpop.f32.mrb[0].mxu0
        %v3431 = vpop.f32.mrb[0].mxu0
        %v3432 = vadd.f32 0.0, %v3431
        %v3433 = vpop.f32.mrb[0].mxu0
        %3434 = vmatprep.mubr.bf16.mxu0 0
        %3435 = vmatmul.mubr.bf16.gmra.mrb[0].mxu0 %v3193
        %v3436 = vpop.f32.mrb[0].mxu0
        %v3437 = vadd.f32 0.0, %v3436
        %v3438 = vpop.f32.mrb[0].mxu0
        %v3439 = vpop.f32.mrb[0].mxu0
        %v3440 = vadd.f32 0.0, %v3439
        %v3441 = vpop.f32.mrb[0].mxu0
        %3442 = vmatprep.mubr.bf16.mxu0 0
        %3443 = vmatmul.mubr.bf16.gmra.mrb[0].mxu0 %v3196
        %v3444 = vpop.f32.mrb[0].mxu0
        %v3445 = vadd.f32 0.0, %v3444
        %v3446 = vpop.f32.mrb[0].mxu0
        %v3447 = vpop.f32.mrb[0].mxu0
        %v3448 = vadd.f32 0.0, %v3447
        %v3449 = vpop.f32.mrb[0].mxu0
        %3450 = vdwg.mxu0
        %v3451 = vld [vmem:[%s3] sm:$0x1]
        %v3453 = vlaneseq
        %v3454 = vshrl.u32 %v3453, 7
        %v3455 = vsub.s32 0, %v3454
        %v3456 = vrot.slane %v3451, %v3455
        %v3458 = vmul.f32 %v3237, %v3456
        %v3459 = vmul.f32 %v3240, %v3456
        %v3460 = vmul.f32 %v3245, %v3456
        %v3461 = vmul.f32 %v3248, %v3456
        %v3462 = vmul.f32 %v3253, %v3456
        %v3463 = vmul.f32 %v3256, %v3456
        %v3464 = vmul.f32 %v3261, %v3456
        %v3465 = vmul.f32 %v3264, %v3456
        %v3466 = vmul.f32 %v3269, %v3456
        %v3467 = vmul.f32 %v3272, %v3456
        %v3468 = vmul.f32 %v3277, %v3456
        %v3469 = vmul.f32 %v3280, %v3456
        %v3470 = vmul.f32 %v3285, %v3456
        %v3471 = vmul.f32 %v3288, %v3456
        %v3472 = vmul.f32 %v3293, %v3456
        %v3473 = vmul.f32 %v3296, %v3456
        %v3474 = vmul.f32 %v3301, %v3456
        %v3475 = vmul.f32 %v3304, %v3456
        %v3476 = vmul.f32 %v3309, %v3456
        %v3477 = vmul.f32 %v3312, %v3456
        %v3478 = vmul.f32 %v3317, %v3456
        %v3479 = vmul.f32 %v3320, %v3456
        %v3480 = vmul.f32 %v3325, %v3456
        %v3481 = vmul.f32 %v3328, %v3456
        %v3482 = vmul.f32 %v3333, %v3456
        %v3483 = vmul.f32 %v3336, %v3456
        %v3484 = vmul.f32 %v3341, %v3456
        %v3485 = vmul.f32 %v3344, %v3456
        %v3486 = vmul.f32 %v3349, %v3456
        %v3487 = vmul.f32 %v3352, %v3456
        %v3488 = vmul.f32 %v3357, %v3456
        %v3489 = vmul.f32 %v3360, %v3456
        %v3490 = vmul.f32 %v3365, %v3456
        %v3491 = vmul.f32 %v3368, %v3456
        %v3492 = vmul.f32 %v3373, %v3456
        %v3493 = vmul.f32 %v3376, %v3456
        %v3494 = vmul.f32 %v3381, %v3456
        %v3495 = vmul.f32 %v3384, %v3456
        %v3496 = vmul.f32 %v3389, %v3456
        %v3497 = vmul.f32 %v3392, %v3456
        %v3498 = vmul.f32 %v3397, %v3456
        %v3499 = vmul.f32 %v3400, %v3456
        %v3500 = vmul.f32 %v3405, %v3456
        %v3501 = vmul.f32 %v3408, %v3456
        %v3502 = vmul.f32 %v3413, %v3456
        %v3503 = vmul.f32 %v3416, %v3456
        %v3504 = vmul.f32 %v3421, %v3456
        %v3505 = vmul.f32 %v3424, %v3456
        %v3506 = vmul.f32 %v3429, %v3456
        %v3507 = vmul.f32 %v3432, %v3456
        %v3508 = vmul.f32 %v3437, %v3456
        %v3509 = vmul.f32 %v3440, %v3456
        %v3510 = vmul.f32 %v3445, %v3456
        %v3511 = vmul.f32 %v3448, %v3456
        %v3512 = vld [vmem:[%s4] sm:$0x1]
        %v3514 = vlaneseq
        %v3515 = vshrl.u32 %v3514, 7
        %v3516 = vsub.s32 0, %v3515
        %v3517 = vrot.slane %v3512, %v3516
        %v3519 = vadd.f32 %v3458, %v3517
        %v3520 = vadd.f32 %v3459, %v3517
        %v3521 = vadd.f32 %v3460, %v3517
        %v3522 = vadd.f32 %v3461, %v3517
        %v3523 = vadd.f32 %v3462, %v3517
        %v3524 = vadd.f32 %v3463, %v3517
        %v3525 = vadd.f32 %v3464, %v3517
        %v3526 = vadd.f32 %v3465, %v3517
        %v3527 = vadd.f32 %v3466, %v3517
        %v3528 = vadd.f32 %v3467, %v3517
        %v3529 = vadd.f32 %v3468, %v3517
        %v3530 = vadd.f32 %v3469, %v3517
        %v3531 = vadd.f32 %v3470, %v3517
        %v3532 = vadd.f32 %v3471, %v3517
        %v3533 = vadd.f32 %v3472, %v3517
        %v3534 = vadd.f32 %v3473, %v3517
        %v3535 = vadd.f32 %v3474, %v3517
        %v3536 = vadd.f32 %v3475, %v3517
        %v3537 = vadd.f32 %v3476, %v3517
        %v3538 = vadd.f32 %v3477, %v3517
        %v3539 = vadd.f32 %v3478, %v3517
        %v3540 = vadd.f32 %v3479, %v3517
        %v3541 = vadd.f32 %v3480, %v3517
        %v3542 = vadd.f32 %v3481, %v3517
        %v3543 = vadd.f32 %v3482, %v3517
        %v3544 = vadd.f32 %v3483, %v3517
        %v3545 = vadd.f32 %v3484, %v3517
        %v3546 = vadd.f32 %v3485, %v3517
        %v3547 = vadd.f32 %v3486, %v3517
        %v3548 = vadd.f32 %v3487, %v3517
        %v3549 = vadd.f32 %v3488, %v3517
        %v3550 = vadd.f32 %v3489, %v3517
        %v3551 = vadd.f32 %v3490, %v3517
        %v3552 = vadd.f32 %v3491, %v3517
        %v3553 = vadd.f32 %v3492, %v3517
        %v3554 = vadd.f32 %v3493, %v3517
        %v3555 = vadd.f32 %v3494, %v3517
        %v3556 = vadd.f32 %v3495, %v3517
        %v3557 = vadd.f32 %v3496, %v3517
        %v3558 = vadd.f32 %v3497, %v3517
        %v3559 = vadd.f32 %v3498, %v3517
        %v3560 = vadd.f32 %v3499, %v3517
        %v3561 = vadd.f32 %v3500, %v3517
        %v3562 = vadd.f32 %v3501, %v3517
        %v3563 = vadd.f32 %v3502, %v3517
        %v3564 = vadd.f32 %v3503, %v3517
        %v3565 = vadd.f32 %v3504, %v3517
        %v3566 = vadd.f32 %v3505, %v3517
        %v3567 = vadd.f32 %v3506, %v3517
        %v3568 = vadd.f32 %v3507, %v3517
        %v3569 = vadd.f32 %v3508, %v3517
        %v3570 = vadd.f32 %v3509, %v3517
        %v3571 = vadd.f32 %v3510, %v3517
        %v3572 = vadd.f32 %v3511, %v3517
        %v3573 = vmax.f32 %v3519, 0.0
        %v3574 = vmax.f32 %v3520, 0.0
        %v3575 = vmax.f32 %v3521, 0.0
        %v3576 = vmax.f32 %v3522, 0.0
        %v3577 = vmax.f32 %v3523, 0.0
        %v3578 = vmax.f32 %v3524, 0.0
        %v3579 = vmax.f32 %v3525, 0.0
        %v3580 = vmax.f32 %v3526, 0.0
        %v3581 = vmax.f32 %v3527, 0.0
        %v3582 = vmax.f32 %v3528, 0.0
        %v3583 = vmax.f32 %v3529, 0.0
        %v3584 = vmax.f32 %v3530, 0.0
        %v3585 = vmax.f32 %v3531, 0.0
        %v3586 = vmax.f32 %v3532, 0.0
        %v3587 = vmax.f32 %v3533, 0.0
        %v3588 = vmax.f32 %v3534, 0.0
        %v3589 = vmax.f32 %v3535, 0.0
        %v3590 = vmax.f32 %v3536, 0.0
        %v3591 = vmax.f32 %v3537, 0.0
        %v3592 = vmax.f32 %v3538, 0.0
        %v3593 = vmax.f32 %v3539, 0.0
        %v3594 = vmax.f32 %v3540, 0.0
        %v3595 = vmax.f32 %v3541, 0.0
        %v3596 = vmax.f32 %v3542, 0.0
        %v3597 = vmax.f32 %v3543, 0.0
        %v3598 = vmax.f32 %v3544, 0.0
        %v3599 = vmax.f32 %v3545, 0.0
        %v3600 = vmax.f32 %v3546, 0.0
        %v3601 = vmax.f32 %v3547, 0.0
        %v3602 = vmax.f32 %v3548, 0.0
        %v3603 = vmax.f32 %v3549, 0.0
        %v3604 = vmax.f32 %v3550, 0.0
        %v3605 = vmax.f32 %v3551, 0.0
        %v3606 = vmax.f32 %v3552, 0.0
        %v3607 = vmax.f32 %v3553, 0.0
        %v3608 = vmax.f32 %v3554, 0.0
        %v3609 = vmax.f32 %v3555, 0.0
        %v3610 = vmax.f32 %v3556, 0.0
        %v3611 = vmax.f32 %v3557, 0.0
        %v3612 = vmax.f32 %v3558, 0.0
        %v3613 = vmax.f32 %v3559, 0.0
        %v3614 = vmax.f32 %v3560, 0.0
        %v3615 = vmax.f32 %v3561, 0.0
        %v3616 = vmax.f32 %v3562, 0.0
        %v3617 = vmax.f32 %v3563, 0.0
        %v3618 = vmax.f32 %v3564, 0.0
        %v3619 = vmax.f32 %v3565, 0.0
        %v3620 = vmax.f32 %v3566, 0.0
        %v3621 = vmax.f32 %v3567, 0.0
        %v3622 = vmax.f32 %v3568, 0.0
        %v3623 = vmax.f32 %v3569, 0.0
        %v3624 = vmax.f32 %v3570, 0.0
        %v3625 = vmax.f32 %v3571, 0.0
        %v3626 = vmax.f32 %v3572, 0.0
        %v3627 = vld [vmem:[%s1] sm:$0xff]
        %v3628 = vld [vmem:[%s1 + $0x8] sm:$0xff]
        %v3629 = vld [vmem:[%s1 + $0x10] sm:$0xff]
        %v3630 = vld [vmem:[%s1 + $0x18] sm:$0xff]
        %v3631 = vld [vmem:[%s1 + $0x20] sm:$0xff]
        %v3632 = vld [vmem:[%s1 + $0x28] sm:$0xff]
        %v3633 = vld [vmem:[%s1 + $0x30] sm:$0xff]
        %v3634 = vld [vmem:[%s1 + $0x38] sm:$0xff]
        %v3635 = vld [vmem:[%s1 + $0x40] sm:$0xff]
        %v3636 = vld [vmem:[%s1 + $0x48] sm:$0xff]
        %v3637 = vld [vmem:[%s1 + $0x50] sm:$0xff]
        %v3638 = vld [vmem:[%s1 + $0x58] sm:$0xff]
        %v3639 = vld [vmem:[%s1 + $0x60] sm:$0xff]
        %v3640 = vld [vmem:[%s1 + $0x68] sm:$0xff]
        %v3641 = vld [vmem:[%s1 + $0x70] sm:$0xff]
        %v3642 = vld [vmem:[%s1 + $0x78] sm:$0xff]
        %v3643 = vld [vmem:[%s1 + $0x80] sm:$0xff]
        %v3644 = vld [vmem:[%s1 + $0x88] sm:$0xff]
        %v3645 = vld [vmem:[%s1 + $0x90] sm:$0xff]
        %v3646 = vld [vmem:[%s1 + $0x98] sm:$0xff]
        %v3647 = vld [vmem:[%s1 + $0xa0] sm:$0xff]
        %v3648 = vld [vmem:[%s1 + $0xa8] sm:$0xff]
        %v3649 = vld [vmem:[%s1 + $0xb0] sm:$0xff]
        %v3650 = vld [vmem:[%s1 + $0xb8] sm:$0xff]
        %v3651 = vld [vmem:[%s1 + $0xc0] sm:$0xff]
        %v3652 = vld [vmem:[%s1 + $0xc8] sm:$0xff]
        %v3653 = vld [vmem:[%s1 + $0xd0] sm:$0xff]
        %v3654 = vld [vmem:[%s1 + $0xd8] sm:$0xff]
        %v3655 = vld [vmem:[%s1 + $0xe0] sm:$0xff]
        %v3656 = vld [vmem:[%s1 + $0xe8] sm:$0xff]
        %v3657 = vld [vmem:[%s1 + $0xf0] sm:$0xff]
        %v3658 = vld [vmem:[%s1 + $0xf8] sm:$0xff]
        %v3659 = vld [vmem:[%s1 + $0x100] sm:$0xff]
        %v3660 = vld [vmem:[%s1 + $0x108] sm:$0xff]
        %v3661 = vld [vmem:[%s1 + $0x110] sm:$0xff]
        %v3662 = vld [vmem:[%s1 + $0x118] sm:$0xff]
        %v3663 = vld [vmem:[%s1 + $0x120] sm:$0xff]
        %v3664 = vld [vmem:[%s1 + $0x128] sm:$0xff]
        %v3665 = vld [vmem:[%s1 + $0x130] sm:$0xff]
        %v3666 = vld [vmem:[%s1 + $0x138] sm:$0xff]
        %v3667 = vld [vmem:[%s1 + $0x140] sm:$0xff]
        %v3668 = vld [vmem:[%s1 + $0x148] sm:$0xff]
        %v3669 = vld [vmem:[%s1 + $0x150] sm:$0xff]
        %v3670 = vld [vmem:[%s1 + $0x158] sm:$0xff]
        %v3671 = vld [vmem:[%s1 + $0x160] sm:$0xff]
        %v3672 = vld [vmem:[%s1 + $0x168] sm:$0xff]
        %v3673 = vld [vmem:[%s1 + $0x170] sm:$0xff]
        %v3674 = vld [vmem:[%s1 + $0x178] sm:$0xff]
        %v3675 = vld [vmem:[%s1 + $0x180] sm:$0xff]
        %v3676 = vld [vmem:[%s1 + $0x188] sm:$0xff]
        %v3677 = vld [vmem:[%s1 + $0x190] sm:$0xff]
        %v3678 = vld [vmem:[%s1 + $0x198] sm:$0xff]
        %v3679 = vld [vmem:[%s1 + $0x1a0] sm:$0xff]
        %v3680 = vld [vmem:[%s1 + $0x1a8] sm:$0xff]
        %3682 = vset.pattern.permute.xlu0 0
        %3683 = vperm.xlu0 %3682, %v3627
        %v3684 = vpop.permute.xlu0 %3683
        %3687 = vset.pattern.permute.xlu0 0
        %3688 = vperm.xlu0 %3687, %v3628
        %v3689 = vpop.permute.xlu0 %3688
        %3692 = vset.pattern.permute.xlu0 0
        %3693 = vperm.xlu0 %3692, %v3629
        %v3694 = vpop.permute.xlu0 %3693
        %3697 = vset.pattern.permute.xlu0 0
        %3698 = vperm.xlu0 %3697, %v3630
        %v3699 = vpop.permute.xlu0 %3698
        %3702 = vset.pattern.permute.xlu0 0
        %3703 = vperm.xlu0 %3702, %v3631
        %v3704 = vpop.permute.xlu0 %3703
        %3707 = vset.pattern.permute.xlu0 0
        %3708 = vperm.xlu0 %3707, %v3632
        %v3709 = vpop.permute.xlu0 %3708
        %3712 = vset.pattern.permute.xlu0 0
        %3713 = vperm.xlu0 %3712, %v3633
        %v3714 = vpop.permute.xlu0 %3713
        %3717 = vset.pattern.permute.xlu0 0
        %3718 = vperm.xlu0 %3717, %v3634
        %v3719 = vpop.permute.xlu0 %3718
        %3722 = vset.pattern.permute.xlu0 0
        %3723 = vperm.xlu0 %3722, %v3635
        %v3724 = vpop.permute.xlu0 %3723
        %3727 = vset.pattern.permute.xlu0 0
        %3728 = vperm.xlu0 %3727, %v3636
        %v3729 = vpop.permute.xlu0 %3728
        %3732 = vset.pattern.permute.xlu0 0
        %3733 = vperm.xlu0 %3732, %v3637
        %v3734 = vpop.permute.xlu0 %3733
        %3737 = vset.pattern.permute.xlu0 0
        %3738 = vperm.xlu0 %3737, %v3638
        %v3739 = vpop.permute.xlu0 %3738
        %3742 = vset.pattern.permute.xlu0 0
        %3743 = vperm.xlu0 %3742, %v3639
        %v3744 = vpop.permute.xlu0 %3743
        %3747 = vset.pattern.permute.xlu0 0
        %3748 = vperm.xlu0 %3747, %v3640
        %v3749 = vpop.permute.xlu0 %3748
        %3752 = vset.pattern.permute.xlu0 0
        %3753 = vperm.xlu0 %3752, %v3641
        %v3754 = vpop.permute.xlu0 %3753
        %3757 = vset.pattern.permute.xlu0 0
        %3758 = vperm.xlu0 %3757, %v3642
        %v3759 = vpop.permute.xlu0 %3758
        %3762 = vset.pattern.permute.xlu0 0
        %3763 = vperm.xlu0 %3762, %v3643
        %v3764 = vpop.permute.xlu0 %3763
        %3767 = vset.pattern.permute.xlu0 0
        %3768 = vperm.xlu0 %3767, %v3644
        %v3769 = vpop.permute.xlu0 %3768
        %3772 = vset.pattern.permute.xlu0 0
        %3773 = vperm.xlu0 %3772, %v3645
        %v3774 = vpop.permute.xlu0 %3773
        %3777 = vset.pattern.permute.xlu0 0
        %3778 = vperm.xlu0 %3777, %v3646
        %v3779 = vpop.permute.xlu0 %3778
        %3782 = vset.pattern.permute.xlu0 0
        %3783 = vperm.xlu0 %3782, %v3647
        %v3784 = vpop.permute.xlu0 %3783
        %3787 = vset.pattern.permute.xlu0 0
        %3788 = vperm.xlu0 %3787, %v3648
        %v3789 = vpop.permute.xlu0 %3788
        %3792 = vset.pattern.permute.xlu0 0
        %3793 = vperm.xlu0 %3792, %v3649
        %v3794 = vpop.permute.xlu0 %3793
        %3797 = vset.pattern.permute.xlu0 0
        %3798 = vperm.xlu0 %3797, %v3650
        %v3799 = vpop.permute.xlu0 %3798
        %3802 = vset.pattern.permute.xlu0 0
        %3803 = vperm.xlu0 %3802, %v3651
        %v3804 = vpop.permute.xlu0 %3803
        %3807 = vset.pattern.permute.xlu0 0
        %3808 = vperm.xlu0 %3807, %v3652
        %v3809 = vpop.permute.xlu0 %3808
        %3812 = vset.pattern.permute.xlu0 0
        %3813 = vperm.xlu0 %3812, %v3653
        %v3814 = vpop.permute.xlu0 %3813
        %3817 = vset.pattern.permute.xlu0 0
        %3818 = vperm.xlu0 %3817, %v3654
        %v3819 = vpop.permute.xlu0 %3818
        %3822 = vset.pattern.permute.xlu0 0
        %3823 = vperm.xlu0 %3822, %v3655
        %v3824 = vpop.permute.xlu0 %3823
        %3827 = vset.pattern.permute.xlu0 0
        %3828 = vperm.xlu0 %3827, %v3656
        %v3829 = vpop.permute.xlu0 %3828
        %3832 = vset.pattern.permute.xlu0 0
        %3833 = vperm.xlu0 %3832, %v3657
        %v3834 = vpop.permute.xlu0 %3833
        %3837 = vset.pattern.permute.xlu0 0
        %3838 = vperm.xlu0 %3837, %v3658
        %v3839 = vpop.permute.xlu0 %3838
        %3842 = vset.pattern.permute.xlu0 0
        %3843 = vperm.xlu0 %3842, %v3659
        %v3844 = vpop.permute.xlu0 %3843
        %3847 = vset.pattern.permute.xlu0 0
        %3848 = vperm.xlu0 %3847, %v3660
        %v3849 = vpop.permute.xlu0 %3848
        %3852 = vset.pattern.permute.xlu0 0
        %3853 = vperm.xlu0 %3852, %v3661
        %v3854 = vpop.permute.xlu0 %3853
        %3857 = vset.pattern.permute.xlu0 0
        %3858 = vperm.xlu0 %3857, %v3662
        %v3859 = vpop.permute.xlu0 %3858
        %3862 = vset.pattern.permute.xlu0 0
        %3863 = vperm.xlu0 %3862, %v3663
        %v3864 = vpop.permute.xlu0 %3863
        %3867 = vset.pattern.permute.xlu0 0
        %3868 = vperm.xlu0 %3867, %v3664
        %v3869 = vpop.permute.xlu0 %3868
        %3872 = vset.pattern.permute.xlu0 0
        %3873 = vperm.xlu0 %3872, %v3665
        %v3874 = vpop.permute.xlu0 %3873
        %3877 = vset.pattern.permute.xlu0 0
        %3878 = vperm.xlu0 %3877, %v3666
        %v3879 = vpop.permute.xlu0 %3878
        %3882 = vset.pattern.permute.xlu0 0
        %3883 = vperm.xlu0 %3882, %v3667
        %v3884 = vpop.permute.xlu0 %3883
        %3887 = vset.pattern.permute.xlu0 0
        %3888 = vperm.xlu0 %3887, %v3668
        %v3889 = vpop.permute.xlu0 %3888
        %3892 = vset.pattern.permute.xlu0 0
        %3893 = vperm.xlu0 %3892, %v3669
        %v3894 = vpop.permute.xlu0 %3893
        %3897 = vset.pattern.permute.xlu0 0
        %3898 = vperm.xlu0 %3897, %v3670
        %v3899 = vpop.permute.xlu0 %3898
        %3902 = vset.pattern.permute.xlu0 0
        %3903 = vperm.xlu0 %3902, %v3671
        %v3904 = vpop.permute.xlu0 %3903
        %3907 = vset.pattern.permute.xlu0 0
        %3908 = vperm.xlu0 %3907, %v3672
        %v3909 = vpop.permute.xlu0 %3908
        %3912 = vset.pattern.permute.xlu0 0
        %3913 = vperm.xlu0 %3912, %v3673
        %v3914 = vpop.permute.xlu0 %3913
        %3917 = vset.pattern.permute.xlu0 0
        %3918 = vperm.xlu0 %3917, %v3674
        %v3919 = vpop.permute.xlu0 %3918
        %3922 = vset.pattern.permute.xlu0 0
        %3923 = vperm.xlu0 %3922, %v3675
        %v3924 = vpop.permute.xlu0 %3923
        %3927 = vset.pattern.permute.xlu0 0
        %3928 = vperm.xlu0 %3927, %v3676
        %v3929 = vpop.permute.xlu0 %3928
        %3932 = vset.pattern.permute.xlu0 0
        %3933 = vperm.xlu0 %3932, %v3677
        %v3934 = vpop.permute.xlu0 %3933
        %3937 = vset.pattern.permute.xlu0 0
        %3938 = vperm.xlu0 %3937, %v3678
        %v3939 = vpop.permute.xlu0 %3938
        %3942 = vset.pattern.permute.xlu0 0
        %3943 = vperm.xlu0 %3942, %v3679
        %v3944 = vpop.permute.xlu0 %3943
        %3947 = vset.pattern.permute.xlu0 0
        %3948 = vperm.xlu0 %3947, %v3680
        %v3949 = vpop.permute.xlu0 %3948
        %v3951 = vmul.f32 %v3573, %v3684
        %v3952 = vmul.f32 %v3574, %v3689
        %v3953 = vmul.f32 %v3575, %v3694
        %v3954 = vmul.f32 %v3576, %v3699
        %v3955 = vmul.f32 %v3577, %v3704
        %v3956 = vmul.f32 %v3578, %v3709
        %v3957 = vmul.f32 %v3579, %v3714
        %v3958 = vmul.f32 %v3580, %v3719
        %v3959 = vmul.f32 %v3581, %v3724
        %v3960 = vmul.f32 %v3582, %v3729
        %v3961 = vmul.f32 %v3583, %v3734
        %v3962 = vmul.f32 %v3584, %v3739
        %v3963 = vmul.f32 %v3585, %v3744
        %v3964 = vmul.f32 %v3586, %v3749
        %v3965 = vmul.f32 %v3587, %v3754
        %v3966 = vmul.f32 %v3588, %v3759
        %v3967 = vmul.f32 %v3589, %v3764
        %v3968 = vmul.f32 %v3590, %v3769
        %v3969 = vmul.f32 %v3591, %v3774
        %v3970 = vmul.f32 %v3592, %v3779
        %v3971 = vmul.f32 %v3593, %v3784
        %v3972 = vmul.f32 %v3594, %v3789
        %v3973 = vmul.f32 %v3595, %v3794
        %v3974 = vmul.f32 %v3596, %v3799
        %v3975 = vmul.f32 %v3597, %v3804
        %v3976 = vmul.f32 %v3598, %v3809
        %v3977 = vmul.f32 %v3599, %v3814
        %v3978 = vmul.f32 %v3600, %v3819
        %v3979 = vmul.f32 %v3601, %v3824
        %v3980 = vmul.f32 %v3602, %v3829
        %v3981 = vmul.f32 %v3603, %v3834
        %v3982 = vmul.f32 %v3604, %v3839
        %v3983 = vmul.f32 %v3605, %v3844
        %v3984 = vmul.f32 %v3606, %v3849
        %v3985 = vmul.f32 %v3607, %v3854
        %v3986 = vmul.f32 %v3608, %v3859
        %v3987 = vmul.f32 %v3609, %v3864
        %v3988 = vmul.f32 %v3610, %v3869
        %v3989 = vmul.f32 %v3611, %v3874
        %v3990 = vmul.f32 %v3612, %v3879
        %v3991 = vmul.f32 %v3613, %v3884
        %v3992 = vmul.f32 %v3614, %v3889
        %v3993 = vmul.f32 %v3615, %v3894
        %v3994 = vmul.f32 %v3616, %v3899
        %v3995 = vmul.f32 %v3617, %v3904
        %v3996 = vmul.f32 %v3618, %v3909
        %v3997 = vmul.f32 %v3619, %v3914
        %v3998 = vmul.f32 %v3620, %v3919
        %v3999 = vmul.f32 %v3621, %v3924
        %v4000 = vmul.f32 %v3622, %v3929
        %v4001 = vmul.f32 %v3623, %v3934
        %v4002 = vmul.f32 %v3624, %v3939
        %v4003 = vmul.f32 %v3625, %v3944
        %v4004 = vmul.f32 %v3626, %v3949
        %4005 = vst.msk [vmem:[#allocation2] sm:$0xff] %vm3014, %v3951
        %4006 = vst.msk [vmem:[#allocation2 + $0x8] sm:$0xff] %vm3014, %v3952
        %4007 = vst.msk [vmem:[#allocation2 + $0x10] sm:$0xff] %vm3014, %v3953
        %4008 = vst.msk [vmem:[#allocation2 + $0x18] sm:$0xff] %vm3014, %v3954
        %4009 = vst.msk [vmem:[#allocation2 + $0x20] sm:$0xff] %vm3014, %v3955
        %4010 = vst.msk [vmem:[#allocation2 + $0x28] sm:$0xff] %vm3014, %v3956
        %4011 = vst.msk [vmem:[#allocation2 + $0x30] sm:$0xff] %vm3014, %v3957
        %4012 = vst.msk [vmem:[#allocation2 + $0x38] sm:$0xff] %vm3014, %v3958
        %4013 = vst.msk [vmem:[#allocation2 + $0x40] sm:$0xff] %vm3014, %v3959
        %4014 = vst.msk [vmem:[#allocation2 + $0x48] sm:$0xff] %vm3014, %v3960
        %4015 = vst.msk [vmem:[#allocation2 + $0x50] sm:$0xff] %vm3014, %v3961
        %4016 = vst.msk [vmem:[#allocation2 + $0x58] sm:$0xff] %vm3014, %v3962
        %4017 = vst.msk [vmem:[#allocation2 + $0x60] sm:$0xff] %vm3014, %v3963
        %4018 = vst.msk [vmem:[#allocation2 + $0x68] sm:$0xff] %vm3014, %v3964
        %4019 = vst.msk [vmem:[#allocation2 + $0x70] sm:$0xff] %vm3014, %v3965
        %4020 = vst.msk [vmem:[#allocation2 + $0x78] sm:$0xff] %vm3014, %v3966
        %4021 = vst.msk [vmem:[#allocation2 + $0x80] sm:$0xff] %vm3014, %v3967
        %4022 = vst.msk [vmem:[#allocation2 + $0x88] sm:$0xff] %vm3014, %v3968
        %4023 = vst.msk [vmem:[#allocation2 + $0x90] sm:$0xff] %vm3014, %v3969
        %4024 = vst.msk [vmem:[#allocation2 + $0x98] sm:$0xff] %vm3014, %v3970
        %4025 = vst.msk [vmem:[#allocation2 + $0xa0] sm:$0xff] %vm3014, %v3971
        %4026 = vst.msk [vmem:[#allocation2 + $0xa8] sm:$0xff] %vm3014, %v3972
        %4027 = vst.msk [vmem:[#allocation2 + $0xb0] sm:$0xff] %vm3014, %v3973
        %4028 = vst.msk [vmem:[#allocation2 + $0xb8] sm:$0xff] %vm3014, %v3974
        %4029 = vst.msk [vmem:[#allocation2 + $0xc0] sm:$0xff] %vm3014, %v3975
        %4030 = vst.msk [vmem:[#allocation2 + $0xc8] sm:$0xff] %vm3014, %v3976
        %4031 = vst.msk [vmem:[#allocation2 + $0xd0] sm:$0xff] %vm3014, %v3977
        %4032 = vst.msk [vmem:[#allocation2 + $0xd8] sm:$0xff] %vm3014, %v3978
        %4033 = vst.msk [vmem:[#allocation2 + $0xe0] sm:$0xff] %vm3014, %v3979
        %4034 = vst.msk [vmem:[#allocation2 + $0xe8] sm:$0xff] %vm3014, %v3980
        %4035 = vst.msk [vmem:[#allocation2 + $0xf0] sm:$0xff] %vm3014, %v3981
        %4036 = vst.msk [vmem:[#allocation2 + $0xf8] sm:$0xff] %vm3014, %v3982
        %4037 = vst.msk [vmem:[#allocation2 + $0x100] sm:$0xff] %vm3014, %v3983
        %4038 = vst.msk [vmem:[#allocation2 + $0x108] sm:$0xff] %vm3014, %v3984
        %4039 = vst.msk [vmem:[#allocation2 + $0x110] sm:$0xff] %vm3014, %v3985
        %4040 = vst.msk [vmem:[#allocation2 + $0x118] sm:$0xff] %vm3014, %v3986
        %4041 = vst.msk [vmem:[#allocation2 + $0x120] sm:$0xff] %vm3014, %v3987
        %4042 = vst.msk [vmem:[#allocation2 + $0x128] sm:$0xff] %vm3014, %v3988
        %4043 = vst.msk [vmem:[#allocation2 + $0x130] sm:$0xff] %vm3014, %v3989
        %4044 = vst.msk [vmem:[#allocation2 + $0x138] sm:$0xff] %vm3014, %v3990
        %4045 = vst.msk [vmem:[#allocation2 + $0x140] sm:$0xff] %vm3014, %v3991
        %4046 = vst.msk [vmem:[#allocation2 + $0x148] sm:$0xff] %vm3014, %v3992
        %4047 = vst.msk [vmem:[#allocation2 + $0x150] sm:$0xff] %vm3014, %v3993
        %4048 = vst.msk [vmem:[#allocation2 + $0x158] sm:$0xff] %vm3014, %v3994
        %4049 = vst.msk [vmem:[#allocation2 + $0x160] sm:$0xff] %vm3014, %v3995
        %4050 = vst.msk [vmem:[#allocation2 + $0x168] sm:$0xff] %vm3014, %v3996
        %4051 = vst.msk [vmem:[#allocation2 + $0x170] sm:$0xff] %vm3014, %v3997
        %4052 = vst.msk [vmem:[#allocation2 + $0x178] sm:$0xff] %vm3014, %v3998
        %4053 = vst.msk [vmem:[#allocation2 + $0x180] sm:$0xff] %vm3014, %v3999
        %4054 = vst.msk [vmem:[#allocation2 + $0x188] sm:$0xff] %vm3014, %v4000
        %4055 = vst.msk [vmem:[#allocation2 + $0x190] sm:$0xff] %vm3014, %v4001
        %4056 = vst.msk [vmem:[#allocation2 + $0x198] sm:$0xff] %vm3014, %v4002
        %4057 = vst.msk [vmem:[#allocation2 + $0x1a0] sm:$0xff] %vm3014, %v4003
        %4058 = vst.msk [vmem:[#allocation2 + $0x1a8] sm:$0xff] %vm3014, %v4004
        %v4059 = vld [vmem:[#allocation2] sm:$0xff]
        %v4060 = vld [vmem:[#allocation2 + $0x8] sm:$0xff]
        %v4061 = vld [vmem:[#allocation2 + $0x18] sm:$0xff]
        %v4062 = vld [vmem:[#allocation2 + $0x20] sm:$0xff]
        %v4063 = vld [vmem:[#allocation2 + $0x30] sm:$0xff]
        %v4064 = vld [vmem:[#allocation2 + $0x38] sm:$0xff]
        %v4065 = vld [vmem:[#allocation2 + $0x48] sm:$0xff]
        %v4066 = vld [vmem:[#allocation2 + $0x50] sm:$0xff]
        %v4067 = vld [vmem:[#allocation2 + $0x60] sm:$0xff]
        %v4068 = vld [vmem:[#allocation2 + $0x68] sm:$0xff]
        %v4069 = vld [vmem:[#allocation2 + $0x78] sm:$0xff]
        %v4070 = vld [vmem:[#allocation2 + $0x80] sm:$0xff]
        %v4071 = vld [vmem:[#allocation2 + $0x90] sm:$0xff]
        %v4072 = vld [vmem:[#allocation2 + $0x98] sm:$0xff]
        %v4073 = vld [vmem:[#allocation2 + $0xa8] sm:$0xff]
        %v4074 = vld [vmem:[#allocation2 + $0xb0] sm:$0xff]
        %v4075 = vld [vmem:[#allocation2 + $0xc0] sm:$0xff]
        %v4076 = vld [vmem:[#allocation2 + $0xc8] sm:$0xff]
        %v4077 = vld [vmem:[#allocation2 + $0xd8] sm:$0xff]
        %v4078 = vld [vmem:[#allocation2 + $0xe0] sm:$0xff]
        %v4079 = vld [vmem:[#allocation2 + $0xf0] sm:$0xff]
        %v4080 = vld [vmem:[#allocation2 + $0xf8] sm:$0xff]
        %v4081 = vld [vmem:[#allocation2 + $0x108] sm:$0xff]
        %v4082 = vld [vmem:[#allocation2 + $0x110] sm:$0xff]
        %v4083 = vld [vmem:[#allocation2 + $0x120] sm:$0xff]
        %v4084 = vld [vmem:[#allocation2 + $0x128] sm:$0xff]
        %v4085 = vld [vmem:[#allocation2 + $0x138] sm:$0xff]
        %v4086 = vld [vmem:[#allocation2 + $0x140] sm:$0xff]
        %v4087 = vld [vmem:[#allocation2 + $0x150] sm:$0xff]
        %v4088 = vld [vmem:[#allocation2 + $0x158] sm:$0xff]
        %v4089 = vld [vmem:[#allocation2 + $0x168] sm:$0xff]
        %v4090 = vld [vmem:[#allocation2 + $0x170] sm:$0xff]
        %v4091 = vld [vmem:[#allocation2 + $0x1] sm:$0xff]
        %v4092 = vld [vmem:[#allocation2 + $0x9] sm:$0xff]
        %v4093 = vld [vmem:[#allocation2 + $0x19] sm:$0xff]
        %v4094 = vld [vmem:[#allocation2 + $0x21] sm:$0xff]
        %v4095 = vld [vmem:[#allocation2 + $0x31] sm:$0xff]
        %v4096 = vld [vmem:[#allocation2 + $0x39] sm:$0xff]
        %v4097 = vld [vmem:[#allocation2 + $0x49] sm:$0xff]
        %v4098 = vld [vmem:[#allocation2 + $0x51] sm:$0xff]
        %v4099 = vld [vmem:[#allocation2 + $0x61] sm:$0xff]
        %v4100 = vld [vmem:[#allocation2 + $0x69] sm:$0xff]
        %v4101 = vld [vmem:[#allocation2 + $0x79] sm:$0xff]
        %v4102 = vld [vmem:[#allocation2 + $0x81] sm:$0xff]
        %v4103 = vld [vmem:[#allocation2 + $0x91] sm:$0xff]
        %v4104 = vld [vmem:[#allocation2 + $0x99] sm:$0xff]
        %v4105 = vld [vmem:[#allocation2 + $0xa9] sm:$0xff]
        %v4106 = vld [vmem:[#allocation2 + $0xb1] sm:$0xff]
        %v4107 = vld [vmem:[#allocation2 + $0xc1] sm:$0xff]
        %v4108 = vld [vmem:[#allocation2 + $0xc9] sm:$0xff]
        %v4109 = vld [vmem:[#allocation2 + $0xd9] sm:$0xff]
        %v4110 = vld [vmem:[#allocation2 + $0xe1] sm:$0xff]
        %v4111 = vld [vmem:[#allocation2 + $0xf1] sm:$0xff]
        %v4112 = vld [vmem:[#allocation2 + $0xf9] sm:$0xff]
        %v4113 = vld [vmem:[#allocation2 + $0x109] sm:$0xff]
        %v4114 = vld [vmem:[#allocation2 + $0x111] sm:$0xff]
        %v4115 = vld [vmem:[#allocation2 + $0x121] sm:$0xff]
        %v4116 = vld [vmem:[#allocation2 + $0x129] sm:$0xff]
        %v4117 = vld [vmem:[#allocation2 + $0x139] sm:$0xff]
        %v4118 = vld [vmem:[#allocation2 + $0x141] sm:$0xff]
        %v4119 = vld [vmem:[#allocation2 + $0x151] sm:$0xff]
        %v4120 = vld [vmem:[#allocation2 + $0x159] sm:$0xff]
        %v4121 = vld [vmem:[#allocation2 + $0x169] sm:$0xff]
        %v4122 = vld [vmem:[#allocation2 + $0x171] sm:$0xff]
        %v4123 = vld [vmem:[#allocation2 + $0x2] sm:$0xff]
        %v4124 = vld [vmem:[#allocation2 + $0xa] sm:$0xff]
        %v4125 = vld [vmem:[#allocation2 + $0x1a] sm:$0xff]
        %v4126 = vld [vmem:[#allocation2 + $0x22] sm:$0xff]
        %v4127 = vld [vmem:[#allocation2 + $0x32] sm:$0xff]
        %v4128 = vld [vmem:[#allocation2 + $0x3a] sm:$0xff]
        %v4129 = vld [vmem:[#allocation2 + $0x4a] sm:$0xff]
        %v4130 = vld [vmem:[#allocation2 + $0x52] sm:$0xff]
        %v4131 = vld [vmem:[#allocation2 + $0x62] sm:$0xff]
        %v4132 = vld [vmem:[#allocation2 + $0x6a] sm:$0xff]
        %v4133 = vld [vmem:[#allocation2 + $0x7a] sm:$0xff]
        %v4134 = vld [vmem:[#allocation2 + $0x82] sm:$0xff]
        %v4135 = vld [vmem:[#allocation2 + $0x92] sm:$0xff]
        %v4136 = vld [vmem:[#allocation2 + $0x9a] sm:$0xff]
        %v4137 = vld [vmem:[#allocation2 + $0xaa] sm:$0xff]
        %v4138 = vld [vmem:[#allocation2 + $0xb2] sm:$0xff]
        %v4139 = vld [vmem:[#allocation2 + $0xc2] sm:$0xff]
        %v4140 = vld [vmem:[#allocation2 + $0xca] sm:$0xff]
        %v4141 = vld [vmem:[#allocation2 + $0xda] sm:$0xff]
        %v4142 = vld [vmem:[#allocation2 + $0xe2] sm:$0xff]
        %v4143 = vld [vmem:[#allocation2 + $0xf2] sm:$0xff]
        %v4144 = vld [vmem:[#allocation2 + $0xfa] sm:$0xff]
        %v4145 = vld [vmem:[#allocation2 + $0x10a] sm:$0xff]
        %v4146 = vld [vmem:[#allocation2 + $0x112] sm:$0xff]
        %v4147 = vld [vmem:[#allocation2 + $0x122] sm:$0xff]
        %v4148 = vld [vmem:[#allocation2 + $0x12a] sm:$0xff]
        %v4149 = vld [vmem:[#allocation2 + $0x13a] sm:$0xff]
        %v4150 = vld [vmem:[#allocation2 + $0x142] sm:$0xff]
        %v4151 = vld [vmem:[#allocation2 + $0x152] sm:$0xff]
        %v4152 = vld [vmem:[#allocation2 + $0x15a] sm:$0xff]
        %v4153 = vld [vmem:[#allocation2 + $0x16a] sm:$0xff]
        %v4154 = vld [vmem:[#allocation2 + $0x172] sm:$0xff]
        %s4155 = scalar_lea.vmem [#allocation2], 24
        %v4156 = vld [vmem:[%s4155] sm:$0xff]
        %v4157 = vld [vmem:[%s4155 + $0x8] sm:$0xff]
        %v4158 = vld [vmem:[%s4155 + $0x18] sm:$0xff]
        %v4159 = vld [vmem:[%s4155 + $0x20] sm:$0xff]
        %v4160 = vld [vmem:[%s4155 + $0x30] sm:$0xff]
        %v4161 = vld [vmem:[%s4155 + $0x38] sm:$0xff]
        %v4162 = vld [vmem:[%s4155 + $0x48] sm:$0xff]
        %v4163 = vld [vmem:[%s4155 + $0x50] sm:$0xff]
        %v4164 = vld [vmem:[%s4155 + $0x60] sm:$0xff]
        %v4165 = vld [vmem:[%s4155 + $0x68] sm:$0xff]
        %v4166 = vld [vmem:[%s4155 + $0x78] sm:$0xff]
        %v4167 = vld [vmem:[%s4155 + $0x80] sm:$0xff]
        %v4168 = vld [vmem:[%s4155 + $0x90] sm:$0xff]
        %v4169 = vld [vmem:[%s4155 + $0x98] sm:$0xff]
        %v4170 = vld [vmem:[%s4155 + $0xa8] sm:$0xff]
        %v4171 = vld [vmem:[%s4155 + $0xb0] sm:$0xff]
        %v4172 = vld [vmem:[%s4155 + $0xc0] sm:$0xff]
        %v4173 = vld [vmem:[%s4155 + $0xc8] sm:$0xff]
        %v4174 = vld [vmem:[%s4155 + $0xd8] sm:$0xff]
        %v4175 = vld [vmem:[%s4155 + $0xe0] sm:$0xff]
        %v4176 = vld [vmem:[%s4155 + $0xf0] sm:$0xff]
        %v4177 = vld [vmem:[%s4155 + $0xf8] sm:$0xff]
        %v4178 = vld [vmem:[%s4155 + $0x108] sm:$0xff]
        %v4179 = vld [vmem:[%s4155 + $0x110] sm:$0xff]
        %v4180 = vld [vmem:[%s4155 + $0x120] sm:$0xff]
        %v4181 = vld [vmem:[%s4155 + $0x128] sm:$0xff]
        %v4182 = vld [vmem:[%s4155 + $0x138] sm:$0xff]
        %v4183 = vld [vmem:[%s4155 + $0x140] sm:$0xff]
        %v4184 = vld [vmem:[%s4155 + $0x150] sm:$0xff]
        %v4185 = vld [vmem:[%s4155 + $0x158] sm:$0xff]
        %v4186 = vld [vmem:[%s4155 + $0x168] sm:$0xff]
        %v4187 = vld [vmem:[%s4155 + $0x170] sm:$0xff]
        %v4188 = vld [vmem:[%s4155 + $0x1] sm:$0xff]
        %v4189 = vld [vmem:[%s4155 + $0x9] sm:$0xff]
        %v4190 = vld [vmem:[%s4155 + $0x19] sm:$0xff]
        %v4191 = vld [vmem:[%s4155 + $0x21] sm:$0xff]
        %v4192 = vld [vmem:[%s4155 + $0x31] sm:$0xff]
        %v4193 = vld [vmem:[%s4155 + $0x39] sm:$0xff]
        %v4194 = vld [vmem:[%s4155 + $0x49] sm:$0xff]
        %v4195 = vld [vmem:[%s4155 + $0x51] sm:$0xff]
        %v4196 = vld [vmem:[%s4155 + $0x61] sm:$0xff]
        %v4197 = vld [vmem:[%s4155 + $0x69] sm:$0xff]
        %v4198 = vld [vmem:[%s4155 + $0x79] sm:$0xff]
        %v4199 = vld [vmem:[%s4155 + $0x81] sm:$0xff]
        %v4200 = vld [vmem:[%s4155 + $0x91] sm:$0xff]
        %v4201 = vld [vmem:[%s4155 + $0x99] sm:$0xff]
        %v4202 = vld [vmem:[%s4155 + $0xa9] sm:$0xff]
        %v4203 = vld [vmem:[%s4155 + $0xb1] sm:$0xff]
        %v4204 = vld [vmem:[%s4155 + $0xc1] sm:$0xff]
        %v4205 = vld [vmem:[%s4155 + $0xc9] sm:$0xff]
        %v4206 = vld [vmem:[%s4155 + $0xd9] sm:$0xff]
        %v4207 = vld [vmem:[%s4155 + $0xe1] sm:$0xff]
        %v4208 = vld [vmem:[%s4155 + $0xf1] sm:$0xff]
        %v4209 = vld [vmem:[%s4155 + $0xf9] sm:$0xff]
        %v4210 = vld [vmem:[%s4155 + $0x109] sm:$0xff]
        %v4211 = vld [vmem:[%s4155 + $0x111] sm:$0xff]
        %v4212 = vld [vmem:[%s4155 + $0x121] sm:$0xff]
        %v4213 = vld [vmem:[%s4155 + $0x129] sm:$0xff]
        %v4214 = vld [vmem:[%s4155 + $0x139] sm:$0xff]
        %v4215 = vld [vmem:[%s4155 + $0x141] sm:$0xff]
        %v4216 = vld [vmem:[%s4155 + $0x151] sm:$0xff]
        %v4217 = vld [vmem:[%s4155 + $0x159] sm:$0xff]
        %v4218 = vld [vmem:[%s4155 + $0x169] sm:$0xff]
        %v4219 = vld [vmem:[%s4155 + $0x171] sm:$0xff]
        %v4220 = vld [vmem:[%s4155 + $0x2] sm:$0xff]
        %v4221 = vld [vmem:[%s4155 + $0xa] sm:$0xff]
        %v4222 = vld [vmem:[%s4155 + $0x1a] sm:$0xff]
        %v4223 = vld [vmem:[%s4155 + $0x22] sm:$0xff]
        %v4224 = vld [vmem:[%s4155 + $0x32] sm:$0xff]
        %v4225 = vld [vmem:[%s4155 + $0x3a] sm:$0xff]
        %v4226 = vld [vmem:[%s4155 + $0x4a] sm:$0xff]
        %v4227 = vld [vmem:[%s4155 + $0x52] sm:$0xff]
        %v4228 = vld [vmem:[%s4155 + $0x62] sm:$0xff]
        %v4229 = vld [vmem:[%s4155 + $0x6a] sm:$0xff]
        %v4230 = vld [vmem:[%s4155 + $0x7a] sm:$0xff]
        %v4231 = vld [vmem:[%s4155 + $0x82] sm:$0xff]
        %v4232 = vld [vmem:[%s4155 + $0x92] sm:$0xff]
        %v4233 = vld [vmem:[%s4155 + $0x9a] sm:$0xff]
        %v4234 = vld [vmem:[%s4155 + $0xaa] sm:$0xff]
        %v4235 = vld [vmem:[%s4155 + $0xb2] sm:$0xff]
        %v4236 = vld [vmem:[%s4155 + $0xc2] sm:$0xff]
        %v4237 = vld [vmem:[%s4155 + $0xca] sm:$0xff]
        %v4238 = vld [vmem:[%s4155 + $0xda] sm:$0xff]
        %v4239 = vld [vmem:[%s4155 + $0xe2] sm:$0xff]
        %v4240 = vld [vmem:[%s4155 + $0xf2] sm:$0xff]
        %v4241 = vld [vmem:[%s4155 + $0xfa] sm:$0xff]
        %v4242 = vld [vmem:[%s4155 + $0x10a] sm:$0xff]
        %v4243 = vld [vmem:[%s4155 + $0x112] sm:$0xff]
        %v4244 = vld [vmem:[%s4155 + $0x122] sm:$0xff]
        %v4245 = vld [vmem:[%s4155 + $0x12a] sm:$0xff]
        %v4246 = vld [vmem:[%s4155 + $0x13a] sm:$0xff]
        %v4247 = vld [vmem:[%s4155 + $0x142] sm:$0xff]
        %v4248 = vld [vmem:[%s4155 + $0x152] sm:$0xff]
        %v4249 = vld [vmem:[%s4155 + $0x15a] sm:$0xff]
        %v4250 = vld [vmem:[%s4155 + $0x16a] sm:$0xff]
        %v4251 = vld [vmem:[%s4155 + $0x172] sm:$0xff]
        %s4252 = scalar_lea.vmem [#allocation2], 48
        %v4253 = vld [vmem:[%s4252] sm:$0xff]
        %v4254 = vld [vmem:[%s4252 + $0x8] sm:$0xff]
        %v4255 = vld [vmem:[%s4252 + $0x18] sm:$0xff]
        %v4256 = vld [vmem:[%s4252 + $0x20] sm:$0xff]
        %v4257 = vld [vmem:[%s4252 + $0x30] sm:$0xff]
        %v4258 = vld [vmem:[%s4252 + $0x38] sm:$0xff]
        %v4259 = vld [vmem:[%s4252 + $0x48] sm:$0xff]
        %v4260 = vld [vmem:[%s4252 + $0x50] sm:$0xff]
        %v4261 = vld [vmem:[%s4252 + $0x60] sm:$0xff]
        %v4262 = vld [vmem:[%s4252 + $0x68] sm:$0xff]
        %v4263 = vld [vmem:[%s4252 + $0x78] sm:$0xff]
        %v4264 = vld [vmem:[%s4252 + $0x80] sm:$0xff]
        %v4265 = vld [vmem:[%s4252 + $0x90] sm:$0xff]
        %v4266 = vld [vmem:[%s4252 + $0x98] sm:$0xff]
        %v4267 = vld [vmem:[%s4252 + $0xa8] sm:$0xff]
        %v4268 = vld [vmem:[%s4252 + $0xb0] sm:$0xff]
        %v4269 = vld [vmem:[%s4252 + $0xc0] sm:$0xff]
        %v4270 = vld [vmem:[%s4252 + $0xc8] sm:$0xff]
        %v4271 = vld [vmem:[%s4252 + $0xd8] sm:$0xff]
        %v4272 = vld [vmem:[%s4252 + $0xe0] sm:$0xff]
        %v4273 = vld [vmem:[%s4252 + $0xf0] sm:$0xff]
        %v4274 = vld [vmem:[%s4252 + $0xf8] sm:$0xff]
        %v4275 = vld [vmem:[%s4252 + $0x108] sm:$0xff]
        %v4276 = vld [vmem:[%s4252 + $0x110] sm:$0xff]
        %v4277 = vld [vmem:[%s4252 + $0x120] sm:$0xff]
        %v4278 = vld [vmem:[%s4252 + $0x128] sm:$0xff]
        %v4279 = vld [vmem:[%s4252 + $0x138] sm:$0xff]
        %v4280 = vld [vmem:[%s4252 + $0x140] sm:$0xff]
        %v4281 = vld [vmem:[%s4252 + $0x150] sm:$0xff]
        %v4282 = vld [vmem:[%s4252 + $0x158] sm:$0xff]
        %v4283 = vld [vmem:[%s4252 + $0x168] sm:$0xff]
        %v4284 = vld [vmem:[%s4252 + $0x170] sm:$0xff]
        %v4285 = vld [vmem:[%s4252 + $0x1] sm:$0xff]
        %v4286 = vld [vmem:[%s4252 + $0x9] sm:$0xff]
        %v4287 = vld [vmem:[%s4252 + $0x19] sm:$0xff]
        %v4288 = vld [vmem:[%s4252 + $0x21] sm:$0xff]
        %v4289 = vld [vmem:[%s4252 + $0x31] sm:$0xff]
        %v4290 = vld [vmem:[%s4252 + $0x39] sm:$0xff]
        %v4291 = vld [vmem:[%s4252 + $0x49] sm:$0xff]
        %v4292 = vld [vmem:[%s4252 + $0x51] sm:$0xff]
        %v4293 = vld [vmem:[%s4252 + $0x61] sm:$0xff]
        %v4294 = vld [vmem:[%s4252 + $0x69] sm:$0xff]
        %v4295 = vld [vmem:[%s4252 + $0x79] sm:$0xff]
        %v4296 = vld [vmem:[%s4252 + $0x81] sm:$0xff]
        %v4297 = vld [vmem:[%s4252 + $0x91] sm:$0xff]
        %v4298 = vld [vmem:[%s4252 + $0x99] sm:$0xff]
        %v4299 = vld [vmem:[%s4252 + $0xa9] sm:$0xff]
        %v4300 = vld [vmem:[%s4252 + $0xb1] sm:$0xff]
        %v4301 = vld [vmem:[%s4252 + $0xc1] sm:$0xff]
        %v4302 = vld [vmem:[%s4252 + $0xc9] sm:$0xff]
        %v4303 = vld [vmem:[%s4252 + $0xd9] sm:$0xff]
        %v4304 = vld [vmem:[%s4252 + $0xe1] sm:$0xff]
        %v4305 = vld [vmem:[%s4252 + $0xf1] sm:$0xff]
        %v4306 = vld [vmem:[%s4252 + $0xf9] sm:$0xff]
        %v4307 = vld [vmem:[%s4252 + $0x109] sm:$0xff]
        %v4308 = vld [vmem:[%s4252 + $0x111] sm:$0xff]
        %v4309 = vld [vmem:[%s4252 + $0x121] sm:$0xff]
        %v4310 = vld [vmem:[%s4252 + $0x129] sm:$0xff]
        %v4311 = vld [vmem:[%s4252 + $0x139] sm:$0xff]
        %v4312 = vld [vmem:[%s4252 + $0x141] sm:$0xff]
        %v4313 = vld [vmem:[%s4252 + $0x151] sm:$0xff]
        %v4314 = vld [vmem:[%s4252 + $0x159] sm:$0xff]
        %v4315 = vld [vmem:[%s4252 + $0x169] sm:$0xff]
        %v4316 = vld [vmem:[%s4252 + $0x171] sm:$0xff]
        %v4317 = vld [vmem:[%s4252 + $0x2] sm:$0xff]
        %v4318 = vld [vmem:[%s4252 + $0xa] sm:$0xff]
        %v4319 = vld [vmem:[%s4252 + $0x1a] sm:$0xff]
        %v4320 = vld [vmem:[%s4252 + $0x22] sm:$0xff]
        %v4321 = vld [vmem:[%s4252 + $0x32] sm:$0xff]
        %v4322 = vld [vmem:[%s4252 + $0x3a] sm:$0xff]
        %v4323 = vld [vmem:[%s4252 + $0x4a] sm:$0xff]
        %v4324 = vld [vmem:[%s4252 + $0x52] sm:$0xff]
        %v4325 = vld [vmem:[%s4252 + $0x62] sm:$0xff]
        %v4326 = vld [vmem:[%s4252 + $0x6a] sm:$0xff]
        %v4327 = vld [vmem:[%s4252 + $0x7a] sm:$0xff]
        %v4328 = vld [vmem:[%s4252 + $0x82] sm:$0xff]
        %v4329 = vld [vmem:[%s4252 + $0x92] sm:$0xff]
        %v4330 = vld [vmem:[%s4252 + $0x9a] sm:$0xff]
        %v4331 = vld [vmem:[%s4252 + $0xaa] sm:$0xff]
        %v4332 = vld [vmem:[%s4252 + $0xb2] sm:$0xff]
        %v4333 = vld [vmem:[%s4252 + $0xc2] sm:$0xff]
        %v4334 = vld [vmem:[%s4252 + $0xca] sm:$0xff]
        %v4335 = vld [vmem:[%s4252 + $0xda] sm:$0xff]
        %v4336 = vld [vmem:[%s4252 + $0xe2] sm:$0xff]
        %v4337 = vld [vmem:[%s4252 + $0xf2] sm:$0xff]
        %v4338 = vld [vmem:[%s4252 + $0xfa] sm:$0xff]
        %v4339 = vld [vmem:[%s4252 + $0x10a] sm:$0xff]
        %v4340 = vld [vmem:[%s4252 + $0x112] sm:$0xff]
        %v4341 = vld [vmem:[%s4252 + $0x122] sm:$0xff]
        %v4342 = vld [vmem:[%s4252 + $0x12a] sm:$0xff]
        %v4343 = vld [vmem:[%s4252 + $0x13a] sm:$0xff]
        %v4344 = vld [vmem:[%s4252 + $0x142] sm:$0xff]
        %v4345 = vld [vmem:[%s4252 + $0x152] sm:$0xff]
        %v4346 = vld [vmem:[%s4252 + $0x15a] sm:$0xff]
        %v4347 = vld [vmem:[%s4252 + $0x16a] sm:$0xff]
        %v4348 = vld [vmem:[%s4252 + $0x172] sm:$0xff]
        %4381 = vrot.lane.b32.xlu0 %v4091, 32
        %v4382 = vpop.permute.xlu0 %4381
        %4383 = vrot.lane.b32.xlu0 %v4092, 32
        %v4384 = vpop.permute.xlu0 %4383
        %4385 = vrot.lane.b32.xlu0 %v4093, 32
        %v4386 = vpop.permute.xlu0 %4385
        %4387 = vrot.lane.b32.xlu0 %v4094, 32
        %v4388 = vpop.permute.xlu0 %4387
        %4389 = vrot.lane.b32.xlu0 %v4095, 32
        %v4390 = vpop.permute.xlu0 %4389
        %4391 = vrot.lane.b32.xlu0 %v4096, 32
        %v4392 = vpop.permute.xlu0 %4391
        %4393 = vrot.lane.b32.xlu0 %v4097, 32
        %v4394 = vpop.permute.xlu0 %4393
        %4395 = vrot.lane.b32.xlu0 %v4098, 32
        %v4396 = vpop.permute.xlu0 %4395
        %4397 = vrot.lane.b32.xlu0 %v4099, 32
        %v4398 = vpop.permute.xlu0 %4397
        %4399 = vrot.lane.b32.xlu0 %v4100, 32
        %v4400 = vpop.permute.xlu0 %4399
        %4401 = vrot.lane.b32.xlu0 %v4101, 32
        %v4402 = vpop.permute.xlu0 %4401
        %4403 = vrot.lane.b32.xlu0 %v4102, 32
        %v4404 = vpop.permute.xlu0 %4403
        %4405 = vrot.lane.b32.xlu0 %v4103, 32
        %v4406 = vpop.permute.xlu0 %4405
        %4407 = vrot.lane.b32.xlu0 %v4104, 32
        %v4408 = vpop.permute.xlu0 %4407
        %4409 = vrot.lane.b32.xlu0 %v4105, 32
        %v4410 = vpop.permute.xlu0 %4409
        %4411 = vrot.lane.b32.xlu0 %v4106, 32
        %v4412 = vpop.permute.xlu0 %4411
        %4413 = vrot.lane.b32.xlu0 %v4107, 32
        %v4414 = vpop.permute.xlu0 %4413
        %4415 = vrot.lane.b32.xlu0 %v4108, 32
        %v4416 = vpop.permute.xlu0 %4415
        %4417 = vrot.lane.b32.xlu0 %v4109, 32
        %v4418 = vpop.permute.xlu0 %4417
        %4419 = vrot.lane.b32.xlu0 %v4110, 32
        %v4420 = vpop.permute.xlu0 %4419
        %4421 = vrot.lane.b32.xlu0 %v4111, 32
        %v4422 = vpop.permute.xlu0 %4421
        %4423 = vrot.lane.b32.xlu0 %v4112, 32
        %v4424 = vpop.permute.xlu0 %4423
        %4425 = vrot.lane.b32.xlu0 %v4113, 32
        %v4426 = vpop.permute.xlu0 %4425
        %4427 = vrot.lane.b32.xlu0 %v4114, 32
        %v4428 = vpop.permute.xlu0 %4427
        %4429 = vrot.lane.b32.xlu0 %v4115, 32
        %v4430 = vpop.permute.xlu0 %4429
        %4431 = vrot.lane.b32.xlu0 %v4116, 32
        %v4432 = vpop.permute.xlu0 %4431
        %4433 = vrot.lane.b32.xlu0 %v4117, 32
        %v4434 = vpop.permute.xlu0 %4433
        %4435 = vrot.lane.b32.xlu0 %v4118, 32
        %v4436 = vpop.permute.xlu0 %4435
        %4437 = vrot.lane.b32.xlu0 %v4119, 32
        %v4438 = vpop.permute.xlu0 %4437
        %4439 = vrot.lane.b32.xlu0 %v4120, 32
        %v4440 = vpop.permute.xlu0 %4439
        %4441 = vrot.lane.b32.xlu0 %v4121, 32
        %v4442 = vpop.permute.xlu0 %4441
        %4443 = vrot.lane.b32.xlu0 %v4122, 32
        %v4444 = vpop.permute.xlu0 %4443
        %4509 = vrot.lane.b32.xlu0 %v4123, 64
        %v4510 = vpop.permute.xlu0 %4509
        %4511 = vrot.lane.b32.xlu0 %v4124, 64
        %v4512 = vpop.permute.xlu0 %4511
        %4513 = vrot.lane.b32.xlu0 %v4125, 64
        %v4514 = vpop.permute.xlu0 %4513
        %4515 = vrot.lane.b32.xlu0 %v4126, 64
        %v4516 = vpop.permute.xlu0 %4515
        %4517 = vrot.lane.b32.xlu0 %v4127, 64
        %v4518 = vpop.permute.xlu0 %4517
        %4519 = vrot.lane.b32.xlu0 %v4128, 64
        %v4520 = vpop.permute.xlu0 %4519
        %4521 = vrot.lane.b32.xlu0 %v4129, 64
        %v4522 = vpop.permute.xlu0 %4521
        %4523 = vrot.lane.b32.xlu0 %v4130, 64
        %v4524 = vpop.permute.xlu0 %4523
        %4525 = vrot.lane.b32.xlu0 %v4131, 64
        %v4526 = vpop.permute.xlu0 %4525
        %4527 = vrot.lane.b32.xlu0 %v4132, 64
        %v4528 = vpop.permute.xlu0 %4527
        %4529 = vrot.lane.b32.xlu0 %v4133, 64
        %v4530 = vpop.permute.xlu0 %4529
        %4531 = vrot.lane.b32.xlu0 %v4134, 64
        %v4532 = vpop.permute.xlu0 %4531
        %4533 = vrot.lane.b32.xlu0 %v4135, 64
        %v4534 = vpop.permute.xlu0 %4533
        %4535 = vrot.lane.b32.xlu0 %v4136, 64
        %v4536 = vpop.permute.xlu0 %4535
        %4537 = vrot.lane.b32.xlu0 %v4137, 64
        %v4538 = vpop.permute.xlu0 %4537
        %4539 = vrot.lane.b32.xlu0 %v4138, 64
        %v4540 = vpop.permute.xlu0 %4539
        %4541 = vrot.lane.b32.xlu0 %v4139, 64
        %v4542 = vpop.permute.xlu0 %4541
        %4543 = vrot.lane.b32.xlu0 %v4140, 64
        %v4544 = vpop.permute.xlu0 %4543
        %4545 = vrot.lane.b32.xlu0 %v4141, 64
        %v4546 = vpop.permute.xlu0 %4545
        %4547 = vrot.lane.b32.xlu0 %v4142, 64
        %v4548 = vpop.permute.xlu0 %4547
        %4549 = vrot.lane.b32.xlu0 %v4143, 64
        %v4550 = vpop.permute.xlu0 %4549
        %4551 = vrot.lane.b32.xlu0 %v4144, 64
        %v4552 = vpop.permute.xlu0 %4551
        %4553 = vrot.lane.b32.xlu0 %v4145, 64
        %v4554 = vpop.permute.xlu0 %4553
        %4555 = vrot.lane.b32.xlu0 %v4146, 64
        %v4556 = vpop.permute.xlu0 %4555
        %4557 = vrot.lane.b32.xlu0 %v4147, 64
        %v4558 = vpop.permute.xlu0 %4557
        %4559 = vrot.lane.b32.xlu0 %v4148, 64
        %v4560 = vpop.permute.xlu0 %4559
        %4561 = vrot.lane.b32.xlu0 %v4149, 64
        %v4562 = vpop.permute.xlu0 %4561
        %4563 = vrot.lane.b32.xlu0 %v4150, 64
        %v4564 = vpop.permute.xlu0 %4563
        %4565 = vrot.lane.b32.xlu0 %v4151, 64
        %v4566 = vpop.permute.xlu0 %4565
        %4567 = vrot.lane.b32.xlu0 %v4152, 64
        %v4568 = vpop.permute.xlu0 %4567
        %4569 = vrot.lane.b32.xlu0 %v4153, 64
        %v4570 = vpop.permute.xlu0 %4569
        %4571 = vrot.lane.b32.xlu0 %v4154, 64
        %v4572 = vpop.permute.xlu0 %4571
        %4637 = vrot.lane.b32.xlu0 %v4156, 96
        %v4638 = vpop.permute.xlu0 %4637
        %4639 = vrot.lane.b32.xlu0 %v4157, 96
        %v4640 = vpop.permute.xlu0 %4639
        %4641 = vrot.lane.b32.xlu0 %v4158, 96
        %v4642 = vpop.permute.xlu0 %4641
        %4643 = vrot.lane.b32.xlu0 %v4159, 96
        %v4644 = vpop.permute.xlu0 %4643
        %4645 = vrot.lane.b32.xlu0 %v4160, 96
        %v4646 = vpop.permute.xlu0 %4645
        %4647 = vrot.lane.b32.xlu0 %v4161, 96
        %v4648 = vpop.permute.xlu0 %4647
        %4649 = vrot.lane.b32.xlu0 %v4162, 96
        %v4650 = vpop.permute.xlu0 %4649
        %4651 = vrot.lane.b32.xlu0 %v4163, 96
        %v4652 = vpop.permute.xlu0 %4651
        %4653 = vrot.lane.b32.xlu0 %v4164, 96
        %v4654 = vpop.permute.xlu0 %4653
        %4655 = vrot.lane.b32.xlu0 %v4165, 96
        %v4656 = vpop.permute.xlu0 %4655
        %4657 = vrot.lane.b32.xlu0 %v4166, 96
        %v4658 = vpop.permute.xlu0 %4657
        %4659 = vrot.lane.b32.xlu0 %v4167, 96
        %v4660 = vpop.permute.xlu0 %4659
        %4661 = vrot.lane.b32.xlu0 %v4168, 96
        %v4662 = vpop.permute.xlu0 %4661
        %4663 = vrot.lane.b32.xlu0 %v4169, 96
        %v4664 = vpop.permute.xlu0 %4663
        %4665 = vrot.lane.b32.xlu0 %v4170, 96
        %v4666 = vpop.permute.xlu0 %4665
        %4667 = vrot.lane.b32.xlu0 %v4171, 96
        %v4668 = vpop.permute.xlu0 %4667
        %4669 = vrot.lane.b32.xlu0 %v4172, 96
        %v4670 = vpop.permute.xlu0 %4669
        %4671 = vrot.lane.b32.xlu0 %v4173, 96
        %v4672 = vpop.permute.xlu0 %4671
        %4673 = vrot.lane.b32.xlu0 %v4174, 96
        %v4674 = vpop.permute.xlu0 %4673
        %4675 = vrot.lane.b32.xlu0 %v4175, 96
        %v4676 = vpop.permute.xlu0 %4675
        %4677 = vrot.lane.b32.xlu0 %v4176, 96
        %v4678 = vpop.permute.xlu0 %4677
        %4679 = vrot.lane.b32.xlu0 %v4177, 96
        %v4680 = vpop.permute.xlu0 %4679
        %4681 = vrot.lane.b32.xlu0 %v4178, 96
        %v4682 = vpop.permute.xlu0 %4681
        %4683 = vrot.lane.b32.xlu0 %v4179, 96
        %v4684 = vpop.permute.xlu0 %4683
        %4685 = vrot.lane.b32.xlu0 %v4180, 96
        %v4686 = vpop.permute.xlu0 %4685
        %4687 = vrot.lane.b32.xlu0 %v4181, 96
        %v4688 = vpop.permute.xlu0 %4687
        %4689 = vrot.lane.b32.xlu0 %v4182, 96
        %v4690 = vpop.permute.xlu0 %4689
        %4691 = vrot.lane.b32.xlu0 %v4183, 96
        %v4692 = vpop.permute.xlu0 %4691
        %4693 = vrot.lane.b32.xlu0 %v4184, 96
        %v4694 = vpop.permute.xlu0 %4693
        %4695 = vrot.lane.b32.xlu0 %v4185, 96
        %v4696 = vpop.permute.xlu0 %4695
        %4697 = vrot.lane.b32.xlu0 %v4186, 96
        %v4698 = vpop.permute.xlu0 %4697
        %4699 = vrot.lane.b32.xlu0 %v4187, 96
        %v4700 = vpop.permute.xlu0 %4699
        %4765 = vrot.lane.b32.xlu0 %v4220, 32
        %v4766 = vpop.permute.xlu0 %4765
        %4767 = vrot.lane.b32.xlu0 %v4221, 32
        %v4768 = vpop.permute.xlu0 %4767
        %4769 = vrot.lane.b32.xlu0 %v4222, 32
        %v4770 = vpop.permute.xlu0 %4769
        %4771 = vrot.lane.b32.xlu0 %v4223, 32
        %v4772 = vpop.permute.xlu0 %4771
        %4773 = vrot.lane.b32.xlu0 %v4224, 32
        %v4774 = vpop.permute.xlu0 %4773
        %4775 = vrot.lane.b32.xlu0 %v4225, 32
        %v4776 = vpop.permute.xlu0 %4775
        %4777 = vrot.lane.b32.xlu0 %v4226, 32
        %v4778 = vpop.permute.xlu0 %4777
        %4779 = vrot.lane.b32.xlu0 %v4227, 32
        %v4780 = vpop.permute.xlu0 %4779
        %4781 = vrot.lane.b32.xlu0 %v4228, 32
        %v4782 = vpop.permute.xlu0 %4781
        %4783 = vrot.lane.b32.xlu0 %v4229, 32
        %v4784 = vpop.permute.xlu0 %4783
        %4785 = vrot.lane.b32.xlu0 %v4230, 32
        %v4786 = vpop.permute.xlu0 %4785
        %4787 = vrot.lane.b32.xlu0 %v4231, 32
        %v4788 = vpop.permute.xlu0 %4787
        %4789 = vrot.lane.b32.xlu0 %v4232, 32
        %v4790 = vpop.permute.xlu0 %4789
        %4791 = vrot.lane.b32.xlu0 %v4233, 32
        %v4792 = vpop.permute.xlu0 %4791
        %4793 = vrot.lane.b32.xlu0 %v4234, 32
        %v4794 = vpop.permute.xlu0 %4793
        %4795 = vrot.lane.b32.xlu0 %v4235, 32
        %v4796 = vpop.permute.xlu0 %4795
        %4797 = vrot.lane.b32.xlu0 %v4236, 32
        %v4798 = vpop.permute.xlu0 %4797
        %4799 = vrot.lane.b32.xlu0 %v4237, 32
        %v4800 = vpop.permute.xlu0 %4799
        %4801 = vrot.lane.b32.xlu0 %v4238, 32
        %v4802 = vpop.permute.xlu0 %4801
        %4803 = vrot.lane.b32.xlu0 %v4239, 32
        %v4804 = vpop.permute.xlu0 %4803
        %4805 = vrot.lane.b32.xlu0 %v4240, 32
        %v4806 = vpop.permute.xlu0 %4805
        %4807 = vrot.lane.b32.xlu0 %v4241, 32
        %v4808 = vpop.permute.xlu0 %4807
        %4809 = vrot.lane.b32.xlu0 %v4242, 32
        %v4810 = vpop.permute.xlu0 %4809
        %4811 = vrot.lane.b32.xlu0 %v4243, 32
        %v4812 = vpop.permute.xlu0 %4811
        %4813 = vrot.lane.b32.xlu0 %v4244, 32
        %v4814 = vpop.permute.xlu0 %4813
        %4815 = vrot.lane.b32.xlu0 %v4245, 32
        %v4816 = vpop.permute.xlu0 %4815
        %4817 = vrot.lane.b32.xlu0 %v4246, 32
        %v4818 = vpop.permute.xlu0 %4817
        %4819 = vrot.lane.b32.xlu0 %v4247, 32
        %v4820 = vpop.permute.xlu0 %4819
        %4821 = vrot.lane.b32.xlu0 %v4248, 32
        %v4822 = vpop.permute.xlu0 %4821
        %4823 = vrot.lane.b32.xlu0 %v4249, 32
        %v4824 = vpop.permute.xlu0 %4823
        %4825 = vrot.lane.b32.xlu0 %v4250, 32
        %v4826 = vpop.permute.xlu0 %4825
        %4827 = vrot.lane.b32.xlu0 %v4251, 32
        %v4828 = vpop.permute.xlu0 %4827
        %4893 = vrot.lane.b32.xlu0 %v4253, 64
        %v4894 = vpop.permute.xlu0 %4893
        %4895 = vrot.lane.b32.xlu0 %v4254, 64
        %v4896 = vpop.permute.xlu0 %4895
        %4897 = vrot.lane.b32.xlu0 %v4255, 64
        %v4898 = vpop.permute.xlu0 %4897
        %4899 = vrot.lane.b32.xlu0 %v4256, 64
        %v4900 = vpop.permute.xlu0 %4899
        %4901 = vrot.lane.b32.xlu0 %v4257, 64
        %v4902 = vpop.permute.xlu0 %4901
        %4903 = vrot.lane.b32.xlu0 %v4258, 64
        %v4904 = vpop.permute.xlu0 %4903
        %4905 = vrot.lane.b32.xlu0 %v4259, 64
        %v4906 = vpop.permute.xlu0 %4905
        %4907 = vrot.lane.b32.xlu0 %v4260, 64
        %v4908 = vpop.permute.xlu0 %4907
        %4909 = vrot.lane.b32.xlu0 %v4261, 64
        %v4910 = vpop.permute.xlu0 %4909
        %4911 = vrot.lane.b32.xlu0 %v4262, 64
        %v4912 = vpop.permute.xlu0 %4911
        %4913 = vrot.lane.b32.xlu0 %v4263, 64
        %v4914 = vpop.permute.xlu0 %4913
        %4915 = vrot.lane.b32.xlu0 %v4264, 64
        %v4916 = vpop.permute.xlu0 %4915
        %4917 = vrot.lane.b32.xlu0 %v4265, 64
        %v4918 = vpop.permute.xlu0 %4917
        %4919 = vrot.lane.b32.xlu0 %v4266, 64
        %v4920 = vpop.permute.xlu0 %4919
        %4921 = vrot.lane.b32.xlu0 %v4267, 64
        %v4922 = vpop.permute.xlu0 %4921
        %4923 = vrot.lane.b32.xlu0 %v4268, 64
        %v4924 = vpop.permute.xlu0 %4923
        %4925 = vrot.lane.b32.xlu0 %v4269, 64
        %v4926 = vpop.permute.xlu0 %4925
        %4927 = vrot.lane.b32.xlu0 %v4270, 64
        %v4928 = vpop.permute.xlu0 %4927
        %4929 = vrot.lane.b32.xlu0 %v4271, 64
        %v4930 = vpop.permute.xlu0 %4929
        %4931 = vrot.lane.b32.xlu0 %v4272, 64
        %v4932 = vpop.permute.xlu0 %4931
        %4933 = vrot.lane.b32.xlu0 %v4273, 64
        %v4934 = vpop.permute.xlu0 %4933
        %4935 = vrot.lane.b32.xlu0 %v4274, 64
        %v4936 = vpop.permute.xlu0 %4935
        %4937 = vrot.lane.b32.xlu0 %v4275, 64
        %v4938 = vpop.permute.xlu0 %4937
        %4939 = vrot.lane.b32.xlu0 %v4276, 64
        %v4940 = vpop.permute.xlu0 %4939
        %4941 = vrot.lane.b32.xlu0 %v4277, 64
        %v4942 = vpop.permute.xlu0 %4941
        %4943 = vrot.lane.b32.xlu0 %v4278, 64
        %v4944 = vpop.permute.xlu0 %4943
        %4945 = vrot.lane.b32.xlu0 %v4279, 64
        %v4946 = vpop.permute.xlu0 %4945
        %4947 = vrot.lane.b32.xlu0 %v4280, 64
        %v4948 = vpop.permute.xlu0 %4947
        %4949 = vrot.lane.b32.xlu0 %v4281, 64
        %v4950 = vpop.permute.xlu0 %4949
        %4951 = vrot.lane.b32.xlu0 %v4282, 64
        %v4952 = vpop.permute.xlu0 %4951
        %4953 = vrot.lane.b32.xlu0 %v4283, 64
        %v4954 = vpop.permute.xlu0 %4953
        %4955 = vrot.lane.b32.xlu0 %v4284, 64
        %v4956 = vpop.permute.xlu0 %4955
        %5021 = vrot.lane.b32.xlu0 %v4285, 96
        %v5022 = vpop.permute.xlu0 %5021
        %5023 = vrot.lane.b32.xlu0 %v4286, 96
        %v5024 = vpop.permute.xlu0 %5023
        %5025 = vrot.lane.b32.xlu0 %v4287, 96
        %v5026 = vpop.permute.xlu0 %5025
        %5027 = vrot.lane.b32.xlu0 %v4288, 96
        %v5028 = vpop.permute.xlu0 %5027
        %5029 = vrot.lane.b32.xlu0 %v4289, 96
        %v5030 = vpop.permute.xlu0 %5029
        %5031 = vrot.lane.b32.xlu0 %v4290, 96
        %v5032 = vpop.permute.xlu0 %5031
        %5033 = vrot.lane.b32.xlu0 %v4291, 96
        %v5034 = vpop.permute.xlu0 %5033
        %5035 = vrot.lane.b32.xlu0 %v4292, 96
        %v5036 = vpop.permute.xlu0 %5035
        %5037 = vrot.lane.b32.xlu0 %v4293, 96
        %v5038 = vpop.permute.xlu0 %5037
        %5039 = vrot.lane.b32.xlu0 %v4294, 96
        %v5040 = vpop.permute.xlu0 %5039
        %5041 = vrot.lane.b32.xlu0 %v4295, 96
        %v5042 = vpop.permute.xlu0 %5041
        %5043 = vrot.lane.b32.xlu0 %v4296, 96
        %v5044 = vpop.permute.xlu0 %5043
        %5045 = vrot.lane.b32.xlu0 %v4297, 96
        %v5046 = vpop.permute.xlu0 %5045
        %5047 = vrot.lane.b32.xlu0 %v4298, 96
        %v5048 = vpop.permute.xlu0 %5047
        %5049 = vrot.lane.b32.xlu0 %v4299, 96
        %v5050 = vpop.permute.xlu0 %5049
        %5051 = vrot.lane.b32.xlu0 %v4300, 96
        %v5052 = vpop.permute.xlu0 %5051
        %5053 = vrot.lane.b32.xlu0 %v4301, 96
        %v5054 = vpop.permute.xlu0 %5053
        %5055 = vrot.lane.b32.xlu0 %v4302, 96
        %v5056 = vpop.permute.xlu0 %5055
        %5057 = vrot.lane.b32.xlu0 %v4303, 96
        %v5058 = vpop.permute.xlu0 %5057
        %5059 = vrot.lane.b32.xlu0 %v4304, 96
        %v5060 = vpop.permute.xlu0 %5059
        %5061 = vrot.lane.b32.xlu0 %v4305, 96
        %v5062 = vpop.permute.xlu0 %5061
        %5063 = vrot.lane.b32.xlu0 %v4306, 96
        %v5064 = vpop.permute.xlu0 %5063
        %5065 = vrot.lane.b32.xlu0 %v4307, 96
        %v5066 = vpop.permute.xlu0 %5065
        %5067 = vrot.lane.b32.xlu0 %v4308, 96
        %v5068 = vpop.permute.xlu0 %5067
        %5069 = vrot.lane.b32.xlu0 %v4309, 96
        %v5070 = vpop.permute.xlu0 %5069
        %5071 = vrot.lane.b32.xlu0 %v4310, 96
        %v5072 = vpop.permute.xlu0 %5071
        %5073 = vrot.lane.b32.xlu0 %v4311, 96
        %v5074 = vpop.permute.xlu0 %5073
        %5075 = vrot.lane.b32.xlu0 %v4312, 96
        %v5076 = vpop.permute.xlu0 %5075
        %5077 = vrot.lane.b32.xlu0 %v4313, 96
        %v5078 = vpop.permute.xlu0 %5077
        %5079 = vrot.lane.b32.xlu0 %v4314, 96
        %v5080 = vpop.permute.xlu0 %5079
        %5081 = vrot.lane.b32.xlu0 %v4315, 96
        %v5082 = vpop.permute.xlu0 %5081
        %5083 = vrot.lane.b32.xlu0 %v4316, 96
        %v5084 = vpop.permute.xlu0 %5083
        %v5117 = vsel %vm3014, %v4059, %v4382
        %v5118 = vsel %vm3014, %v4060, %v4384
        %v5119 = vsel %vm3014, %v4061, %v4386
        %v5120 = vsel %vm3014, %v4062, %v4388
        %v5121 = vsel %vm3014, %v4063, %v4390
        %v5122 = vsel %vm3014, %v4064, %v4392
        %v5123 = vsel %vm3014, %v4065, %v4394
        %v5124 = vsel %vm3014, %v4066, %v4396
        %v5125 = vsel %vm3014, %v4067, %v4398
        %v5126 = vsel %vm3014, %v4068, %v4400
        %v5127 = vsel %vm3014, %v4069, %v4402
        %v5128 = vsel %vm3014, %v4070, %v4404
        %v5129 = vsel %vm3014, %v4071, %v4406
        %v5130 = vsel %vm3014, %v4072, %v4408
        %v5131 = vsel %vm3014, %v4073, %v4410
        %v5132 = vsel %vm3014, %v4074, %v4412
        %v5133 = vsel %vm3014, %v4075, %v4414
        %v5134 = vsel %vm3014, %v4076, %v4416
        %v5135 = vsel %vm3014, %v4077, %v4418
        %v5136 = vsel %vm3014, %v4078, %v4420
        %v5137 = vsel %vm3014, %v4079, %v4422
        %v5138 = vsel %vm3014, %v4080, %v4424
        %v5139 = vsel %vm3014, %v4081, %v4426
        %v5140 = vsel %vm3014, %v4082, %v4428
        %v5141 = vsel %vm3014, %v4083, %v4430
        %v5142 = vsel %vm3014, %v4084, %v4432
        %v5143 = vsel %vm3014, %v4085, %v4434
        %v5144 = vsel %vm3014, %v4086, %v4436
        %v5145 = vsel %vm3014, %v4087, %v4438
        %v5146 = vsel %vm3014, %v4088, %v4440
        %v5147 = vsel %vm3014, %v4089, %v4442
        %v5148 = vsel %vm3014, %v4090, %v4444
        %vm5149 = vcmask 523264
        %v5150 = vsel %vm5149, %v5117, %v4510
        %v5151 = vsel %vm5149, %v5118, %v4512
        %v5152 = vsel %vm5149, %v5119, %v4514
        %v5153 = vsel %vm5149, %v5120, %v4516
        %v5154 = vsel %vm5149, %v5121, %v4518
        %v5155 = vsel %vm5149, %v5122, %v4520
        %v5156 = vsel %vm5149, %v5123, %v4522
        %v5157 = vsel %vm5149, %v5124, %v4524
        %v5158 = vsel %vm5149, %v5125, %v4526
        %v5159 = vsel %vm5149, %v5126, %v4528
        %v5160 = vsel %vm5149, %v5127, %v4530
        %v5161 = vsel %vm5149, %v5128, %v4532
        %v5162 = vsel %vm5149, %v5129, %v4534
        %v5163 = vsel %vm5149, %v5130, %v4536
        %v5164 = vsel %vm5149, %v5131, %v4538
        %v5165 = vsel %vm5149, %v5132, %v4540
        %v5166 = vsel %vm5149, %v5133, %v4542
        %v5167 = vsel %vm5149, %v5134, %v4544
        %v5168 = vsel %vm5149, %v5135, %v4546
        %v5169 = vsel %vm5149, %v5136, %v4548
        %v5170 = vsel %vm5149, %v5137, %v4550
        %v5171 = vsel %vm5149, %v5138, %v4552
        %v5172 = vsel %vm5149, %v5139, %v4554
        %v5173 = vsel %vm5149, %v5140, %v4556
        %v5174 = vsel %vm5149, %v5141, %v4558
        %v5175 = vsel %vm5149, %v5142, %v4560
        %v5176 = vsel %vm5149, %v5143, %v4562
        %v5177 = vsel %vm5149, %v5144, %v4564
        %v5178 = vsel %vm5149, %v5145, %v4566
        %v5179 = vsel %vm5149, %v5146, %v4568
        %v5180 = vsel %vm5149, %v5147, %v4570
        %v5181 = vsel %vm5149, %v5148, %v4572
        %vm5182 = vcmask 785408
        %v5183 = vsel %vm5182, %v5150, %v4638
        %v5184 = vsel %vm5182, %v5151, %v4640
        %v5185 = vsel %vm5182, %v5152, %v4642
        %v5186 = vsel %vm5182, %v5153, %v4644
        %v5187 = vsel %vm5182, %v5154, %v4646
        %v5188 = vsel %vm5182, %v5155, %v4648
        %v5189 = vsel %vm5182, %v5156, %v4650
        %v5190 = vsel %vm5182, %v5157, %v4652
        %v5191 = vsel %vm5182, %v5158, %v4654
        %v5192 = vsel %vm5182, %v5159, %v4656
        %v5193 = vsel %vm5182, %v5160, %v4658
        %v5194 = vsel %vm5182, %v5161, %v4660
        %v5195 = vsel %vm5182, %v5162, %v4662
        %v5196 = vsel %vm5182, %v5163, %v4664
        %v5197 = vsel %vm5182, %v5164, %v4666
        %v5198 = vsel %vm5182, %v5165, %v4668
        %v5199 = vsel %vm5182, %v5166, %v4670
        %v5200 = vsel %vm5182, %v5167, %v4672
        %v5201 = vsel %vm5182, %v5168, %v4674
        %v5202 = vsel %vm5182, %v5169, %v4676
        %v5203 = vsel %vm5182, %v5170, %v4678
        %v5204 = vsel %vm5182, %v5171, %v4680
        %v5205 = vsel %vm5182, %v5172, %v4682
        %v5206 = vsel %vm5182, %v5173, %v4684
        %v5207 = vsel %vm5182, %v5174, %v4686
        %v5208 = vsel %vm5182, %v5175, %v4688
        %v5209 = vsel %vm5182, %v5176, %v4690
        %v5210 = vsel %vm5182, %v5177, %v4692
        %v5211 = vsel %vm5182, %v5178, %v4694
        %v5212 = vsel %vm5182, %v5179, %v4696
        %v5213 = vsel %vm5182, %v5180, %v4698
        %v5214 = vsel %vm5182, %v5181, %v4700
        %v5215 = vsel %vm3014, %v4188, %v4766
        %v5216 = vsel %vm3014, %v4189, %v4768
        %v5217 = vsel %vm3014, %v4190, %v4770
        %v5218 = vsel %vm3014, %v4191, %v4772
        %v5219 = vsel %vm3014, %v4192, %v4774
        %v5220 = vsel %vm3014, %v4193, %v4776
        %v5221 = vsel %vm3014, %v4194, %v4778
        %v5222 = vsel %vm3014, %v4195, %v4780
        %v5223 = vsel %vm3014, %v4196, %v4782
        %v5224 = vsel %vm3014, %v4197, %v4784
        %v5225 = vsel %vm3014, %v4198, %v4786
        %v5226 = vsel %vm3014, %v4199, %v4788
        %v5227 = vsel %vm3014, %v4200, %v4790
        %v5228 = vsel %vm3014, %v4201, %v4792
        %v5229 = vsel %vm3014, %v4202, %v4794
        %v5230 = vsel %vm3014, %v4203, %v4796
        %v5231 = vsel %vm3014, %v4204, %v4798
        %v5232 = vsel %vm3014, %v4205, %v4800
        %v5233 = vsel %vm3014, %v4206, %v4802
        %v5234 = vsel %vm3014, %v4207, %v4804
        %v5235 = vsel %vm3014, %v4208, %v4806
        %v5236 = vsel %vm3014, %v4209, %v4808
        %v5237 = vsel %vm3014, %v4210, %v4810
        %v5238 = vsel %vm3014, %v4211, %v4812
        %v5239 = vsel %vm3014, %v4212, %v4814
        %v5240 = vsel %vm3014, %v4213, %v4816
        %v5241 = vsel %vm3014, %v4214, %v4818
        %v5242 = vsel %vm3014, %v4215, %v4820
        %v5243 = vsel %vm3014, %v4216, %v4822
        %v5244 = vsel %vm3014, %v4217, %v4824
        %v5245 = vsel %vm3014, %v4218, %v4826
        %v5246 = vsel %vm3014, %v4219, %v4828
        %v5247 = vsel %vm5149, %v5215, %v4894
        %v5248 = vsel %vm5149, %v5216, %v4896
        %v5249 = vsel %vm5149, %v5217, %v4898
        %v5250 = vsel %vm5149, %v5218, %v4900
        %v5251 = vsel %vm5149, %v5219, %v4902
        %v5252 = vsel %vm5149, %v5220, %v4904
        %v5253 = vsel %vm5149, %v5221, %v4906
        %v5254 = vsel %vm5149, %v5222, %v4908
        %v5255 = vsel %vm5149, %v5223, %v4910
        %v5256 = vsel %vm5149, %v5224, %v4912
        %v5257 = vsel %vm5149, %v5225, %v4914
        %v5258 = vsel %vm5149, %v5226, %v4916
        %v5259 = vsel %vm5149, %v5227, %v4918
        %v5260 = vsel %vm5149, %v5228, %v4920
        %v5261 = vsel %vm5149, %v5229, %v4922
        %v5262 = vsel %vm5149, %v5230, %v4924
        %v5263 = vsel %vm5149, %v5231, %v4926
        %v5264 = vsel %vm5149, %v5232, %v4928
        %v5265 = vsel %vm5149, %v5233, %v4930
        %v5266 = vsel %vm5149, %v5234, %v4932
        %v5267 = vsel %vm5149, %v5235, %v4934
        %v5268 = vsel %vm5149, %v5236, %v4936
        %v5269 = vsel %vm5149, %v5237, %v4938
        %v5270 = vsel %vm5149, %v5238, %v4940
        %v5271 = vsel %vm5149, %v5239, %v4942
        %v5272 = vsel %vm5149, %v5240, %v4944
        %v5273 = vsel %vm5149, %v5241, %v4946
        %v5274 = vsel %vm5149, %v5242, %v4948
        %v5275 = vsel %vm5149, %v5243, %v4950
        %v5276 = vsel %vm5149, %v5244, %v4952
        %v5277 = vsel %vm5149, %v5245, %v4954
        %v5278 = vsel %vm5149, %v5246, %v4956
        %v5279 = vsel %vm5182, %v5247, %v5022
        %v5280 = vsel %vm5182, %v5248, %v5024
        %v5281 = vsel %vm5182, %v5249, %v5026
        %v5282 = vsel %vm5182, %v5250, %v5028
        %v5283 = vsel %vm5182, %v5251, %v5030
        %v5284 = vsel %vm5182, %v5252, %v5032
        %v5285 = vsel %vm5182, %v5253, %v5034
        %v5286 = vsel %vm5182, %v5254, %v5036
        %v5287 = vsel %vm5182, %v5255, %v5038
        %v5288 = vsel %vm5182, %v5256, %v5040
        %v5289 = vsel %vm5182, %v5257, %v5042
        %v5290 = vsel %vm5182, %v5258, %v5044
        %v5291 = vsel %vm5182, %v5259, %v5046
        %v5292 = vsel %vm5182, %v5260, %v5048
        %v5293 = vsel %vm5182, %v5261, %v5050
        %v5294 = vsel %vm5182, %v5262, %v5052
        %v5295 = vsel %vm5182, %v5263, %v5054
        %v5296 = vsel %vm5182, %v5264, %v5056
        %v5297 = vsel %vm5182, %v5265, %v5058
        %v5298 = vsel %vm5182, %v5266, %v5060
        %v5299 = vsel %vm5182, %v5267, %v5062
        %v5300 = vsel %vm5182, %v5268, %v5064
        %v5301 = vsel %vm5182, %v5269, %v5066
        %v5302 = vsel %vm5182, %v5270, %v5068
        %v5303 = vsel %vm5182, %v5271, %v5070
        %v5304 = vsel %vm5182, %v5272, %v5072
        %v5305 = vsel %vm5182, %v5273, %v5074
        %v5306 = vsel %vm5182, %v5274, %v5076
        %v5307 = vsel %vm5182, %v5275, %v5078
        %v5308 = vsel %vm5182, %v5276, %v5080
        %v5309 = vsel %vm5182, %v5277, %v5082
        %v5310 = vsel %vm5182, %v5278, %v5084
        %v5311 = vpack.c.bf16 %v5184, %v5183
        %v5312 = vpack.c.bf16 %v5280, %v5279
        %v5313 = vpack.c.bf16 %v4318, %v4317
        %v5314 = vpack.c.bf16 %v5186, %v5185
        %v5315 = vpack.c.bf16 %v5282, %v5281
        %v5316 = vpack.c.bf16 %v4320, %v4319
        %v5317 = vpack.c.bf16 %v5188, %v5187
        %v5318 = vpack.c.bf16 %v5284, %v5283
        %v5319 = vpack.c.bf16 %v4322, %v4321
        %v5320 = vpack.c.bf16 %v5190, %v5189
        %v5321 = vpack.c.bf16 %v5286, %v5285
        %v5322 = vpack.c.bf16 %v4324, %v4323
        %v5323 = vpack.c.bf16 %v5192, %v5191
        %v5324 = vpack.c.bf16 %v5288, %v5287
        %v5325 = vpack.c.bf16 %v4326, %v4325
        %v5326 = vpack.c.bf16 %v5194, %v5193
        %v5327 = vpack.c.bf16 %v5290, %v5289
        %v5328 = vpack.c.bf16 %v4328, %v4327
        %v5329 = vpack.c.bf16 %v5196, %v5195
        %v5330 = vpack.c.bf16 %v5292, %v5291
        %v5331 = vpack.c.bf16 %v4330, %v4329
        %v5332 = vpack.c.bf16 %v5198, %v5197
        %v5333 = vpack.c.bf16 %v5294, %v5293
        %v5334 = vpack.c.bf16 %v4332, %v4331
        %v5335 = vpack.c.bf16 %v5200, %v5199
        %v5336 = vpack.c.bf16 %v5296, %v5295
        %v5337 = vpack.c.bf16 %v4334, %v4333
        %v5338 = vpack.c.bf16 %v5202, %v5201
        %v5339 = vpack.c.bf16 %v5298, %v5297
        %v5340 = vpack.c.bf16 %v4336, %v4335
        %v5341 = vpack.c.bf16 %v5204, %v5203
        %v5342 = vpack.c.bf16 %v5300, %v5299
        %v5343 = vpack.c.bf16 %v4338, %v4337
        %v5344 = vpack.c.bf16 %v5206, %v5205
        %v5345 = vpack.c.bf16 %v5302, %v5301
        %v5346 = vpack.c.bf16 %v4340, %v4339
        %v5347 = vpack.c.bf16 %v5208, %v5207
        %v5348 = vpack.c.bf16 %v5304, %v5303
        %v5349 = vpack.c.bf16 %v4342, %v4341
        %v5350 = vpack.c.bf16 %v5210, %v5209
        %v5351 = vpack.c.bf16 %v5306, %v5305
        %v5352 = vpack.c.bf16 %v4344, %v4343
        %v5353 = vpack.c.bf16 %v5212, %v5211
        %v5354 = vpack.c.bf16 %v5308, %v5307
        %v5355 = vpack.c.bf16 %v4346, %v4345
        %v5356 = vpack.c.bf16 %v5214, %v5213
        %v5357 = vpack.c.bf16 %v5310, %v5309
        %v5358 = vpack.c.bf16 %v4348, %v4347
        %v5359 = vld [vmem:[%s5] sm:$0xf]
        %v5360 = vld [vmem:[%s5 + $0x4] sm:$0xf]
        %v5361 = vld [vmem:[%s5 + $0x8] sm:$0xf]
        %v5362 = vld [vmem:[%s5 + $0xc] sm:$0xf]
        %v5363 = vld [vmem:[%s5 + $0x10] sm:$0xf]
        %v5364 = vld [vmem:[%s5 + $0x14] sm:$0xf]
        %v5365 = vld [vmem:[%s5 + $0x18] sm:$0xf]
        %v5366 = vld [vmem:[%s5 + $0x1c] sm:$0xf]
        %v5367 = vld [vmem:[%s5 + $0x20] sm:$0xf]
        %v5368 = vld [vmem:[%s5 + $0x24] sm:$0xf]
        %v5369 = vld [vmem:[%s5 + $0x28] sm:$0xf]
        %v5370 = vld [vmem:[%s5 + $0x2c] sm:$0xf]
        %v5371 = vld [vmem:[%s5 + $0x30] sm:$0xf]
        %v5372 = vld [vmem:[%s5 + $0x34] sm:$0xf]
        %v5373 = vld [vmem:[%s5 + $0x38] sm:$0xf]
        %v5374 = vld [vmem:[%s5 + $0x3c] sm:$0xf]
        %v5375 = vld [vmem:[%s5 + $0x40] sm:$0xf]
        %v5376 = vld [vmem:[%s5 + $0x44] sm:$0xf]
        %v5377 = vld [vmem:[%s5 + $0x48] sm:$0xf]
        %v5378 = vld [vmem:[%s5 + $0x4c] sm:$0xf]
        %v5379 = vld [vmem:[%s5 + $0x50] sm:$0xf]
        %v5380 = vld [vmem:[%s5 + $0x54] sm:$0xf]
        %v5381 = vld [vmem:[%s5 + $0x58] sm:$0xf]
        %v5382 = vld [vmem:[%s5 + $0x5c] sm:$0xf]
        %v5383 = vld [vmem:[%s5 + $0x60] sm:$0xf]
        %v5384 = vld [vmem:[%s5 + $0x64] sm:$0xf]
        %v5385 = vld [vmem:[%s5 + $0x68] sm:$0xf]
        %v5386 = vld [vmem:[%s5 + $0x6c] sm:$0xf]
        %v5387 = vld [vmem:[%s5 + $0x70] sm:$0xf]
        %v5388 = vld [vmem:[%s5 + $0x74] sm:$0xf]
        %v5389 = vld [vmem:[%s5 + $0x78] sm:$0xf]
        %v5390 = vld [vmem:[%s5 + $0x7c] sm:$0xf]
        %v5391 = vld [vmem:[%s5 + $0x80] sm:$0xf]
        %v5392 = vld [vmem:[%s5 + $0x84] sm:$0xf]
        %v5393 = vld [vmem:[%s5 + $0x88] sm:$0xf]
        %v5394 = vld [vmem:[%s5 + $0x8c] sm:$0xf]
        %v5431 = vunpack.c.l.b16 %v5359
        %v5432 = vunpack.c.l.b16 %v5360
        %v5433 = vunpack.c.l.b16 %v5361
        %v5434 = vunpack.c.l.b16 %v5362
        %v5435 = vunpack.c.l.b16 %v5363
        %v5436 = vunpack.c.l.b16 %v5364
        %v5437 = vunpack.c.l.b16 %v5365
        %v5438 = vunpack.c.l.b16 %v5366
        %v5439 = vunpack.c.l.b16 %v5367
        %v5440 = vunpack.c.l.b16 %v5368
        %v5441 = vunpack.c.l.b16 %v5369
        %v5442 = vunpack.c.l.b16 %v5370
        %v5443 = vunpack.c.l.b16 %v5371
        %v5444 = vunpack.c.l.b16 %v5372
        %v5445 = vunpack.c.l.b16 %v5373
        %v5446 = vunpack.c.l.b16 %v5374
        %v5447 = vunpack.c.l.b16 %v5375
        %v5448 = vunpack.c.l.b16 %v5376
        %v5449 = vunpack.c.l.b16 %v5377
        %v5450 = vunpack.c.l.b16 %v5378
        %v5451 = vunpack.c.l.b16 %v5379
        %v5452 = vunpack.c.l.b16 %v5380
        %v5453 = vunpack.c.l.b16 %v5381
        %v5454 = vunpack.c.l.b16 %v5382
        %v5455 = vunpack.c.l.b16 %v5383
        %v5456 = vunpack.c.l.b16 %v5384
        %v5457 = vunpack.c.l.b16 %v5385
        %v5458 = vunpack.c.l.b16 %v5386
        %v5459 = vunpack.c.l.b16 %v5387
        %v5460 = vunpack.c.l.b16 %v5388
        %v5461 = vunpack.c.l.b16 %v5389
        %v5462 = vunpack.c.l.b16 %v5390
        %v5463 = vunpack.c.l.b16 %v5391
        %v5464 = vunpack.c.l.b16 %v5392
        %v5465 = vunpack.c.l.b16 %v5393
        %v5466 = vunpack.c.l.b16 %v5394
        %v5467 = vpack.c.b16 %v5432, %v5431
        %v5468 = vpack.c.b16 %v5434, %v5433
        %v5469 = vpack.c.b16 %v5436, %v5435
        %v5470 = vpack.c.b16 %v5438, %v5437
        %v5471 = vpack.c.b16 %v5440, %v5439
        %v5472 = vpack.c.b16 %v5442, %v5441
        %v5473 = vpack.c.b16 %v5444, %v5443
        %v5474 = vpack.c.b16 %v5446, %v5445
        %v5475 = vpack.c.b16 %v5448, %v5447
        %v5476 = vpack.c.b16 %v5450, %v5449
        %v5477 = vpack.c.b16 %v5452, %v5451
        %v5478 = vpack.c.b16 %v5454, %v5453
        %v5479 = vpack.c.b16 %v5456, %v5455
        %v5480 = vpack.c.b16 %v5458, %v5457
        %v5481 = vpack.c.b16 %v5460, %v5459
        %v5482 = vpack.c.b16 %v5462, %v5461
        %v5483 = vpack.c.b16 %v5464, %v5463
        %v5484 = vpack.c.b16 %v5466, %v5465
        %v5504 = vsel %vm3014, %v5313, 0
        %v5507 = vsel %vm3014, %v5316, 0
        %v5510 = vsel %vm3014, %v5319, 0
        %v5513 = vsel %vm3014, %v5322, 0
        %v5516 = vsel %vm3014, %v5325, 0
        %v5519 = vsel %vm3014, %v5328, 0
        %v5522 = vsel %vm3014, %v5331, 0
        %v5525 = vsel %vm3014, %v5334, 0
        %v5528 = vsel %vm3014, %v5337, 0
        %v5531 = vsel %vm3014, %v5340, 0
        %v5534 = vsel %vm3014, %v5343, 0
        %v5537 = vsel %vm3014, %v5346, 0
        %v5540 = vsel %vm3014, %v5349, 0
        %v5543 = vsel %vm3014, %v5352, 0
        %v5546 = vsel %vm3014, %v5355, 0
        %v5549 = vsel %vm3014, %v5358, 0
        %5551 = vmatprep.subr.bf16.mxu0 0
        %5552 = vmatpush1.bf16.msra.mxu0 %v5467
        %5553 = vmatprep.subr.bf16.mxu0 0
        %5554 = vmatpush1.bf16.msra.mxu0 %v5468
        %5555 = vmatprep.subr.bf16.mxu0 0
        %5556 = vmatpush1.bf16.msra.mxu0 %v5469
        %5557 = vmatprep.subr.bf16.mxu0 0
        %5558 = vmatpush1.bf16.msra.mxu0 %v5470
        %5559 = vmatprep.subr.bf16.mxu0 0
        %5560 = vmatpush1.bf16.msra.mxu0 %v5471
        %5561 = vmatprep.subr.bf16.mxu0 0
        %5562 = vmatpush1.bf16.msra.mxu0 %v5472
        %5563 = vmatprep.subr.bf16.mxu0 0
        %5564 = vmatpush1.bf16.msra.mxu0 %v5473
        %5565 = vmatprep.subr.bf16.mxu0 0
        %5566 = vmatpush1.bf16.msra.mxu0 %v5474
        %5567 = vmatprep.subr.bf16.mxu0 0
        %5568 = vmatpush1.bf16.msra.mxu0 %v5475
        %5569 = vmatprep.subr.bf16.mxu0 0
        %5570 = vmatpush1.bf16.msra.mxu0 %v5476
        %5571 = vmatprep.subr.bf16.mxu0 0
        %5572 = vmatpush1.bf16.msra.mxu0 %v5477
        %5573 = vmatprep.subr.bf16.mxu0 0
        %5574 = vmatpush1.bf16.msra.mxu0 %v5478
        %5575 = vmatprep.subr.bf16.mxu0 0
        %5576 = vmatpush1.bf16.msra.mxu0 %v5479
        %5577 = vmatprep.subr.bf16.mxu0 0
        %5578 = vmatpush1.bf16.msra.mxu0 %v5480
        %5579 = vmatprep.subr.bf16.mxu0 0
        %5580 = vmatpush1.bf16.msra.mxu0 %v5481
        %5581 = vmatprep.subr.bf16.mxu0 0
        %5582 = vmatpush1.bf16.msra.mxu0 %v5482
        %5583 = vmatprep.mubr.bf16.mxu0 %v5312
        %5584 = vmatmul.mubr.bf16.gmra.mrb[0].mxu0 %v5311
        %v5585 = vpop.f32.mrb[0].mxu0
        %v5586 = vadd.f32 0.0, %v5585
        %v5587 = vpop.f32.mrb[0].mxu0
        %v5588 = vpop.f32.mrb[0].mxu0
        %v5589 = vadd.f32 0.0, %v5588
        %v5590 = vpop.f32.mrb[0].mxu0
        %5591 = vmatprep.mubr.bf16.mxu0 %v5315
        %5592 = vmatmul.mubr.bf16.gmra.mrb[0].mxu0 %v5314
        %v5593 = vpop.f32.mrb[0].mxu0
        %v5594 = vadd.f32 0.0, %v5593
        %v5595 = vpop.f32.mrb[0].mxu0
        %v5596 = vpop.f32.mrb[0].mxu0
        %v5597 = vadd.f32 0.0, %v5596
        %v5598 = vpop.f32.mrb[0].mxu0
        %5599 = vmatprep.mubr.bf16.mxu0 %v5318
        %5600 = vmatmul.mubr.bf16.gmra.mrb[0].mxu0 %v5317
        %v5601 = vpop.f32.mrb[0].mxu0
        %v5602 = vadd.f32 0.0, %v5601
        %v5603 = vpop.f32.mrb[0].mxu0
        %v5604 = vpop.f32.mrb[0].mxu0
        %v5605 = vadd.f32 0.0, %v5604
        %v5606 = vpop.f32.mrb[0].mxu0
        %5607 = vmatprep.mubr.bf16.mxu0 %v5321
        %5608 = vmatmul.mubr.bf16.gmra.mrb[0].mxu0 %v5320
        %v5609 = vpop.f32.mrb[0].mxu0
        %v5610 = vadd.f32 0.0, %v5609
        %v5611 = vpop.f32.mrb[0].mxu0
        %v5612 = vpop.f32.mrb[0].mxu0
        %v5613 = vadd.f32 0.0, %v5612
        %v5614 = vpop.f32.mrb[0].mxu0
        %5615 = vmatprep.mubr.bf16.mxu0 %v5324
        %5616 = vmatmul.mubr.bf16.gmra.mrb[0].mxu0 %v5323
        %v5617 = vpop.f32.mrb[0].mxu0
        %v5618 = vadd.f32 0.0, %v5617
        %v5619 = vpop.f32.mrb[0].mxu0
        %v5620 = vpop.f32.mrb[0].mxu0
        %v5621 = vadd.f32 0.0, %v5620
        %v5622 = vpop.f32.mrb[0].mxu0
        %5623 = vmatprep.mubr.bf16.mxu0 %v5327
        %5624 = vmatmul.mubr.bf16.gmra.mrb[0].mxu0 %v5326
        %v5625 = vpop.f32.mrb[0].mxu0
        %v5626 = vadd.f32 0.0, %v5625
        %v5627 = vpop.f32.mrb[0].mxu0
        %v5628 = vpop.f32.mrb[0].mxu0
        %v5629 = vadd.f32 0.0, %v5628
        %v5630 = vpop.f32.mrb[0].mxu0
        %5631 = vmatprep.mubr.bf16.mxu0 %v5330
        %5632 = vmatmul.mubr.bf16.gmra.mrb[0].mxu0 %v5329
        %v5633 = vpop.f32.mrb[0].mxu0
        %v5634 = vadd.f32 0.0, %v5633
        %v5635 = vpop.f32.mrb[0].mxu0
        %v5636 = vpop.f32.mrb[0].mxu0
        %v5637 = vadd.f32 0.0, %v5636
        %v5638 = vpop.f32.mrb[0].mxu0
        %5639 = vmatprep.mubr.bf16.mxu0 %v5333
        %5640 = vmatmul.mubr.bf16.gmra.mrb[0].mxu0 %v5332
        %v5641 = vpop.f32.mrb[0].mxu0
        %v5642 = vadd.f32 0.0, %v5641
        %v5643 = vpop.f32.mrb[0].mxu0
        %v5644 = vpop.f32.mrb[0].mxu0
        %v5645 = vadd.f32 0.0, %v5644
        %v5646 = vpop.f32.mrb[0].mxu0
        %5647 = vmatprep.mubr.bf16.mxu0 %v5336
        %5648 = vmatmul.mubr.bf16.gmra.mrb[0].mxu0 %v5335
        %v5649 = vpop.f32.mrb[0].mxu0
        %v5650 = vadd.f32 0.0, %v5649
        %v5651 = vpop.f32.mrb[0].mxu0
        %v5652 = vpop.f32.mrb[0].mxu0
        %v5653 = vadd.f32 0.0, %v5652
        %v5654 = vpop.f32.mrb[0].mxu0
        %5655 = vmatprep.mubr.bf16.mxu0 %v5339
        %5656 = vmatmul.mubr.bf16.gmra.mrb[0].mxu0 %v5338
        %v5657 = vpop.f32.mrb[0].mxu0
        %v5658 = vadd.f32 0.0, %v5657
        %v5659 = vpop.f32.mrb[0].mxu0
        %v5660 = vpop.f32.mrb[0].mxu0
        %v5661 = vadd.f32 0.0, %v5660
        %v5662 = vpop.f32.mrb[0].mxu0
        %5663 = vmatprep.mubr.bf16.mxu0 %v5342
        %5664 = vmatmul.mubr.bf16.gmra.mrb[0].mxu0 %v5341
        %v5665 = vpop.f32.mrb[0].mxu0
        %v5666 = vadd.f32 0.0, %v5665
        %v5667 = vpop.f32.mrb[0].mxu0
        %v5668 = vpop.f32.mrb[0].mxu0
        %v5669 = vadd.f32 0.0, %v5668
        %v5670 = vpop.f32.mrb[0].mxu0
        %5671 = vmatprep.mubr.bf16.mxu0 %v5345
        %5672 = vmatmul.mubr.bf16.gmra.mrb[0].mxu0 %v5344
        %v5673 = vpop.f32.mrb[0].mxu0
        %v5674 = vadd.f32 0.0, %v5673
        %v5675 = vpop.f32.mrb[0].mxu0
        %v5676 = vpop.f32.mrb[0].mxu0
        %v5677 = vadd.f32 0.0, %v5676
        %v5678 = vpop.f32.mrb[0].mxu0
        %5679 = vmatprep.mubr.bf16.mxu0 %v5348
        %5680 = vmatmul.mubr.bf16.gmra.mrb[0].mxu0 %v5347
        %v5681 = vpop.f32.mrb[0].mxu0
        %v5682 = vadd.f32 0.0, %v5681
        %v5683 = vpop.f32.mrb[0].mxu0
        %v5684 = vpop.f32.mrb[0].mxu0
        %v5685 = vadd.f32 0.0, %v5684
        %v5686 = vpop.f32.mrb[0].mxu0
        %5687 = vmatprep.mubr.bf16.mxu0 %v5351
        %5688 = vmatmul.mubr.bf16.gmra.mrb[0].mxu0 %v5350
        %v5689 = vpop.f32.mrb[0].mxu0
        %v5690 = vadd.f32 0.0, %v5689
        %v5691 = vpop.f32.mrb[0].mxu0
        %v5692 = vpop.f32.mrb[0].mxu0
        %v5693 = vadd.f32 0.0, %v5692
        %v5694 = vpop.f32.mrb[0].mxu0
        %5695 = vmatprep.mubr.bf16.mxu0 %v5354
        %5696 = vmatmul.mubr.bf16.gmra.mrb[0].mxu0 %v5353
        %v5697 = vpop.f32.mrb[0].mxu0
        %v5698 = vadd.f32 0.0, %v5697
        %v5699 = vpop.f32.mrb[0].mxu0
        %v5700 = vpop.f32.mrb[0].mxu0
        %v5701 = vadd.f32 0.0, %v5700
        %v5702 = vpop.f32.mrb[0].mxu0
        %5703 = vmatprep.mubr.bf16.mxu0 %v5357
        %5704 = vmatmul.mubr.bf16.gmra.mrb[0].mxu0 %v5356
        %v5705 = vpop.f32.mrb[0].mxu0
        %v5706 = vadd.f32 0.0, %v5705
        %v5707 = vpop.f32.mrb[0].mxu0
        %v5708 = vpop.f32.mrb[0].mxu0
        %v5709 = vadd.f32 0.0, %v5708
        %v5710 = vpop.f32.mrb[0].mxu0
        %5711 = vdwg.mxu0
        %5712 = vmatprep.subr.bf16.mxu0 0
        %5713 = vmatpush1.bf16.msra.mxu0 %v5483
        %5714 = vmatprep.subr.bf16.mxu0 0
        %5715 = vmatpush1.bf16.msra.mxu0 %v5484
        %5716 = vmatprep.subr.bf16.mxu0 0
        %5717 = vmatpush1.bf16.msra.mxu0 0
        %5718 = vmatprep.subr.bf16.mxu0 0
        %5719 = vmatpush1.bf16.msra.mxu0 0
        %5720 = vmatprep.subr.bf16.mxu0 0
        %5721 = vmatpush1.bf16.msra.mxu0 0
        %5722 = vmatprep.subr.bf16.mxu0 0
        %5723 = vmatpush1.bf16.msra.mxu0 0
        %5724 = vmatprep.subr.bf16.mxu0 0
        %5725 = vmatpush1.bf16.msra.mxu0 0
        %5726 = vmatprep.subr.bf16.mxu0 0
        %5727 = vmatpush1.bf16.msra.mxu0 0
        %5728 = vmatprep.subr.bf16.mxu0 0
        %5729 = vmatpush1.bf16.msra.mxu0 0
        %5730 = vmatprep.subr.bf16.mxu0 0
        %5731 = vmatpush1.bf16.msra.mxu0 0
        %5732 = vmatprep.subr.bf16.mxu0 0
        %5733 = vmatpush1.bf16.msra.mxu0 0
        %5734 = vmatprep.subr.bf16.mxu0 0
        %5735 = vmatpush1.bf16.msra.mxu0 0
        %5736 = vmatprep.subr.bf16.mxu0 0
        %5737 = vmatpush1.bf16.msra.mxu0 0
        %5738 = vmatprep.subr.bf16.mxu0 0
        %5739 = vmatpush1.bf16.msra.mxu0 0
        %5740 = vmatprep.subr.bf16.mxu0 0
        %5741 = vmatpush1.bf16.msra.mxu0 0
        %5742 = vmatprep.subr.bf16.mxu0 0
        %5743 = vmatpush1.bf16.msra.mxu0 0
        %5744 = vmatprep.mubr.bf16.mxu0 0
        %5745 = vmatmul.mubr.bf16.gmra.mrb[0].mxu0 %v5504
        %v5746 = vpop.f32.mrb[0].mxu0
        %v5747 = vadd.f32 %v5586, %v5746
        %v5748 = vpop.f32.mrb[0].mxu0
        %v5749 = vpop.f32.mrb[0].mxu0
        %v5750 = vadd.f32 %v5589, %v5749
        %v5751 = vpop.f32.mrb[0].mxu0
        %5752 = vmatprep.mubr.bf16.mxu0 0
        %5753 = vmatmul.mubr.bf16.gmra.mrb[0].mxu0 %v5507
        %v5754 = vpop.f32.mrb[0].mxu0
        %v5755 = vadd.f32 %v5594, %v5754
        %v5756 = vpop.f32.mrb[0].mxu0
        %v5757 = vpop.f32.mrb[0].mxu0
        %v5758 = vadd.f32 %v5597, %v5757
        %v5759 = vpop.f32.mrb[0].mxu0
        %5760 = vmatprep.mubr.bf16.mxu0 0
        %5761 = vmatmul.mubr.bf16.gmra.mrb[0].mxu0 %v5510
        %v5762 = vpop.f32.mrb[0].mxu0
        %v5763 = vadd.f32 %v5602, %v5762
        %v5764 = vpop.f32.mrb[0].mxu0
        %v5765 = vpop.f32.mrb[0].mxu0
        %v5766 = vadd.f32 %v5605, %v5765
        %v5767 = vpop.f32.mrb[0].mxu0
        %5768 = vmatprep.mubr.bf16.mxu0 0
        %5769 = vmatmul.mubr.bf16.gmra.mrb[0].mxu0 %v5513
        %v5770 = vpop.f32.mrb[0].mxu0
        %v5771 = vadd.f32 %v5610, %v5770
        %v5772 = vpop.f32.mrb[0].mxu0
        %v5773 = vpop.f32.mrb[0].mxu0
        %v5774 = vadd.f32 %v5613, %v5773
        %v5775 = vpop.f32.mrb[0].mxu0
        %5776 = vmatprep.mubr.bf16.mxu0 0
        %5777 = vmatmul.mubr.bf16.gmra.mrb[0].mxu0 %v5516
        %v5778 = vpop.f32.mrb[0].mxu0
        %v5779 = vadd.f32 %v5618, %v5778
        %v5780 = vpop.f32.mrb[0].mxu0
        %v5781 = vpop.f32.mrb[0].mxu0
        %v5782 = vadd.f32 %v5621, %v5781
        %v5783 = vpop.f32.mrb[0].mxu0
        %5784 = vmatprep.mubr.bf16.mxu0 0
        %5785 = vmatmul.mubr.bf16.gmra.mrb[0].mxu0 %v5519
        %v5786 = vpop.f32.mrb[0].mxu0
        %v5787 = vadd.f32 %v5626, %v5786
        %v5788 = vpop.f32.mrb[0].mxu0
        %v5789 = vpop.f32.mrb[0].mxu0
        %v5790 = vadd.f32 %v5629, %v5789
        %v5791 = vpop.f32.mrb[0].mxu0
        %5792 = vmatprep.mubr.bf16.mxu0 0
        %5793 = vmatmul.mubr.bf16.gmra.mrb[0].mxu0 %v5522
        %v5794 = vpop.f32.mrb[0].mxu0
        %v5795 = vadd.f32 %v5634, %v5794
        %v5796 = vpop.f32.mrb[0].mxu0
        %v5797 = vpop.f32.mrb[0].mxu0
        %v5798 = vadd.f32 %v5637, %v5797
        %v5799 = vpop.f32.mrb[0].mxu0
        %5800 = vmatprep.mubr.bf16.mxu0 0
        %5801 = vmatmul.mubr.bf16.gmra.mrb[0].mxu0 %v5525
        %v5802 = vpop.f32.mrb[0].mxu0
        %v5803 = vadd.f32 %v5642, %v5802
        %v5804 = vpop.f32.mrb[0].mxu0
        %v5805 = vpop.f32.mrb[0].mxu0
        %v5806 = vadd.f32 %v5645, %v5805
        %v5807 = vpop.f32.mrb[0].mxu0
        %5808 = vmatprep.mubr.bf16.mxu0 0
        %5809 = vmatmul.mubr.bf16.gmra.mrb[0].mxu0 %v5528
        %v5810 = vpop.f32.mrb[0].mxu0
        %v5811 = vadd.f32 %v5650, %v5810
        %v5812 = vpop.f32.mrb[0].mxu0
        %v5813 = vpop.f32.mrb[0].mxu0
        %v5814 = vadd.f32 %v5653, %v5813
        %v5815 = vpop.f32.mrb[0].mxu0
        %5816 = vmatprep.mubr.bf16.mxu0 0
        %5817 = vmatmul.mubr.bf16.gmra.mrb[0].mxu0 %v5531
        %v5818 = vpop.f32.mrb[0].mxu0
        %v5819 = vadd.f32 %v5658, %v5818
        %v5820 = vpop.f32.mrb[0].mxu0
        %v5821 = vpop.f32.mrb[0].mxu0
        %v5822 = vadd.f32 %v5661, %v5821
        %v5823 = vpop.f32.mrb[0].mxu0
        %5824 = vmatprep.mubr.bf16.mxu0 0
        %5825 = vmatmul.mubr.bf16.gmra.mrb[0].mxu0 %v5534
        %v5826 = vpop.f32.mrb[0].mxu0
        %v5827 = vadd.f32 %v5666, %v5826
        %v5828 = vpop.f32.mrb[0].mxu0
        %v5829 = vpop.f32.mrb[0].mxu0
        %v5830 = vadd.f32 %v5669, %v5829
        %v5831 = vpop.f32.mrb[0].mxu0
        %5832 = vmatprep.mubr.bf16.mxu0 0
        %5833 = vmatmul.mubr.bf16.gmra.mrb[0].mxu0 %v5537
        %v5834 = vpop.f32.mrb[0].mxu0
        %v5835 = vadd.f32 %v5674, %v5834
        %v5836 = vpop.f32.mrb[0].mxu0
        %v5837 = vpop.f32.mrb[0].mxu0
        %v5838 = vadd.f32 %v5677, %v5837
        %v5839 = vpop.f32.mrb[0].mxu0
        %5840 = vmatprep.mubr.bf16.mxu0 0
        %5841 = vmatmul.mubr.bf16.gmra.mrb[0].mxu0 %v5540
        %v5842 = vpop.f32.mrb[0].mxu0
        %v5843 = vadd.f32 %v5682, %v5842
        %v5844 = vpop.f32.mrb[0].mxu0
        %v5845 = vpop.f32.mrb[0].mxu0
        %v5846 = vadd.f32 %v5685, %v5845
        %v5847 = vpop.f32.mrb[0].mxu0
        %5848 = vmatprep.mubr.bf16.mxu0 0
        %5849 = vmatmul.mubr.bf16.gmra.mrb[0].mxu0 %v5543
        %v5850 = vpop.f32.mrb[0].mxu0
        %v5851 = vadd.f32 %v5690, %v5850
        %v5852 = vpop.f32.mrb[0].mxu0
        %v5853 = vpop.f32.mrb[0].mxu0
        %v5854 = vadd.f32 %v5693, %v5853
        %v5855 = vpop.f32.mrb[0].mxu0
        %5856 = vmatprep.mubr.bf16.mxu0 0
        %5857 = vmatmul.mubr.bf16.gmra.mrb[0].mxu0 %v5546
        %v5858 = vpop.f32.mrb[0].mxu0
        %v5859 = vadd.f32 %v5698, %v5858
        %v5860 = vpop.f32.mrb[0].mxu0
        %v5861 = vpop.f32.mrb[0].mxu0
        %v5862 = vadd.f32 %v5701, %v5861
        %v5863 = vpop.f32.mrb[0].mxu0
        %5864 = vmatprep.mubr.bf16.mxu0 0
        %5865 = vmatmul.mubr.bf16.gmra.mrb[0].mxu0 %v5549
        %v5866 = vpop.f32.mrb[0].mxu0
        %v5867 = vadd.f32 %v5706, %v5866
        %v5868 = vpop.f32.mrb[0].mxu0
        %v5869 = vpop.f32.mrb[0].mxu0
        %v5870 = vadd.f32 %v5709, %v5869
        %v5871 = vpop.f32.mrb[0].mxu0
        %5872 = vdwg.mxu0
        %v5873 = vld [vmem:[%s6] sm:$0x1]
        %v5875 = vlaneseq
        %v5876 = vshrl.u32 %v5875, 7
        %v5877 = vsub.s32 0, %v5876
        %v5878 = vrot.slane %v5873, %v5877
        %v5880 = vmul.f32 %v5747, %v5878
        %v5881 = vmul.f32 %v5750, %v5878
        %v5882 = vmul.f32 %v5755, %v5878
        %v5883 = vmul.f32 %v5758, %v5878
        %v5884 = vmul.f32 %v5763, %v5878
        %v5885 = vmul.f32 %v5766, %v5878
        %v5886 = vmul.f32 %v5771, %v5878
        %v5887 = vmul.f32 %v5774, %v5878
        %v5888 = vmul.f32 %v5779, %v5878
        %v5889 = vmul.f32 %v5782, %v5878
        %v5890 = vmul.f32 %v5787, %v5878
        %v5891 = vmul.f32 %v5790, %v5878
        %v5892 = vmul.f32 %v5795, %v5878
        %v5893 = vmul.f32 %v5798, %v5878
        %v5894 = vmul.f32 %v5803, %v5878
        %v5895 = vmul.f32 %v5806, %v5878
        %v5896 = vmul.f32 %v5811, %v5878
        %v5897 = vmul.f32 %v5814, %v5878
        %v5898 = vmul.f32 %v5819, %v5878
        %v5899 = vmul.f32 %v5822, %v5878
        %v5900 = vmul.f32 %v5827, %v5878
        %v5901 = vmul.f32 %v5830, %v5878
        %v5902 = vmul.f32 %v5835, %v5878
        %v5903 = vmul.f32 %v5838, %v5878
        %v5904 = vmul.f32 %v5843, %v5878
        %v5905 = vmul.f32 %v5846, %v5878
        %v5906 = vmul.f32 %v5851, %v5878
        %v5907 = vmul.f32 %v5854, %v5878
        %v5908 = vmul.f32 %v5859, %v5878
        %v5909 = vmul.f32 %v5862, %v5878
        %v5910 = vmul.f32 %v5867, %v5878
        %v5911 = vmul.f32 %v5870, %v5878
        %v5912 = vld [vmem:[%s7] sm:$0x1]
        %v5914 = vlaneseq
        %v5915 = vshrl.u32 %v5914, 7
        %v5916 = vsub.s32 0, %v5915
        %v5917 = vrot.slane %v5912, %v5916
        %v5919 = vadd.f32 %v5880, %v5917
        %v5920 = vadd.f32 %v5881, %v5917
        %v5921 = vadd.f32 %v5882, %v5917
        %v5922 = vadd.f32 %v5883, %v5917
        %v5923 = vadd.f32 %v5884, %v5917
        %v5924 = vadd.f32 %v5885, %v5917
        %v5925 = vadd.f32 %v5886, %v5917
        %v5926 = vadd.f32 %v5887, %v5917
        %v5927 = vadd.f32 %v5888, %v5917
        %v5928 = vadd.f32 %v5889, %v5917
        %v5929 = vadd.f32 %v5890, %v5917
        %v5930 = vadd.f32 %v5891, %v5917
        %v5931 = vadd.f32 %v5892, %v5917
        %v5932 = vadd.f32 %v5893, %v5917
        %v5933 = vadd.f32 %v5894, %v5917
        %v5934 = vadd.f32 %v5895, %v5917
        %v5935 = vadd.f32 %v5896, %v5917
        %v5936 = vadd.f32 %v5897, %v5917
        %v5937 = vadd.f32 %v5898, %v5917
        %v5938 = vadd.f32 %v5899, %v5917
        %v5939 = vadd.f32 %v5900, %v5917
        %v5940 = vadd.f32 %v5901, %v5917
        %v5941 = vadd.f32 %v5902, %v5917
        %v5942 = vadd.f32 %v5903, %v5917
        %v5943 = vadd.f32 %v5904, %v5917
        %v5944 = vadd.f32 %v5905, %v5917
        %v5945 = vadd.f32 %v5906, %v5917
        %v5946 = vadd.f32 %v5907, %v5917
        %v5947 = vadd.f32 %v5908, %v5917
        %v5948 = vadd.f32 %v5909, %v5917
        %v5949 = vadd.f32 %v5910, %v5917
        %v5950 = vadd.f32 %v5911, %v5917
        %v5951 = vmax.f32 %v5919, 0.0
        %v5952 = vmax.f32 %v5920, 0.0
        %v5953 = vmax.f32 %v5921, 0.0
        %v5954 = vmax.f32 %v5922, 0.0
        %v5955 = vmax.f32 %v5923, 0.0
        %v5956 = vmax.f32 %v5924, 0.0
        %v5957 = vmax.f32 %v5925, 0.0
        %v5958 = vmax.f32 %v5926, 0.0
        %v5959 = vmax.f32 %v5927, 0.0
        %v5960 = vmax.f32 %v5928, 0.0
        %v5961 = vmax.f32 %v5929, 0.0
        %v5962 = vmax.f32 %v5930, 0.0
        %v5963 = vmax.f32 %v5931, 0.0
        %v5964 = vmax.f32 %v5932, 0.0
        %v5965 = vmax.f32 %v5933, 0.0
        %v5966 = vmax.f32 %v5934, 0.0
        %v5967 = vmax.f32 %v5935, 0.0
        %v5968 = vmax.f32 %v5936, 0.0
        %v5969 = vmax.f32 %v5937, 0.0
        %v5970 = vmax.f32 %v5938, 0.0
        %v5971 = vmax.f32 %v5939, 0.0
        %v5972 = vmax.f32 %v5940, 0.0
        %v5973 = vmax.f32 %v5941, 0.0
        %v5974 = vmax.f32 %v5942, 0.0
        %v5975 = vmax.f32 %v5943, 0.0
        %v5976 = vmax.f32 %v5944, 0.0
        %v5977 = vmax.f32 %v5945, 0.0
        %v5978 = vmax.f32 %v5946, 0.0
        %v5979 = vmax.f32 %v5947, 0.0
        %v5980 = vmax.f32 %v5948, 0.0
        %v5981 = vmax.f32 %v5949, 0.0
        %v5982 = vmax.f32 %v5950, 0.0
        %v5983 = vadd.f32 %v5951, %v5952
        %v5984 = vadd.f32 %v5983, %v5953
        %v5985 = vadd.f32 %v5984, %v5954
        %v5986 = vadd.f32 %v5985, %v5955
        %v5987 = vadd.f32 %v5986, %v5956
        %v5988 = vadd.f32 %v5987, %v5957
        %v5989 = vadd.f32 %v5988, %v5958
        %v5990 = vadd.f32 %v5989, %v5959
        %v5991 = vadd.f32 %v5990, %v5960
        %v5992 = vadd.f32 %v5991, %v5961
        %v5993 = vadd.f32 %v5992, %v5962
        %v5994 = vadd.f32 %v5993, %v5963
        %v5995 = vadd.f32 %v5994, %v5964
        %v5996 = vadd.f32 %v5995, %v5965
        %v5997 = vadd.f32 %v5996, %v5966
        %v5998 = vadd.f32 %v5997, %v5967
        %v5999 = vadd.f32 %v5998, %v5968
        %v6000 = vadd.f32 %v5999, %v5969
        %v6001 = vadd.f32 %v6000, %v5970
        %v6002 = vadd.f32 %v6001, %v5971
        %v6003 = vadd.f32 %v6002, %v5972
        %v6004 = vadd.f32 %v6003, %v5973
        %v6005 = vadd.f32 %v6004, %v5974
        %v6006 = vadd.f32 %v6005, %v5975
        %v6007 = vadd.f32 %v6006, %v5976
        %v6008 = vadd.f32 %v6007, %v5977
        %v6009 = vadd.f32 %v6008, %v5978
        %v6010 = vadd.f32 %v6009, %v5979
        %v6011 = vadd.f32 %v6010, %v5980
        %v6012 = vadd.f32 %v6011, %v5981
        %v6013 = vadd.f32 %v6012, %v5982
        %v6014 = vrot.slane %v6013, 4
        %v6015 = vadd.f32 %v6013, %v6014
        %v6016 = vrot.slane %v6015, 2
        %v6017 = vadd.f32 %v6015, %v6016
        %v6018 = vrot.slane %v6017, 1
        %v6019 = vadd.f32 %v6017, %v6018
        %v6020 = vmul.f32 %v6019, 0.00390625
        %v6021 = vld [vmem:[%s8] sm:$0xff]
        %v6022 = vld [vmem:[%s8 + $0x8] sm:$0xff]
        %v6023 = vld [vmem:[%s8 + $0x10] sm:$0xff]
        %v6024 = vld [vmem:[%s8 + $0x18] sm:$0xff]
        %v6025 = vld [vmem:[%s8 + $0x20] sm:$0xff]
        %v6026 = vld [vmem:[%s8 + $0x28] sm:$0xff]
        %v6027 = vld [vmem:[%s8 + $0x30] sm:$0xff]
        %v6028 = vld [vmem:[%s8 + $0x38] sm:$0xff]
        %v6029 = vld [vmem:[%s8 + $0x40] sm:$0xff]
        %v6030 = vld [vmem:[%s8 + $0x48] sm:$0xff]
        %v6031 = vld [vmem:[%s8 + $0x50] sm:$0xff]
        %v6032 = vld [vmem:[%s8 + $0x58] sm:$0xff]
        %v6033 = vld [vmem:[%s8 + $0x60] sm:$0xff]
        %v6034 = vld [vmem:[%s8 + $0x68] sm:$0xff]
        %v6035 = vld [vmem:[%s8 + $0x70] sm:$0xff]
        %v6036 = vld [vmem:[%s8 + $0x78] sm:$0xff]
        %v6037 = vld [vmem:[%s9] sm:$0x1]
        %6038 = vmatprep.subr.mxu0 0.0
        %6039 = vmatpush1.msra.mxu0 %v6021
        %6040 = vmatprep.subr.mxu0 0.0
        %6041 = vmatpush1.msra.mxu0 %v6022
        %6042 = vmatprep.subr.mxu0 0.0
        %6043 = vmatpush1.msra.mxu0 %v6023
        %6044 = vmatprep.subr.mxu0 0.0
        %6045 = vmatpush1.msra.mxu0 %v6024
        %6046 = vmatprep.subr.mxu0 0.0
        %6047 = vmatpush1.msra.mxu0 %v6025
        %6048 = vmatprep.subr.mxu0 0.0
        %6049 = vmatpush1.msra.mxu0 %v6026
        %6050 = vmatprep.subr.mxu0 0.0
        %6051 = vmatpush1.msra.mxu0 %v6027
        %6052 = vmatprep.subr.mxu0 0.0
        %6053 = vmatpush1.msra.mxu0 %v6028
        %6054 = vmatprep.subr.mxu0 0.0
        %6055 = vmatpush1.msra.mxu0 %v6029
        %6056 = vmatprep.subr.mxu0 0.0
        %6057 = vmatpush1.msra.mxu0 %v6030
        %6058 = vmatprep.subr.mxu0 0.0
        %6059 = vmatpush1.msra.mxu0 %v6031
        %6060 = vmatprep.subr.mxu0 0.0
        %6061 = vmatpush1.msra.mxu0 %v6032
        %6062 = vmatprep.subr.mxu0 0.0
        %6063 = vmatpush1.msra.mxu0 %v6033
        %6064 = vmatprep.subr.mxu0 0.0
        %6065 = vmatpush1.msra.mxu0 %v6034
        %6066 = vmatprep.subr.mxu0 0.0
        %6067 = vmatpush1.msra.mxu0 %v6035
        %6068 = vmatprep.subr.mxu0 0.0
        %6069 = vmatpush1.msra.mxu0 %v6036
        %6070 = vmatprep.subr.mxu0 0.0
        %6071 = vmatpush1.msra.mxu0 0.0
        %6072 = vmatprep.subr.mxu0 0.0
        %6073 = vmatpush1.msra.mxu0 0.0
        %6074 = vmatprep.subr.mxu0 0.0
        %6075 = vmatpush1.msra.mxu0 0.0
        %6076 = vmatprep.subr.mxu0 0.0
        %6077 = vmatpush1.msra.mxu0 0.0
        %6078 = vmatprep.subr.mxu0 0.0
        %6079 = vmatpush1.msra.mxu0 0.0
        %6080 = vmatprep.subr.mxu0 0.0
        %6081 = vmatpush1.msra.mxu0 0.0
        %6082 = vmatprep.subr.mxu0 0.0
        %6083 = vmatpush1.msra.mxu0 0.0
        %6084 = vmatprep.subr.mxu0 0.0
        %6085 = vmatpush1.msra.mxu0 0.0
        %6086 = vmatprep.subr.mxu0 0.0
        %6087 = vmatpush1.msra.mxu0 0.0
        %6088 = vmatprep.subr.mxu0 0.0
        %6089 = vmatpush1.msra.mxu0 0.0
        %6090 = vmatprep.subr.mxu0 0.0
        %6091 = vmatpush1.msra.mxu0 0.0
        %6092 = vmatprep.subr.mxu0 0.0
        %6093 = vmatpush1.msra.mxu0 0.0
        %6094 = vmatprep.subr.mxu0 0.0
        %6095 = vmatpush1.msra.mxu0 0.0
        %6096 = vmatprep.subr.mxu0 0.0
        %6097 = vmatpush1.msra.mxu0 0.0
        %6098 = vmatprep.subr.mxu0 0.0
        %6099 = vmatpush1.msra.mxu0 0.0
        %6100 = vmatprep.subr.mxu0 0.0
        %6101 = vmatpush1.msra.mxu0 0.0
        %6102 = vmatprep.mubr.f32.mxu0 0.0
        %6103 = vmatmul.mubr.f32.gmra.mrb[0].mxu0 %v6020
        %v6104 = vpop.f32.mrb[0].mxu0
        %v6105 = vadd.f32 %v6037, %v6104
        %v6106 = vpop.f32.mrb[0].mxu0
        %6107 = vdwg.mxu0
        %v6108 = vmax.f32 %v6105, 0.0
        %v6109 = vld [vmem:[%s10] sm:$0xf]
        %v6110 = vld [vmem:[%s11] sm:$0x1]
        %v6112 = vsel %vm2629, %v6108, 0
        %vm6114 = vcmask 1043456
        %v6116 = vsel %vm6114, %v6109, 0
        %6118 = vmatprep.subr.mxu0 0.0
        %6119 = vmatpush1.msra.mxu0 %v6116
        %6120 = vmatprep.subr.mxu0 0.0
        %6121 = vmatpush1.msra.mxu0 0.0
        %6122 = vmatprep.subr.mxu0 0.0
        %6123 = vmatpush1.msra.mxu0 0.0
        %6124 = vmatprep.subr.mxu0 0.0
        %6125 = vmatpush1.msra.mxu0 0.0
        %6126 = vmatprep.subr.mxu0 0.0
        %6127 = vmatpush1.msra.mxu0 0.0
        %6128 = vmatprep.subr.mxu0 0.0
        %6129 = vmatpush1.msra.mxu0 0.0
        %6130 = vmatprep.subr.mxu0 0.0
        %6131 = vmatpush1.msra.mxu0 0.0
        %6132 = vmatprep.subr.mxu0 0.0
        %6133 = vmatpush1.msra.mxu0 0.0
        %6134 = vmatprep.subr.mxu0 0.0
        %6135 = vmatpush1.msra.mxu0 0.0
        %6136 = vmatprep.subr.mxu0 0.0
        %6137 = vmatpush1.msra.mxu0 0.0
        %6138 = vmatprep.subr.mxu0 0.0
        %6139 = vmatpush1.msra.mxu0 0.0
        %6140 = vmatprep.subr.mxu0 0.0
        %6141 = vmatpush1.msra.mxu0 0.0
        %6142 = vmatprep.subr.mxu0 0.0
        %6143 = vmatpush1.msra.mxu0 0.0
        %6144 = vmatprep.subr.mxu0 0.0
        %6145 = vmatpush1.msra.mxu0 0.0
        %6146 = vmatprep.subr.mxu0 0.0
        %6147 = vmatpush1.msra.mxu0 0.0
        %6148 = vmatprep.subr.mxu0 0.0
        %6149 = vmatpush1.msra.mxu0 0.0
        %6150 = vmatprep.subr.mxu0 0.0
        %6151 = vmatpush1.msra.mxu0 0.0
        %6152 = vmatprep.subr.mxu0 0.0
        %6153 = vmatpush1.msra.mxu0 0.0
        %6154 = vmatprep.subr.mxu0 0.0
        %6155 = vmatpush1.msra.mxu0 0.0
        %6156 = vmatprep.subr.mxu0 0.0
        %6157 = vmatpush1.msra.mxu0 0.0
        %6158 = vmatprep.subr.mxu0 0.0
        %6159 = vmatpush1.msra.mxu0 0.0
        %6160 = vmatprep.subr.mxu0 0.0
        %6161 = vmatpush1.msra.mxu0 0.0
        %6162 = vmatprep.subr.mxu0 0.0
        %6163 = vmatpush1.msra.mxu0 0.0
        %6164 = vmatprep.subr.mxu0 0.0
        %6165 = vmatpush1.msra.mxu0 0.0
        %6166 = vmatprep.subr.mxu0 0.0
        %6167 = vmatpush1.msra.mxu0 0.0
        %6168 = vmatprep.subr.mxu0 0.0
        %6169 = vmatpush1.msra.mxu0 0.0
        %6170 = vmatprep.subr.mxu0 0.0
        %6171 = vmatpush1.msra.mxu0 0.0
        %6172 = vmatprep.subr.mxu0 0.0
        %6173 = vmatpush1.msra.mxu0 0.0
        %6174 = vmatprep.subr.mxu0 0.0
        %6175 = vmatpush1.msra.mxu0 0.0
        %6176 = vmatprep.subr.mxu0 0.0
        %6177 = vmatpush1.msra.mxu0 0.0
        %6178 = vmatprep.subr.mxu0 0.0
        %6179 = vmatpush1.msra.mxu0 0.0
        %6180 = vmatprep.subr.mxu0 0.0
        %6181 = vmatpush1.msra.mxu0 0.0
        %6182 = vmatprep.mubr.f32.mxu0 0.0
        %6183 = vmatmul.mubr.f32.gmra.mrb[0].mxu0 %v6112
        %v6184 = vpop.f32.mrb[0].mxu0
        %v6185 = vadd.f32 %v6110, %v6184
        %v6186 = vpop.f32.mrb[0].mxu0
        %6187 = vdwg.mxu0
        %v6188 = vsub.f32 0.0, %v6185
        %v6189 = vmul.f32 %v6188, 1.442695
        %v6190 = vpow.pop %v6189
        %v6191 = vadd.f32 %v6190, 1.0
        %v6192 = vrcp.pop %v6191
        %v6193 = vmul.f32 1.0, %v6192
        %v6194 = vlaneseq
        %v6195 = vshrl.u32 %v6194, 7
        %v6196 = vsub.s32 0, %v6195
        %v6197 = vrot.slane %v6193, %v6196
        %v6198 = vmul.f32 %v5951, %v6197
        %v6199 = vmul.f32 %v5952, %v6197
        %v6200 = vmul.f32 %v5953, %v6197
        %v6201 = vmul.f32 %v5954, %v6197
        %v6202 = vmul.f32 %v5955, %v6197
        %v6203 = vmul.f32 %v5956, %v6197
        %v6204 = vmul.f32 %v5957, %v6197
        %v6205 = vmul.f32 %v5958, %v6197
        %v6206 = vmul.f32 %v5959, %v6197
        %v6207 = vmul.f32 %v5960, %v6197
        %v6208 = vmul.f32 %v5961, %v6197
        %v6209 = vmul.f32 %v5962, %v6197
        %v6210 = vmul.f32 %v5963, %v6197
        %v6211 = vmul.f32 %v5964, %v6197
        %v6212 = vmul.f32 %v5965, %v6197
        %v6213 = vmul.f32 %v5966, %v6197
        %v6214 = vmul.f32 %v5967, %v6197
        %v6215 = vmul.f32 %v5968, %v6197
        %v6216 = vmul.f32 %v5969, %v6197
        %v6217 = vmul.f32 %v5970, %v6197
        %v6218 = vmul.f32 %v5971, %v6197
        %v6219 = vmul.f32 %v5972, %v6197
        %v6220 = vmul.f32 %v5973, %v6197
        %v6221 = vmul.f32 %v5974, %v6197
        %v6222 = vmul.f32 %v5975, %v6197
        %v6223 = vmul.f32 %v5976, %v6197
        %v6224 = vmul.f32 %v5977, %v6197
        %v6225 = vmul.f32 %v5978, %v6197
        %v6226 = vmul.f32 %v5979, %v6197
        %v6227 = vmul.f32 %v5980, %v6197
        %v6228 = vmul.f32 %v5981, %v6197
        %v6229 = vmul.f32 %v5982, %v6197
        %6230 = vst [vmem:[%s406] sm:$0xff] %v6198
        %6231 = vst [vmem:[%s406 + $0x8] sm:$0xff] %v6199
        %6232 = vst [vmem:[%s406 + $0x10] sm:$0xff] %v6200
        %6233 = vst [vmem:[%s406 + $0x18] sm:$0xff] %v6201
        %6234 = vst [vmem:[%s406 + $0x20] sm:$0xff] %v6202
        %6235 = vst [vmem:[%s406 + $0x28] sm:$0xff] %v6203
        %6236 = vst [vmem:[%s406 + $0x30] sm:$0xff] %v6204
        %6237 = vst [vmem:[%s406 + $0x38] sm:$0xff] %v6205
        %6238 = vst [vmem:[%s406 + $0x40] sm:$0xff] %v6206
        %6239 = vst [vmem:[%s406 + $0x48] sm:$0xff] %v6207
        %6240 = vst [vmem:[%s406 + $0x50] sm:$0xff] %v6208
        %6241 = vst [vmem:[%s406 + $0x58] sm:$0xff] %v6209
        %6242 = vst [vmem:[%s406 + $0x60] sm:$0xff] %v6210
        %6243 = vst [vmem:[%s406 + $0x68] sm:$0xff] %v6211
        %6244 = vst [vmem:[%s406 + $0x70] sm:$0xff] %v6212
        %6245 = vst [vmem:[%s406 + $0x78] sm:$0xff] %v6213
        %6246 = vst [vmem:[%s406 + $0x80] sm:$0xff] %v6214
        %6247 = vst [vmem:[%s406 + $0x88] sm:$0xff] %v6215
        %6248 = vst [vmem:[%s406 + $0x90] sm:$0xff] %v6216
        %6249 = vst [vmem:[%s406 + $0x98] sm:$0xff] %v6217
        %6250 = vst [vmem:[%s406 + $0xa0] sm:$0xff] %v6218
        %6251 = vst [vmem:[%s406 + $0xa8] sm:$0xff] %v6219
        %6252 = vst [vmem:[%s406 + $0xb0] sm:$0xff] %v6220
        %6253 = vst [vmem:[%s406 + $0xb8] sm:$0xff] %v6221
        %6254 = vst [vmem:[%s406 + $0xc0] sm:$0xff] %v6222
        %6255 = vst [vmem:[%s406 + $0xc8] sm:$0xff] %v6223
        %6256 = vst [vmem:[%s406 + $0xd0] sm:$0xff] %v6224
        %6257 = vst [vmem:[%s406 + $0xd8] sm:$0xff] %v6225
        %6258 = vst [vmem:[%s406 + $0xe0] sm:$0xff] %v6226
        %6259 = vst [vmem:[%s406 + $0xe8] sm:$0xff] %v6227
        %6260 = vst [vmem:[%s406 + $0xf0] sm:$0xff] %v6228
        %6261 = vst [vmem:[%s406 + $0xf8] sm:$0xff] %v6229
        %s6262 = sand.u32 %s291, 1
        %s6263 = scalar_lea.sflag [#allocation4], %s6262
        %s6264 = sand.u32 %s291, 1
        %s6265 = smul.addr %s6264, 256
        %s6266 = scalar_lea.vmem [#allocation3], %s6265
        // Predicated region
        $region69: #{en_blocks_forward.1} parent=67 // pred_check
          %p6267 = pneg %p301
        $region70: #{en_blocks_forward.1} parent=67 // pred_check_branch
          %6269 = sbr.rel (%p6267) target = $region72
        $region71: #{en_blocks_forward.1} parent=67 // pred_region
          %s6271 = ssub.s32 4096, 4096
          %6272 = vsyncadd %s6263, %s6271
          %s6273 = smul.addr %s26, 32
          %s6274 = smul.addr %s6273, 128
          %s6275 = scalar_lea.hbm %s12, %s6274
          %s6276 = sshll.u32 %s6266, 4
          %s6277 = int_to_ptr.vmem [resolvable:$true] %s6276
          %6282 = dma.vmem_to_hbm [thread:$0]  %s6277, 4096, %s6275, %s6263, 128, 128, 8
        $region72: #{en_blocks_forward.1} parent=67 // pred_fallthru
          _
      $region68: #{en_blocks_forward.1} parent=5 // pred_fallthru
        _
      %p6283 = scmp.le.s32.totalorder 2, %s21
      // Predicated region
      $region73: #{en_blocks_forward.1} parent=5 // pred_check
        %p6284 = pneg %p6283
      $region74: #{en_blocks_forward.1} parent=5 // pred_check_branch
        %6286 = sbr.rel (%p6284) target = $region76
      $region75: #{en_blocks_forward.1} parent=5 // pred_region
        %s6287 = ssub.s32 %s21, 2
        // Predicated region
        $region77: #{en_blocks_forward.1} parent=75 // pred_check
          %p6288 = pneg %p307
        $region78: #{en_blocks_forward.1} parent=75 // pred_check_branch
          %6290 = sbr.rel (%p6288) target = $region80
        $region79: #{en_blocks_forward.1} parent=75 // pred_region
          %s6291 = sand.u32 %s292, 1
          %s6292 = scalar_lea.sflag [#allocation4], %s6291
          %s6293 = sand.u32 %s292, 1
          %s6294 = smul.addr %s6293, 256
          %s6295 = scalar_lea.vmem [#allocation3], %s6294
          %6296 = dma.done %s6292, 4096
        $region80: #{en_blocks_forward.1} parent=75 // pred_fallthru
          _
      $region76: #{en_blocks_forward.1} parent=5 // pred_fallthru
        _
    $region6: #{en_blocks_forward.1} parent=1 // loop_footer
      %s25 = sadd.s32 1, %s21
    $region7: #{en_blocks_forward.1} parent=1 // loop_footer_branch
      %20 = sbr.rel target = $region3
    $region8: #{en_blocks_forward.1} parent=1 // loop_exit
      _
    %6297 = vsyncpa [#allocation4], 1
    %s6298 = scalar_lea.sflag [#allocation4], 1
    %6299 = vsyncpa %s6298, 1

</llo_original>
